<compile_context>
chip_gen: v7x
topology: tpu7x:2x2x1
jax: 0.10.0
libtpu: 0.0.40
codegen_flags: <defaults>
</compile_context>

<pallas_src>
import jax
import jax.numpy as jnp
import numpy as np
from jax.experimental import pallas as pl
from jax.experimental.pallas import tpu as pltpu  # noqa: F401


# ---------------------------------------------------------------------------
# Host-side constant builders (weight packing / layout only, no activations).
# ---------------------------------------------------------------------------
def _band_shift(w_in, w_out):
    """(3, w_in, w_out) one-hot shift matrices: s[kj, v+kj, v] = 1."""
    s = np.zeros((3, w_in, w_out), np.float32)
    for kj in range(3):
        s[kj, np.arange(w_out) + kj, np.arange(w_out)] = 1.0
    return s


def _row_select(hp, h):
    """(2, hp, h): r[d, i, 2i+d] = 1  (picks pooling rows)."""
    r = np.zeros((2, hp, h), np.float32)
    for d in range(2):
        r[d, np.arange(hp), 2 * np.arange(hp) + d] = 1.0
    return r


def _col_select(wp, w, c):
    """(2, w*c, wp*c): s[d, (2j+d)*c+ch, j*c+ch] = 1  (picks pooling cols per channel)."""
    s = np.zeros((2, w * c, wp * c), np.float32)
    for d in range(2):
        for j in range(wp):
            for ch in range(c):
                s[d, (2 * j + d) * c + ch, j * c + ch] = 1.0
    return s


_SHIFT1 = _band_shift(32, 30)                  # conv1: width 32 -> 30
_SHIFT2 = _band_shift(15, 13)                  # conv2: width 15 -> 13
_R1 = jnp.asarray(_row_select(15, 30))         # (2, 15, 30)
_S1 = jnp.asarray(_col_select(15, 30, 6))      # (2, 180, 90)
_R2 = jnp.asarray(_row_select(6, 13))          # (2, 6, 13)    (floor pool drops row 12)
_S2 = jnp.asarray(_col_select(6, 13, 16))      # (2, 208, 96)  (floor pool drops col 12)


# ---------------------------------------------------------------------------
# The single fused kernel: conv1+relu+pool1 -> conv2+relu+pool2 -> fc1/fc2/fc3
# ---------------------------------------------------------------------------
def net_kernel(x_ref, b1_ref, bias1_ref, b2_ref, bias2_ref,
               r1_ref, s1_ref, r2_ref, s2_ref,
               wf1_ref, bf1_ref, wf2_ref, bf2_ref, wf3_ref, bf3_ref,
               o_ref):
    f32 = jnp.float32
    n_batch = x_ref.shape[0]
    for n in range(n_batch):                      # N is tiny; static unroll
        x_img = x_ref[n]                          # (32, 32)

        # ---- conv1 (1->6, 3x3) as 3 banded MXU matmuls; lanes = w_out*6 + co ----
        a1 = jnp.dot(x_img[0:30, :], b1_ref[0], preferred_element_type=f32)
        a1 = a1 + jnp.dot(x_img[1:31, :], b1_ref[1], preferred_element_type=f32)
        a1 = a1 + jnp.dot(x_img[2:32, :], b1_ref[2], preferred_element_type=f32)
        a1 = jnp.maximum(a1 + bias1_ref[...], 0.0)          # (30, 180), ReLU

        # ---- maxpool 2x2: one-hot row/col selection matmuls + elementwise max ----
        rows0 = jnp.dot(r1_ref[0], a1, preferred_element_type=f32)   # (15, 180)
        rows1 = jnp.dot(r1_ref[1], a1, preferred_element_type=f32)
        p1 = jnp.dot(rows0, s1_ref[0], preferred_element_type=f32)
        p1 = jnp.maximum(p1, jnp.dot(rows0, s1_ref[1], preferred_element_type=f32))
        p1 = jnp.maximum(p1, jnp.dot(rows1, s1_ref[0], preferred_element_type=f32))
        p1 = jnp.maximum(p1, jnp.dot(rows1, s1_ref[1], preferred_element_type=f32))
        # p1: (15, 90), lanes = w*6 + ci

        # ---- conv2 (6->16, 3x3) as 3 banded MXU matmuls; lanes = w_out*16 + co ----
        a2 = jnp.dot(p1[0:13, :], b2_ref[0], preferred_element_type=f32)
        a2 = a2 + jnp.dot(p1[1:14, :], b2_ref[1], preferred_element_type=f32)
        a2 = a2 + jnp.dot(p1[2:15, :], b2_ref[2], preferred_element_type=f32)
        a2 = jnp.maximum(a2 + bias2_ref[...], 0.0)           # (13, 208), ReLU

        # ---- maxpool 2x2 (floor: uses rows/cols 0..11) ----
        q0 = jnp.dot(r2_ref[0], a2, preferred_element_type=f32)      # (6, 208)
        q1 = jnp.dot(r2_ref[1], a2, preferred_element_type=f32)
        p2 = jnp.dot(q0, s2_ref[0], preferred_element_type=f32)
        p2 = jnp.maximum(p2, jnp.dot(q0, s2_ref[1], preferred_element_type=f32))
        p2 = jnp.maximum(p2, jnp.dot(q1, s2_ref[0], preferred_element_type=f32))
        p2 = jnp.maximum(p2, jnp.dot(q1, s2_ref[1], preferred_element_type=f32))
        # p2: (6, 96), lanes = w*16 + co   (== flattened features, row-permuted fc1)

        # ---- fc1 (weights row-permuted host-side) + relu ----
        h1 = bf1_ref[...]                                    # (1, 120)
        for i in range(6):
            h1 = h1 + jnp.dot(p2[i:i + 1, :], wf1_ref[i], preferred_element_type=f32)
        h1 = jnp.maximum(h1, 0.0)

        # ---- fc2 + relu, fc3 ----
        h2 = jnp.maximum(
            jnp.dot(h1, wf2_ref[...], preferred_element_type=f32) + bf2_ref[...], 0.0)
        out_n = jnp.dot(h2, wf3_ref[...], preferred_element_type=f32) + bf3_ref[...]
        o_ref[n:n + 1, :] = out_n                            # (1, 10)


# ---------------------------------------------------------------------------
# Wrapper: pack weights into banded / permuted matrices and launch ONE kernel.
# ---------------------------------------------------------------------------
def pack_params(params):
    (w1, b1, w2, b2, wf1, bf1, wf2, bf2, wf3, bf3) = params
    # conv1 banded matrices B1[ki]: (32, 30*6), B1[ki][u, v*6+co] = w1[co,0,ki,u-v]
    B1 = jnp.stack([
        jnp.einsum('juv,cj->uvc', _SHIFT1, w1[:, 0, ki, :]).reshape(32, 180)
        for ki in range(3)])                                           # (3, 32, 180)
    # conv2 banded matrices B2[ki]: (15*6, 13*16), rows=(u,ci), cols=(v,co)
    B2 = jnp.stack([
        jnp.einsum('juv,oij->uivo', _SHIFT2, w2[:, :, ki, :]).reshape(90, 208)
        for ki in range(3)])                                           # (3, 90, 208)
    bias1 = jnp.tile(b1, 30).reshape(1, 180)
    bias2 = jnp.tile(b2, 13).reshape(1, 208)
    # fc1 rows permuted from torch (co, i, j) flatten order to our (i, j*16+co) layout
    wf1r = wf1.reshape(16, 6, 6, 120).transpose(1, 2, 0, 3).reshape(6, 96, 120)
    return (B1, bias1, B2, bias2, wf1r, bf1.reshape(1, 120),
            wf2, bf2.reshape(1, 84), wf3, bf3.reshape(1, 10))


def net_forward(x, params):
    n = x.shape[0]
    (B1, bias1, B2, bias2, wf1r, bf1r, wf2, bf2r, wf3, bf3r) = pack_params(params)
    x2 = x.reshape(n, 32, 32)          # cin == 1
    # Single fused pallas_call, no grid: whole arrays (<1 MiB total) live in VMEM.
    # (For large N, add a "parallel" batch grid axis; pointless at N=2.)
    return pl.pallas_call(
        net_kernel,
        out_shape=jax.ShapeDtypeStruct((n, 10), jnp.float32),
    )(x2, B1, bias1, B2, bias2, _R1, _S1, _R2, _S2,
      wf1r, bf1r, wf2, bf2r, wf3, bf3r)


# ---------------------------------------------------------------------------
# Pure-JAX reference (for correctness check)
# ---------------------------------------------------------------------------
def ref_forward(x, params):
    (w1, b1, w2, b2, wf1, bf1, wf2, bf2, wf3, bf3) = params

    def conv(x, w, b):
        y = jax.lax.conv_general_dilated(x, w, (1, 1), "VALID",
                                         dimension_numbers=("NCHW", "OIHW", "NCHW"))
        return y + b.reshape(1, -1, 1, 1)

    def pool(y):
        return jax.lax.reduce_window(y, -jnp.inf, jax.lax.max,
                                     (1, 1, 2, 2), (1, 1, 2, 2), "VALID")

    with jax.default_matmul_precision("highest"):
        y = pool(jnp.maximum(conv(x, w1, b1), 0.0))
        y = pool(jnp.maximum(conv(y, w2, b2), 0.0))
        f = y.reshape(y.shape[0], -1)
        h = jnp.maximum(f @ wf1 + bf1, 0.0)
        h = jnp.maximum(h @ wf2 + bf2, 0.0)
        return h @ wf3 + bf3


if __name__ == "__main__":
    key = jax.random.PRNGKey(0)
    ks = jax.random.split(key, 11)
    # Deterministic synthetic parameters (shapes from Net.__init__).
    w1 = jax.random.normal(ks[0], (6, 1, 3, 3), jnp.float32) / 3.0
    b1 = jax.random.normal(ks[1], (6,), jnp.float32) * 0.1
    w2 = jax.random.normal(ks[2], (16, 6, 3, 3), jnp.float32) / jnp.sqrt(54.0)
    b2 = jax.random.normal(ks[3], (16,), jnp.float32) * 0.1
    wf1 = jax.random.normal(ks[4], (576, 120), jnp.float32) / jnp.sqrt(576.0)
    bf1 = jax.random.normal(ks[5], (120,), jnp.float32) * 0.1
    wf2 = jax.random.normal(ks[6], (120, 84), jnp.float32) / jnp.sqrt(120.0)
    bf2 = jax.random.normal(ks[7], (84,), jnp.float32) * 0.1
    wf3 = jax.random.normal(ks[8], (84, 10), jnp.float32) / jnp.sqrt(84.0)
    bf3 = jax.random.normal(ks[9], (10,), jnp.float32) * 0.1
    params = (w1, b1, w2, b2, wf1, bf1, wf2, bf2, wf3, bf3)

    # Input implied by fc1 = Linear(16*6*6, ...): N x 1 x 32 x 32
    x = jax.random.normal(ks[10], (2, 1, 32, 32), jnp.float32)

    out = jax.block_until_ready(jax.jit(net_forward)(x, params))
    assert out.shape == (2, 10) and out.dtype == jnp.float32

    ref = jax.block_until_ready(ref_forward(x, params))
    np.testing.assert_allclose(np.asarray(out), np.asarray(ref), rtol=2e-2, atol=2e-2)

    print("KERNEL_OK")
</pallas_src>

<mosaic_0001>
module attributes {stable_mosaic.version = 11 : i64} {
  func.func @net_kernel(%arg0: memref<2x32x32xf32, #tpu.memory_space<vmem>>, %arg1: memref<3x32x180xf32, #tpu.memory_space<vmem>>, %arg2: memref<1x180xf32, #tpu.memory_space<vmem>>, %arg3: memref<3x90x208xf32, #tpu.memory_space<vmem>>, %arg4: memref<1x208xf32, #tpu.memory_space<vmem>>, %arg5: memref<2x15x30xf32, #tpu.memory_space<vmem>>, %arg6: memref<2x180x90xf32, #tpu.memory_space<vmem>>, %arg7: memref<2x6x13xf32, #tpu.memory_space<vmem>>, %arg8: memref<2x208x96xf32, #tpu.memory_space<vmem>>, %arg9: memref<6x96x120xf32, #tpu.memory_space<vmem>>, %arg10: memref<1x120xf32, #tpu.memory_space<vmem>>, %arg11: memref<120x84xf32, #tpu.memory_space<vmem>>, %arg12: memref<1x84xf32, #tpu.memory_space<vmem>>, %arg13: memref<84x10xf32, #tpu.memory_space<vmem>>, %arg14: memref<1x10xf32, #tpu.memory_space<vmem>>, %arg15: memref<2x10xf32, #tpu.memory_space<vmem>>) attributes {dimension_semantics = [], scalar_prefetch = 0 : i64, scratch_operands = 0 : i64, tpu.core_type = #tpu.core_type<tc>} {
    %c0 = arith.constant 0 : index
    %c0_0 = arith.constant 0 : index
    %c0_1 = arith.constant 0 : index
    %0 = vector.load %arg0[%c0, %c0_0, %c0_1] : memref<2x32x32xf32, #tpu.memory_space<vmem>>, vector<1x32x32xf32>
    %1 = vector.shape_cast %0 : vector<1x32x32xf32> to vector<32x32xf32>
    %2 = vector.extract_strided_slice %1 {offsets = [0, 0], sizes = [30, 32], strides = [1, 1]} : vector<32x32xf32> to vector<30x32xf32>
    %c0_2 = arith.constant 0 : index
    %c0_3 = arith.constant 0 : index
    %c0_4 = arith.constant 0 : index
    %3 = vector.load %arg1[%c0_2, %c0_3, %c0_4] : memref<3x32x180xf32, #tpu.memory_space<vmem>>, vector<1x32x180xf32>
    %4 = vector.shape_cast %3 : vector<1x32x180xf32> to vector<32x180xf32>
    %cst = arith.constant dense<0.000000e+00> : vector<30x180xf32>
    %5 = tpu.matmul %2, %4, %cst {dimension_numbers = #tpu.dot_dimension_numbers<[1], [0], [0], [1], [0, 0, 1, 1], [], []>} : vector<30x32xf32>, vector<32x180xf32>, vector<30x180xf32> -> vector<30x180xf32>
    %6 = vector.extract_strided_slice %1 {offsets = [1, 0], sizes = [30, 32], strides = [1, 1]} : vector<32x32xf32> to vector<30x32xf32>
    %c1 = arith.constant 1 : index
    %c0_5 = arith.constant 0 : index
    %c0_6 = arith.constant 0 : index
    %7 = vector.load %arg1[%c1, %c0_5, %c0_6] : memref<3x32x180xf32, #tpu.memory_space<vmem>>, vector<1x32x180xf32>
    %8 = vector.shape_cast %7 : vector<1x32x180xf32> to vector<32x180xf32>
    %cst_7 = arith.constant dense<0.000000e+00> : vector<30x180xf32>
    %9 = tpu.matmul %6, %8, %cst_7 {dimension_numbers = #tpu.dot_dimension_numbers<[1], [0], [0], [1], [0, 0, 1, 1], [], []>} : vector<30x32xf32>, vector<32x180xf32>, vector<30x180xf32> -> vector<30x180xf32>
    %10 = arith.addf %5, %9 : vector<30x180xf32>
    %11 = vector.extract_strided_slice %1 {offsets = [2, 0], sizes = [30, 32], strides = [1, 1]} : vector<32x32xf32> to vector<30x32xf32>
    %c2 = arith.constant 2 : index
    %c0_8 = arith.constant 0 : index
    %c0_9 = arith.constant 0 : index
    %12 = vector.load %arg1[%c2, %c0_8, %c0_9] : memref<3x32x180xf32, #tpu.memory_space<vmem>>, vector<1x32x180xf32>
    %13 = vector.shape_cast %12 : vector<1x32x180xf32> to vector<32x180xf32>
    %cst_10 = arith.constant dense<0.000000e+00> : vector<30x180xf32>
    %14 = tpu.matmul %11, %13, %cst_10 {dimension_numbers = #tpu.dot_dimension_numbers<[1], [0], [0], [1], [0, 0, 1, 1], [], []>} : vector<30x32xf32>, vector<32x180xf32>, vector<30x180xf32> -> vector<30x180xf32>
    %15 = arith.addf %10, %14 : vector<30x180xf32>
    %c0_11 = arith.constant 0 : index
    %c0_12 = arith.constant 0 : index
    %16 = vector.load %arg2[%c0_11, %c0_12] : memref<1x180xf32, #tpu.memory_space<vmem>>, vector<1x180xf32>
    %17 = vector.broadcast %16 : vector<1x180xf32> to vector<30x180xf32>
    %18 = arith.addf %15, %17 : vector<30x180xf32>
    %cst_13 = arith.constant 0.000000e+00 : f32
    %19 = vector.broadcast %cst_13 : f32 to vector<30x180xf32>
    %20 = arith.maximumf %18, %19 : vector<30x180xf32>
    %c0_14 = arith.constant 0 : index
    %c0_15 = arith.constant 0 : index
    %c0_16 = arith.constant 0 : index
    %21 = vector.load %arg5[%c0_14, %c0_15, %c0_16] : memref<2x15x30xf32, #tpu.memory_space<vmem>>, vector<1x15x30xf32>
    %22 = vector.shape_cast %21 : vector<1x15x30xf32> to vector<15x30xf32>
    %cst_17 = arith.constant dense<0.000000e+00> : vector<15x180xf32>
    %23 = tpu.matmul %22, %20, %cst_17 {dimension_numbers = #tpu.dot_dimension_numbers<[1], [0], [0], [1], [0, 0, 1, 1], [], []>} : vector<15x30xf32>, vector<30x180xf32>, vector<15x180xf32> -> vector<15x180xf32>
    %c1_18 = arith.constant 1 : index
    %c0_19 = arith.constant 0 : index
    %c0_20 = arith.constant 0 : index
    %24 = vector.load %arg5[%c1_18, %c0_19, %c0_20] : memref<2x15x30xf32, #tpu.memory_space<vmem>>, vector<1x15x30xf32>
    %25 = vector.shape_cast %24 : vector<1x15x30xf32> to vector<15x30xf32>
    %cst_21 = arith.constant dense<0.000000e+00> : vector<15x180xf32>
    %26 = tpu.matmul %25, %20, %cst_21 {dimension_numbers = #tpu.dot_dimension_numbers<[1], [0], [0], [1], [0, 0, 1, 1], [], []>} : vector<15x30xf32>, vector<30x180xf32>, vector<15x180xf32> -> vector<15x180xf32>
    %c0_22 = arith.constant 0 : index
    %c0_23 = arith.constant 0 : index
    %c0_24 = arith.constant 0 : index
    %27 = vector.load %arg6[%c0_22, %c0_23, %c0_24] : memref<2x180x90xf32, #tpu.memory_space<vmem>>, vector<1x180x90xf32>
    %28 = vector.shape_cast %27 : vector<1x180x90xf32> to vector<180x90xf32>
    %cst_25 = arith.constant dense<0.000000e+00> : vector<15x90xf32>
    %29 = tpu.matmul %23, %28, %cst_25 {dimension_numbers = #tpu.dot_dimension_numbers<[1], [0], [0], [1], [0, 0, 1, 1], [], []>} : vector<15x180xf32>, vector<180x90xf32>, vector<15x90xf32> -> vector<15x90xf32>
    %c1_26 = arith.constant 1 : index
    %c0_27 = arith.constant 0 : index
    %c0_28 = arith.constant 0 : index
    %30 = vector.load %arg6[%c1_26, %c0_27, %c0_28] : memref<2x180x90xf32, #tpu.memory_space<vmem>>, vector<1x180x90xf32>
    %31 = vector.shape_cast %30 : vector<1x180x90xf32> to vector<180x90xf32>
    %cst_29 = arith.constant dense<0.000000e+00> : vector<15x90xf32>
    %32 = tpu.matmul %23, %31, %cst_29 {dimension_numbers = #tpu.dot_dimension_numbers<[1], [0], [0], [1], [0, 0, 1, 1], [], []>} : vector<15x180xf32>, vector<180x90xf32>, vector<15x90xf32> -> vector<15x90xf32>
    %33 = arith.maximumf %29, %32 : vector<15x90xf32>
    %c0_30 = arith.constant 0 : index
    %c0_31 = arith.constant 0 : index
    %c0_32 = arith.constant 0 : index
    %34 = vector.load %arg6[%c0_30, %c0_31, %c0_32] : memref<2x180x90xf32, #tpu.memory_space<vmem>>, vector<1x180x90xf32>
    %35 = vector.shape_cast %34 : vector<1x180x90xf32> to vector<180x90xf32>
    %cst_33 = arith.constant dense<0.000000e+00> : vector<15x90xf32>
    %36 = tpu.matmul %26, %35, %cst_33 {dimension_numbers = #tpu.dot_dimension_numbers<[1], [0], [0], [1], [0, 0, 1, 1], [], []>} : vector<15x180xf32>, vector<180x90xf32>, vector<15x90xf32> -> vector<15x90xf32>
    %37 = arith.maximumf %33, %36 : vector<15x90xf32>
    %c1_34 = arith.constant 1 : index
    %c0_35 = arith.constant 0 : index
    %c0_36 = arith.constant 0 : index
    %38 = vector.load %arg6[%c1_34, %c0_35, %c0_36] : memref<2x180x90xf32, #tpu.memory_space<vmem>>, vector<1x180x90xf32>
    %39 = vector.shape_cast %38 : vector<1x180x90xf32> to vector<180x90xf32>
    %cst_37 = arith.constant dense<0.000000e+00> : vector<15x90xf32>
    %40 = tpu.matmul %26, %39, %cst_37 {dimension_numbers = #tpu.dot_dimension_numbers<[1], [0], [0], [1], [0, 0, 1, 1], [], []>} : vector<15x180xf32>, vector<180x90xf32>, vector<15x90xf32> -> vector<15x90xf32>
    %41 = arith.maximumf %37, %40 : vector<15x90xf32>
    %42 = vector.extract_strided_slice %41 {offsets = [0, 0], sizes = [13, 90], strides = [1, 1]} : vector<15x90xf32> to vector<13x90xf32>
    %c0_38 = arith.constant 0 : index
    %c0_39 = arith.constant 0 : index
    %c0_40 = arith.constant 0 : index
    %43 = vector.load %arg3[%c0_38, %c0_39, %c0_40] : memref<3x90x208xf32, #tpu.memory_space<vmem>>, vector<1x90x208xf32>
    %44 = vector.shape_cast %43 : vector<1x90x208xf32> to vector<90x208xf32>
    %cst_41 = arith.constant dense<0.000000e+00> : vector<13x208xf32>
    %45 = tpu.matmul %42, %44, %cst_41 {dimension_numbers = #tpu.dot_dimension_numbers<[1], [0], [0], [1], [0, 0, 1, 1], [], []>} : vector<13x90xf32>, vector<90x208xf32>, vector<13x208xf32> -> vector<13x208xf32>
    %46 = vector.extract_strided_slice %41 {offsets = [1, 0], sizes = [13, 90], strides = [1, 1]} : vector<15x90xf32> to vector<13x90xf32>
    %c1_42 = arith.constant 1 : index
    %c0_43 = arith.constant 0 : index
    %c0_44 = arith.constant 0 : index
    %47 = vector.load %arg3[%c1_42, %c0_43, %c0_44] : memref<3x90x208xf32, #tpu.memory_space<vmem>>, vector<1x90x208xf32>
    %48 = vector.shape_cast %47 : vector<1x90x208xf32> to vector<90x208xf32>
    %cst_45 = arith.constant dense<0.000000e+00> : vector<13x208xf32>
    %49 = tpu.matmul %46, %48, %cst_45 {dimension_numbers = #tpu.dot_dimension_numbers<[1], [0], [0], [1], [0, 0, 1, 1], [], []>} : vector<13x90xf32>, vector<90x208xf32>, vector<13x208xf32> -> vector<13x208xf32>
    %50 = arith.addf %45, %49 : vector<13x208xf32>
    %51 = vector.extract_strided_slice %41 {offsets = [2, 0], sizes = [13, 90], strides = [1, 1]} : vector<15x90xf32> to vector<13x90xf32>
    %c2_46 = arith.constant 2 : index
    %c0_47 = arith.constant 0 : index
    %c0_48 = arith.constant 0 : index
    %52 = vector.load %arg3[%c2_46, %c0_47, %c0_48] : memref<3x90x208xf32, #tpu.memory_space<vmem>>, vector<1x90x208xf32>
    %53 = vector.shape_cast %52 : vector<1x90x208xf32> to vector<90x208xf32>
    %cst_49 = arith.constant dense<0.000000e+00> : vector<13x208xf32>
    %54 = tpu.matmul %51, %53, %cst_49 {dimension_numbers = #tpu.dot_dimension_numbers<[1], [0], [0], [1], [0, 0, 1, 1], [], []>} : vector<13x90xf32>, vector<90x208xf32>, vector<13x208xf32> -> vector<13x208xf32>
    %55 = arith.addf %50, %54 : vector<13x208xf32>
    %c0_50 = arith.constant 0 : index
    %c0_51 = arith.constant 0 : index
    %56 = vector.load %arg4[%c0_50, %c0_51] : memref<1x208xf32, #tpu.memory_space<vmem>>, vector<1x208xf32>
    %57 = vector.broadcast %56 : vector<1x208xf32> to vector<13x208xf32>
    %58 = arith.addf %55, %57 : vector<13x208xf32>
    %cst_52 = arith.constant 0.000000e+00 : f32
    %59 = vector.broadcast %cst_52 : f32 to vector<13x208xf32>
    %60 = arith.maximumf %58, %59 : vector<13x208xf32>
    %c0_53 = arith.constant 0 : index
    %c0_54 = arith.constant 0 : index
    %c0_55 = arith.constant 0 : index
    %61 = vector.load %arg7[%c0_53, %c0_54, %c0_55] : memref<2x6x13xf32, #tpu.memory_space<vmem>>, vector<1x6x13xf32>
    %62 = vector.shape_cast %61 : vector<1x6x13xf32> to vector<6x13xf32>
    %cst_56 = arith.constant dense<0.000000e+00> : vector<6x208xf32>
    %63 = tpu.matmul %62, %60, %cst_56 {dimension_numbers = #tpu.dot_dimension_numbers<[1], [0], [0], [1], [0, 0, 1, 1], [], []>} : vector<6x13xf32>, vector<13x208xf32>, vector<6x208xf32> -> vector<6x208xf32>
    %c1_57 = arith.constant 1 : index
    %c0_58 = arith.constant 0 : index
    %c0_59 = arith.constant 0 : index
    %64 = vector.load %arg7[%c1_57, %c0_58, %c0_59] : memref<2x6x13xf32, #tpu.memory_space<vmem>>, vector<1x6x13xf32>
    %65 = vector.shape_cast %64 : vector<1x6x13xf32> to vector<6x13xf32>
    %cst_60 = arith.constant dense<0.000000e+00> : vector<6x208xf32>
    %66 = tpu.matmul %65, %60, %cst_60 {dimension_numbers = #tpu.dot_dimension_numbers<[1], [0], [0], [1], [0, 0, 1, 1], [], []>} : vector<6x13xf32>, vector<13x208xf32>, vector<6x208xf32> -> vector<6x208xf32>
    %c0_61 = arith.constant 0 : index
    %c0_62 = arith.constant 0 : index
    %c0_63 = arith.constant 0 : index
    %67 = vector.load %arg8[%c0_61, %c0_62, %c0_63] : memref<2x208x96xf32, #tpu.memory_space<vmem>>, vector<1x208x96xf32>
    %68 = vector.shape_cast %67 : vector<1x208x96xf32> to vector<208x96xf32>
    %cst_64 = arith.constant dense<0.000000e+00> : vector<6x96xf32>
    %69 = tpu.matmul %63, %68, %cst_64 {dimension_numbers = #tpu.dot_dimension_numbers<[1], [0], [0], [1], [0, 0, 1, 1], [], []>} : vector<6x208xf32>, vector<208x96xf32>, vector<6x96xf32> -> vector<6x96xf32>
    %c1_65 = arith.constant 1 : index
    %c0_66 = arith.constant 0 : index
    %c0_67 = arith.constant 0 : index
    %70 = vector.load %arg8[%c1_65, %c0_66, %c0_67] : memref<2x208x96xf32, #tpu.memory_space<vmem>>, vector<1x208x96xf32>
    %71 = vector.shape_cast %70 : vector<1x208x96xf32> to vector<208x96xf32>
    %cst_68 = arith.constant dense<0.000000e+00> : vector<6x96xf32>
    %72 = tpu.matmul %63, %71, %cst_68 {dimension_numbers = #tpu.dot_dimension_numbers<[1], [0], [0], [1], [0, 0, 1, 1], [], []>} : vector<6x208xf32>, vector<208x96xf32>, vector<6x96xf32> -> vector<6x96xf32>
    %73 = arith.maximumf %69, %72 : vector<6x96xf32>
    %c0_69 = arith.constant 0 : index
    %c0_70 = arith.constant 0 : index
    %c0_71 = arith.constant 0 : index
    %74 = vector.load %arg8[%c0_69, %c0_70, %c0_71] : memref<2x208x96xf32, #tpu.memory_space<vmem>>, vector<1x208x96xf32>
    %75 = vector.shape_cast %74 : vector<1x208x96xf32> to vector<208x96xf32>
    %cst_72 = arith.constant dense<0.000000e+00> : vector<6x96xf32>
    %76 = tpu.matmul %66, %75, %cst_72 {dimension_numbers = #tpu.dot_dimension_numbers<[1], [0], [0], [1], [0, 0, 1, 1], [], []>} : vector<6x208xf32>, vector<208x96xf32>, vector<6x96xf32> -> vector<6x96xf32>
    %77 = arith.maximumf %73, %76 : vector<6x96xf32>
    %c1_73 = arith.constant 1 : index
    %c0_74 = arith.constant 0 : index
    %c0_75 = arith.constant 0 : index
    %78 = vector.load %arg8[%c1_73, %c0_74, %c0_75] : memref<2x208x96xf32, #tpu.memory_space<vmem>>, vector<1x208x96xf32>
    %79 = vector.shape_cast %78 : vector<1x208x96xf32> to vector<208x96xf32>
    %cst_76 = arith.constant dense<0.000000e+00> : vector<6x96xf32>
    %80 = tpu.matmul %66, %79, %cst_76 {dimension_numbers = #tpu.dot_dimension_numbers<[1], [0], [0], [1], [0, 0, 1, 1], [], []>} : vector<6x208xf32>, vector<208x96xf32>, vector<6x96xf32> -> vector<6x96xf32>
    %81 = arith.maximumf %77, %80 : vector<6x96xf32>
    %c0_77 = arith.constant 0 : index
    %c0_78 = arith.constant 0 : index
    %82 = vector.load %arg10[%c0_77, %c0_78] : memref<1x120xf32, #tpu.memory_space<vmem>>, vector<1x120xf32>
    %83 = vector.extract_strided_slice %81 {offsets = [0, 0], sizes = [1, 96], strides = [1, 1]} : vector<6x96xf32> to vector<1x96xf32>
    %c0_79 = arith.constant 0 : index
    %c0_80 = arith.constant 0 : index
    %c0_81 = arith.constant 0 : index
    %84 = vector.load %arg9[%c0_79, %c0_80, %c0_81] : memref<6x96x120xf32, #tpu.memory_space<vmem>>, vector<1x96x120xf32>
    %85 = vector.shape_cast %84 : vector<1x96x120xf32> to vector<96x120xf32>
    %cst_82 = arith.constant dense<0.000000e+00> : vector<1x120xf32>
    %86 = tpu.matmul %83, %85, %cst_82 {dimension_numbers = #tpu.dot_dimension_numbers<[1], [0], [0], [1], [0, 0, 1, 1], [], []>} : vector<1x96xf32>, vector<96x120xf32>, vector<1x120xf32> -> vector<1x120xf32>
    %87 = arith.addf %82, %86 : vector<1x120xf32>
    %88 = vector.extract_strided_slice %81 {offsets = [1, 0], sizes = [1, 96], strides = [1, 1]} : vector<6x96xf32> to vector<1x96xf32>
    %c1_83 = arith.constant 1 : index
    %c0_84 = arith.constant 0 : index
    %c0_85 = arith.constant 0 : index
    %89 = vector.load %arg9[%c1_83, %c0_84, %c0_85] : memref<6x96x120xf32, #tpu.memory_space<vmem>>, vector<1x96x120xf32>
    %90 = vector.shape_cast %89 : vector<1x96x120xf32> to vector<96x120xf32>
    %cst_86 = arith.constant dense<0.000000e+00> : vector<1x120xf32>
    %91 = tpu.matmul %88, %90, %cst_86 {dimension_numbers = #tpu.dot_dimension_numbers<[1], [0], [0], [1], [0, 0, 1, 1], [], []>} : vector<1x96xf32>, vector<96x120xf32>, vector<1x120xf32> -> vector<1x120xf32>
    %92 = arith.addf %87, %91 : vector<1x120xf32>
    %93 = vector.extract_strided_slice %81 {offsets = [2, 0], sizes = [1, 96], strides = [1, 1]} : vector<6x96xf32> to vector<1x96xf32>
    %c2_87 = arith.constant 2 : index
    %c0_88 = arith.constant 0 : index
    %c0_89 = arith.constant 0 : index
    %94 = vector.load %arg9[%c2_87, %c0_88, %c0_89] : memref<6x96x120xf32, #tpu.memory_space<vmem>>, vector<1x96x120xf32>
    %95 = vector.shape_cast %94 : vector<1x96x120xf32> to vector<96x120xf32>
    %cst_90 = arith.constant dense<0.000000e+00> : vector<1x120xf32>
    %96 = tpu.matmul %93, %95, %cst_90 {dimension_numbers = #tpu.dot_dimension_numbers<[1], [0], [0], [1], [0, 0, 1, 1], [], []>} : vector<1x96xf32>, vector<96x120xf32>, vector<1x120xf32> -> vector<1x120xf32>
    %97 = arith.addf %92, %96 : vector<1x120xf32>
    %98 = vector.extract_strided_slice %81 {offsets = [3, 0], sizes = [1, 96], strides = [1, 1]} : vector<6x96xf32> to vector<1x96xf32>
    %c3 = arith.constant 3 : index
    %c0_91 = arith.constant 0 : index
    %c0_92 = arith.constant 0 : index
    %99 = vector.load %arg9[%c3, %c0_91, %c0_92] : memref<6x96x120xf32, #tpu.memory_space<vmem>>, vector<1x96x120xf32>
    %100 = vector.shape_cast %99 : vector<1x96x120xf32> to vector<96x120xf32>
    %cst_93 = arith.constant dense<0.000000e+00> : vector<1x120xf32>
    %101 = tpu.matmul %98, %100, %cst_93 {dimension_numbers = #tpu.dot_dimension_numbers<[1], [0], [0], [1], [0, 0, 1, 1], [], []>} : vector<1x96xf32>, vector<96x120xf32>, vector<1x120xf32> -> vector<1x120xf32>
    %102 = arith.addf %97, %101 : vector<1x120xf32>
    %103 = vector.extract_strided_slice %81 {offsets = [4, 0], sizes = [1, 96], strides = [1, 1]} : vector<6x96xf32> to vector<1x96xf32>
    %c4 = arith.constant 4 : index
    %c0_94 = arith.constant 0 : index
    %c0_95 = arith.constant 0 : index
    %104 = vector.load %arg9[%c4, %c0_94, %c0_95] : memref<6x96x120xf32, #tpu.memory_space<vmem>>, vector<1x96x120xf32>
    %105 = vector.shape_cast %104 : vector<1x96x120xf32> to vector<96x120xf32>
    %cst_96 = arith.constant dense<0.000000e+00> : vector<1x120xf32>
    %106 = tpu.matmul %103, %105, %cst_96 {dimension_numbers = #tpu.dot_dimension_numbers<[1], [0], [0], [1], [0, 0, 1, 1], [], []>} : vector<1x96xf32>, vector<96x120xf32>, vector<1x120xf32> -> vector<1x120xf32>
    %107 = arith.addf %102, %106 : vector<1x120xf32>
    %108 = vector.extract_strided_slice %81 {offsets = [5, 0], sizes = [1, 96], strides = [1, 1]} : vector<6x96xf32> to vector<1x96xf32>
    %c5 = arith.constant 5 : index
    %c0_97 = arith.constant 0 : index
    %c0_98 = arith.constant 0 : index
    %109 = vector.load %arg9[%c5, %c0_97, %c0_98] : memref<6x96x120xf32, #tpu.memory_space<vmem>>, vector<1x96x120xf32>
    %110 = vector.shape_cast %109 : vector<1x96x120xf32> to vector<96x120xf32>
    %cst_99 = arith.constant dense<0.000000e+00> : vector<1x120xf32>
    %111 = tpu.matmul %108, %110, %cst_99 {dimension_numbers = #tpu.dot_dimension_numbers<[1], [0], [0], [1], [0, 0, 1, 1], [], []>} : vector<1x96xf32>, vector<96x120xf32>, vector<1x120xf32> -> vector<1x120xf32>
    %112 = arith.addf %107, %111 : vector<1x120xf32>
    %cst_100 = arith.constant 0.000000e+00 : f32
    %113 = vector.broadcast %cst_100 : f32 to vector<1x120xf32>
    %114 = arith.maximumf %112, %113 : vector<1x120xf32>
    %c0_101 = arith.constant 0 : index
    %c0_102 = arith.constant 0 : index
    %115 = vector.load %arg11[%c0_101, %c0_102] : memref<120x84xf32, #tpu.memory_space<vmem>>, vector<120x84xf32>
    %cst_103 = arith.constant dense<0.000000e+00> : vector<1x84xf32>
    %116 = tpu.matmul %114, %115, %cst_103 {dimension_numbers = #tpu.dot_dimension_numbers<[1], [0], [0], [1], [0, 0, 1, 1], [], []>} : vector<1x120xf32>, vector<120x84xf32>, vector<1x84xf32> -> vector<1x84xf32>
    %c0_104 = arith.constant 0 : index
    %c0_105 = arith.constant 0 : index
    %117 = vector.load %arg12[%c0_104, %c0_105] : memref<1x84xf32, #tpu.memory_space<vmem>>, vector<1x84xf32>
    %118 = arith.addf %116, %117 : vector<1x84xf32>
    %cst_106 = arith.constant 0.000000e+00 : f32
    %119 = vector.broadcast %cst_106 : f32 to vector<1x84xf32>
    %120 = arith.maximumf %118, %119 : vector<1x84xf32>
    %c0_107 = arith.constant 0 : index
    %c0_108 = arith.constant 0 : index
    %121 = vector.load %arg13[%c0_107, %c0_108] : memref<84x10xf32, #tpu.memory_space<vmem>>, vector<84x10xf32>
    %cst_109 = arith.constant dense<0.000000e+00> : vector<1x10xf32>
    %122 = tpu.matmul %120, %121, %cst_109 {dimension_numbers = #tpu.dot_dimension_numbers<[1], [0], [0], [1], [0, 0, 1, 1], [], []>} : vector<1x84xf32>, vector<84x10xf32>, vector<1x10xf32> -> vector<1x10xf32>
    %c0_110 = arith.constant 0 : index
    %c0_111 = arith.constant 0 : index
    %123 = vector.load %arg14[%c0_110, %c0_111] : memref<1x10xf32, #tpu.memory_space<vmem>>, vector<1x10xf32>
    %124 = arith.addf %122, %123 : vector<1x10xf32>
    %c0_112 = arith.constant 0 : index
    %c0_113 = arith.constant 0 : index
    %125 = vector.load %arg15[%c0_112, %c0_113] : memref<2x10xf32, #tpu.memory_space<vmem>>, vector<1x10xf32>
    tpu.vector_store %arg15[%c0_112, %c0_113], %124 {strides = array<i32>} : memref<2x10xf32, #tpu.memory_space<vmem>>, vector<1x10xf32>,
    %c1_114 = arith.constant 1 : index
    %c0_115 = arith.constant 0 : index
    %c0_116 = arith.constant 0 : index
    %126 = vector.load %arg0[%c1_114, %c0_115, %c0_116] : memref<2x32x32xf32, #tpu.memory_space<vmem>>, vector<1x32x32xf32>
    %127 = vector.shape_cast %126 : vector<1x32x32xf32> to vector<32x32xf32>
    %128 = vector.extract_strided_slice %127 {offsets = [0, 0], sizes = [30, 32], strides = [1, 1]} : vector<32x32xf32> to vector<30x32xf32>
    %c0_117 = arith.constant 0 : index
    %c0_118 = arith.constant 0 : index
    %c0_119 = arith.constant 0 : index
    %129 = vector.load %arg1[%c0_117, %c0_118, %c0_119] : memref<3x32x180xf32, #tpu.memory_space<vmem>>, vector<1x32x180xf32>
    %130 = vector.shape_cast %129 : vector<1x32x180xf32> to vector<32x180xf32>
    %cst_120 = arith.constant dense<0.000000e+00> : vector<30x180xf32>
    %131 = tpu.matmul %128, %130, %cst_120 {dimension_numbers = #tpu.dot_dimension_numbers<[1], [0], [0], [1], [0, 0, 1, 1], [], []>} : vector<30x32xf32>, vector<32x180xf32>, vector<30x180xf32> -> vector<30x180xf32>
    %132 = vector.extract_strided_slice %127 {offsets = [1, 0], sizes = [30, 32], strides = [1, 1]} : vector<32x32xf32> to vector<30x32xf32>
    %c1_121 = arith.constant 1 : index
    %c0_122 = arith.constant 0 : index
    %c0_123 = arith.constant 0 : index
    %133 = vector.load %arg1[%c1_121, %c0_122, %c0_123] : memref<3x32x180xf32, #tpu.memory_space<vmem>>, vector<1x32x180xf32>
    %134 = vector.shape_cast %133 : vector<1x32x180xf32> to vector<32x180xf32>
    %cst_124 = arith.constant dense<0.000000e+00> : vector<30x180xf32>
    %135 = tpu.matmul %132, %134, %cst_124 {dimension_numbers = #tpu.dot_dimension_numbers<[1], [0], [0], [1], [0, 0, 1, 1], [], []>} : vector<30x32xf32>, vector<32x180xf32>, vector<30x180xf32> -> vector<30x180xf32>
    %136 = arith.addf %131, %135 : vector<30x180xf32>
    %137 = vector.extract_strided_slice %127 {offsets = [2, 0], sizes = [30, 32], strides = [1, 1]} : vector<32x32xf32> to vector<30x32xf32>
    %c2_125 = arith.constant 2 : index
    %c0_126 = arith.constant 0 : index
    %c0_127 = arith.constant 0 : index
    %138 = vector.load %arg1[%c2_125, %c0_126, %c0_127] : memref<3x32x180xf32, #tpu.memory_space<vmem>>, vector<1x32x180xf32>
    %139 = vector.shape_cast %138 : vector<1x32x180xf32> to vector<32x180xf32>
    %cst_128 = arith.constant dense<0.000000e+00> : vector<30x180xf32>
    %140 = tpu.matmul %137, %139, %cst_128 {dimension_numbers = #tpu.dot_dimension_numbers<[1], [0], [0], [1], [0, 0, 1, 1], [], []>} : vector<30x32xf32>, vector<32x180xf32>, vector<30x180xf32> -> vector<30x180xf32>
    %141 = arith.addf %136, %140 : vector<30x180xf32>
    %c0_129 = arith.constant 0 : index
    %c0_130 = arith.constant 0 : index
    %142 = vector.load %arg2[%c0_129, %c0_130] : memref<1x180xf32, #tpu.memory_space<vmem>>, vector<1x180xf32>
    %143 = vector.broadcast %142 : vector<1x180xf32> to vector<30x180xf32>
    %144 = arith.addf %141, %143 : vector<30x180xf32>
    %cst_131 = arith.constant 0.000000e+00 : f32
    %145 = vector.broadcast %cst_131 : f32 to vector<30x180xf32>
    %146 = arith.maximumf %144, %145 : vector<30x180xf32>
    %c0_132 = arith.constant 0 : index
    %c0_133 = arith.constant 0 : index
    %c0_134 = arith.constant 0 : index
    %147 = vector.load %arg5[%c0_132, %c0_133, %c0_134] : memref<2x15x30xf32, #tpu.memory_space<vmem>>, vector<1x15x30xf32>
    %148 = vector.shape_cast %147 : vector<1x15x30xf32> to vector<15x30xf32>
    %cst_135 = arith.constant dense<0.000000e+00> : vector<15x180xf32>
    %149 = tpu.matmul %148, %146, %cst_135 {dimension_numbers = #tpu.dot_dimension_numbers<[1], [0], [0], [1], [0, 0, 1, 1], [], []>} : vector<15x30xf32>, vector<30x180xf32>, vector<15x180xf32> -> vector<15x180xf32>
    %c1_136 = arith.constant 1 : index
    %c0_137 = arith.constant 0 : index
    %c0_138 = arith.constant 0 : index
    %150 = vector.load %arg5[%c1_136, %c0_137, %c0_138] : memref<2x15x30xf32, #tpu.memory_space<vmem>>, vector<1x15x30xf32>
    %151 = vector.shape_cast %150 : vector<1x15x30xf32> to vector<15x30xf32>
    %cst_139 = arith.constant dense<0.000000e+00> : vector<15x180xf32>
    %152 = tpu.matmul %151, %146, %cst_139 {dimension_numbers = #tpu.dot_dimension_numbers<[1], [0], [0], [1], [0, 0, 1, 1], [], []>} : vector<15x30xf32>, vector<30x180xf32>, vector<15x180xf32> -> vector<15x180xf32>
    %c0_140 = arith.constant 0 : index
    %c0_141 = arith.constant 0 : index
    %c0_142 = arith.constant 0 : index
    %153 = vector.load %arg6[%c0_140, %c0_141, %c0_142] : memref<2x180x90xf32, #tpu.memory_space<vmem>>, vector<1x180x90xf32>
    %154 = vector.shape_cast %153 : vector<1x180x90xf32> to vector<180x90xf32>
    %cst_143 = arith.constant dense<0.000000e+00> : vector<15x90xf32>
    %155 = tpu.matmul %149, %154, %cst_143 {dimension_numbers = #tpu.dot_dimension_numbers<[1], [0], [0], [1], [0, 0, 1, 1], [], []>} : vector<15x180xf32>, vector<180x90xf32>, vector<15x90xf32> -> vector<15x90xf32>
    %c1_144 = arith.constant 1 : index
    %c0_145 = arith.constant 0 : index
    %c0_146 = arith.constant 0 : index
    %156 = vector.load %arg6[%c1_144, %c0_145, %c0_146] : memref<2x180x90xf32, #tpu.memory_space<vmem>>, vector<1x180x90xf32>
    %157 = vector.shape_cast %156 : vector<1x180x90xf32> to vector<180x90xf32>
    %cst_147 = arith.constant dense<0.000000e+00> : vector<15x90xf32>
    %158 = tpu.matmul %149, %157, %cst_147 {dimension_numbers = #tpu.dot_dimension_numbers<[1], [0], [0], [1], [0, 0, 1, 1], [], []>} : vector<15x180xf32>, vector<180x90xf32>, vector<15x90xf32> -> vector<15x90xf32>
    %159 = arith.maximumf %155, %158 : vector<15x90xf32>
    %c0_148 = arith.constant 0 : index
    %c0_149 = arith.constant 0 : index
    %c0_150 = arith.constant 0 : index
    %160 = vector.load %arg6[%c0_148, %c0_149, %c0_150] : memref<2x180x90xf32, #tpu.memory_space<vmem>>, vector<1x180x90xf32>
    %161 = vector.shape_cast %160 : vector<1x180x90xf32> to vector<180x90xf32>
    %cst_151 = arith.constant dense<0.000000e+00> : vector<15x90xf32>
    %162 = tpu.matmul %152, %161, %cst_151 {dimension_numbers = #tpu.dot_dimension_numbers<[1], [0], [0], [1], [0, 0, 1, 1], [], []>} : vector<15x180xf32>, vector<180x90xf32>, vector<15x90xf32> -> vector<15x90xf32>
    %163 = arith.maximumf %159, %162 : vector<15x90xf32>
    %c1_152 = arith.constant 1 : index
    %c0_153 = arith.constant 0 : index
    %c0_154 = arith.constant 0 : index
    %164 = vector.load %arg6[%c1_152, %c0_153, %c0_154] : memref<2x180x90xf32, #tpu.memory_space<vmem>>, vector<1x180x90xf32>
    %165 = vector.shape_cast %164 : vector<1x180x90xf32> to vector<180x90xf32>
    %cst_155 = arith.constant dense<0.000000e+00> : vector<15x90xf32>
    %166 = tpu.matmul %152, %165, %cst_155 {dimension_numbers = #tpu.dot_dimension_numbers<[1], [0], [0], [1], [0, 0, 1, 1], [], []>} : vector<15x180xf32>, vector<180x90xf32>, vector<15x90xf32> -> vector<15x90xf32>
    %167 = arith.maximumf %163, %166 : vector<15x90xf32>
    %168 = vector.extract_strided_slice %167 {offsets = [0, 0], sizes = [13, 90], strides = [1, 1]} : vector<15x90xf32> to vector<13x90xf32>
    %c0_156 = arith.constant 0 : index
    %c0_157 = arith.constant 0 : index
    %c0_158 = arith.constant 0 : index
    %169 = vector.load %arg3[%c0_156, %c0_157, %c0_158] : memref<3x90x208xf32, #tpu.memory_space<vmem>>, vector<1x90x208xf32>
    %170 = vector.shape_cast %169 : vector<1x90x208xf32> to vector<90x208xf32>
    %cst_159 = arith.constant dense<0.000000e+00> : vector<13x208xf32>
    %171 = tpu.matmul %168, %170, %cst_159 {dimension_numbers = #tpu.dot_dimension_numbers<[1], [0], [0], [1], [0, 0, 1, 1], [], []>} : vector<13x90xf32>, vector<90x208xf32>, vector<13x208xf32> -> vector<13x208xf32>
    %172 = vector.extract_strided_slice %167 {offsets = [1, 0], sizes = [13, 90], strides = [1, 1]} : vector<15x90xf32> to vector<13x90xf32>
    %c1_160 = arith.constant 1 : index
    %c0_161 = arith.constant 0 : index
    %c0_162 = arith.constant 0 : index
    %173 = vector.load %arg3[%c1_160, %c0_161, %c0_162] : memref<3x90x208xf32, #tpu.memory_space<vmem>>, vector<1x90x208xf32>
    %174 = vector.shape_cast %173 : vector<1x90x208xf32> to vector<90x208xf32>
    %cst_163 = arith.constant dense<0.000000e+00> : vector<13x208xf32>
    %175 = tpu.matmul %172, %174, %cst_163 {dimension_numbers = #tpu.dot_dimension_numbers<[1], [0], [0], [1], [0, 0, 1, 1], [], []>} : vector<13x90xf32>, vector<90x208xf32>, vector<13x208xf32> -> vector<13x208xf32>
    %176 = arith.addf %171, %175 : vector<13x208xf32>
    %177 = vector.extract_strided_slice %167 {offsets = [2, 0], sizes = [13, 90], strides = [1, 1]} : vector<15x90xf32> to vector<13x90xf32>
    %c2_164 = arith.constant 2 : index
    %c0_165 = arith.constant 0 : index
    %c0_166 = arith.constant 0 : index
    %178 = vector.load %arg3[%c2_164, %c0_165, %c0_166] : memref<3x90x208xf32, #tpu.memory_space<vmem>>, vector<1x90x208xf32>
    %179 = vector.shape_cast %178 : vector<1x90x208xf32> to vector<90x208xf32>
    %cst_167 = arith.constant dense<0.000000e+00> : vector<13x208xf32>
    %180 = tpu.matmul %177, %179, %cst_167 {dimension_numbers = #tpu.dot_dimension_numbers<[1], [0], [0], [1], [0, 0, 1, 1], [], []>} : vector<13x90xf32>, vector<90x208xf32>, vector<13x208xf32> -> vector<13x208xf32>
    %181 = arith.addf %176, %180 : vector<13x208xf32>
    %c0_168 = arith.constant 0 : index
    %c0_169 = arith.constant 0 : index
    %182 = vector.load %arg4[%c0_168, %c0_169] : memref<1x208xf32, #tpu.memory_space<vmem>>, vector<1x208xf32>
    %183 = vector.broadcast %182 : vector<1x208xf32> to vector<13x208xf32>
    %184 = arith.addf %181, %183 : vector<13x208xf32>
    %cst_170 = arith.constant 0.000000e+00 : f32
    %185 = vector.broadcast %cst_170 : f32 to vector<13x208xf32>
    %186 = arith.maximumf %184, %185 : vector<13x208xf32>
    %c0_171 = arith.constant 0 : index
    %c0_172 = arith.constant 0 : index
    %c0_173 = arith.constant 0 : index
    %187 = vector.load %arg7[%c0_171, %c0_172, %c0_173] : memref<2x6x13xf32, #tpu.memory_space<vmem>>, vector<1x6x13xf32>
    %188 = vector.shape_cast %187 : vector<1x6x13xf32> to vector<6x13xf32>
    %cst_174 = arith.constant dense<0.000000e+00> : vector<6x208xf32>
    %189 = tpu.matmul %188, %186, %cst_174 {dimension_numbers = #tpu.dot_dimension_numbers<[1], [0], [0], [1], [0, 0, 1, 1], [], []>} : vector<6x13xf32>, vector<13x208xf32>, vector<6x208xf32> -> vector<6x208xf32>
    %c1_175 = arith.constant 1 : index
    %c0_176 = arith.constant 0 : index
    %c0_177 = arith.constant 0 : index
    %190 = vector.load %arg7[%c1_175, %c0_176, %c0_177] : memref<2x6x13xf32, #tpu.memory_space<vmem>>, vector<1x6x13xf32>
    %191 = vector.shape_cast %190 : vector<1x6x13xf32> to vector<6x13xf32>
    %cst_178 = arith.constant dense<0.000000e+00> : vector<6x208xf32>
    %192 = tpu.matmul %191, %186, %cst_178 {dimension_numbers = #tpu.dot_dimension_numbers<[1], [0], [0], [1], [0, 0, 1, 1], [], []>} : vector<6x13xf32>, vector<13x208xf32>, vector<6x208xf32> -> vector<6x208xf32>
    %c0_179 = arith.constant 0 : index
    %c0_180 = arith.constant 0 : index
    %c0_181 = arith.constant 0 : index
    %193 = vector.load %arg8[%c0_179, %c0_180, %c0_181] : memref<2x208x96xf32, #tpu.memory_space<vmem>>, vector<1x208x96xf32>
    %194 = vector.shape_cast %193 : vector<1x208x96xf32> to vector<208x96xf32>
    %cst_182 = arith.constant dense<0.000000e+00> : vector<6x96xf32>
    %195 = tpu.matmul %189, %194, %cst_182 {dimension_numbers = #tpu.dot_dimension_numbers<[1], [0], [0], [1], [0, 0, 1, 1], [], []>} : vector<6x208xf32>, vector<208x96xf32>, vector<6x96xf32> -> vector<6x96xf32>
    %c1_183 = arith.constant 1 : index
    %c0_184 = arith.constant 0 : index
    %c0_185 = arith.constant 0 : index
    %196 = vector.load %arg8[%c1_183, %c0_184, %c0_185] : memref<2x208x96xf32, #tpu.memory_space<vmem>>, vector<1x208x96xf32>
    %197 = vector.shape_cast %196 : vector<1x208x96xf32> to vector<208x96xf32>
    %cst_186 = arith.constant dense<0.000000e+00> : vector<6x96xf32>
    %198 = tpu.matmul %189, %197, %cst_186 {dimension_numbers = #tpu.dot_dimension_numbers<[1], [0], [0], [1], [0, 0, 1, 1], [], []>} : vector<6x208xf32>, vector<208x96xf32>, vector<6x96xf32> -> vector<6x96xf32>
    %199 = arith.maximumf %195, %198 : vector<6x96xf32>
    %c0_187 = arith.constant 0 : index
    %c0_188 = arith.constant 0 : index
    %c0_189 = arith.constant 0 : index
    %200 = vector.load %arg8[%c0_187, %c0_188, %c0_189] : memref<2x208x96xf32, #tpu.memory_space<vmem>>, vector<1x208x96xf32>
    %201 = vector.shape_cast %200 : vector<1x208x96xf32> to vector<208x96xf32>
    %cst_190 = arith.constant dense<0.000000e+00> : vector<6x96xf32>
    %202 = tpu.matmul %192, %201, %cst_190 {dimension_numbers = #tpu.dot_dimension_numbers<[1], [0], [0], [1], [0, 0, 1, 1], [], []>} : vector<6x208xf32>, vector<208x96xf32>, vector<6x96xf32> -> vector<6x96xf32>
    %203 = arith.maximumf %199, %202 : vector<6x96xf32>
    %c1_191 = arith.constant 1 : index
    %c0_192 = arith.constant 0 : index
    %c0_193 = arith.constant 0 : index
    %204 = vector.load %arg8[%c1_191, %c0_192, %c0_193] : memref<2x208x96xf32, #tpu.memory_space<vmem>>, vector<1x208x96xf32>
    %205 = vector.shape_cast %204 : vector<1x208x96xf32> to vector<208x96xf32>
    %cst_194 = arith.constant dense<0.000000e+00> : vector<6x96xf32>
    %206 = tpu.matmul %192, %205, %cst_194 {dimension_numbers = #tpu.dot_dimension_numbers<[1], [0], [0], [1], [0, 0, 1, 1], [], []>} : vector<6x208xf32>, vector<208x96xf32>, vector<6x96xf32> -> vector<6x96xf32>
    %207 = arith.maximumf %203, %206 : vector<6x96xf32>
    %c0_195 = arith.constant 0 : index
    %c0_196 = arith.constant 0 : index
    %208 = vector.load %arg10[%c0_195, %c0_196] : memref<1x120xf32, #tpu.memory_space<vmem>>, vector<1x120xf32>
    %209 = vector.extract_strided_slice %207 {offsets = [0, 0], sizes = [1, 96], strides = [1, 1]} : vector<6x96xf32> to vector<1x96xf32>
    %c0_197 = arith.constant 0 : index
    %c0_198 = arith.constant 0 : index
    %c0_199 = arith.constant 0 : index
    %210 = vector.load %arg9[%c0_197, %c0_198, %c0_199] : memref<6x96x120xf32, #tpu.memory_space<vmem>>, vector<1x96x120xf32>
    %211 = vector.shape_cast %210 : vector<1x96x120xf32> to vector<96x120xf32>
    %cst_200 = arith.constant dense<0.000000e+00> : vector<1x120xf32>
    %212 = tpu.matmul %209, %211, %cst_200 {dimension_numbers = #tpu.dot_dimension_numbers<[1], [0], [0], [1], [0, 0, 1, 1], [], []>} : vector<1x96xf32>, vector<96x120xf32>, vector<1x120xf32> -> vector<1x120xf32>
    %213 = arith.addf %208, %212 : vector<1x120xf32>
    %214 = vector.extract_strided_slice %207 {offsets = [1, 0], sizes = [1, 96], strides = [1, 1]} : vector<6x96xf32> to vector<1x96xf32>
    %c1_201 = arith.constant 1 : index
    %c0_202 = arith.constant 0 : index
    %c0_203 = arith.constant 0 : index
    %215 = vector.load %arg9[%c1_201, %c0_202, %c0_203] : memref<6x96x120xf32, #tpu.memory_space<vmem>>, vector<1x96x120xf32>
    %216 = vector.shape_cast %215 : vector<1x96x120xf32> to vector<96x120xf32>
    %cst_204 = arith.constant dense<0.000000e+00> : vector<1x120xf32>
    %217 = tpu.matmul %214, %216, %cst_204 {dimension_numbers = #tpu.dot_dimension_numbers<[1], [0], [0], [1], [0, 0, 1, 1], [], []>} : vector<1x96xf32>, vector<96x120xf32>, vector<1x120xf32> -> vector<1x120xf32>
    %218 = arith.addf %213, %217 : vector<1x120xf32>
    %219 = vector.extract_strided_slice %207 {offsets = [2, 0], sizes = [1, 96], strides = [1, 1]} : vector<6x96xf32> to vector<1x96xf32>
    %c2_205 = arith.constant 2 : index
    %c0_206 = arith.constant 0 : index
    %c0_207 = arith.constant 0 : index
    %220 = vector.load %arg9[%c2_205, %c0_206, %c0_207] : memref<6x96x120xf32, #tpu.memory_space<vmem>>, vector<1x96x120xf32>
    %221 = vector.shape_cast %220 : vector<1x96x120xf32> to vector<96x120xf32>
    %cst_208 = arith.constant dense<0.000000e+00> : vector<1x120xf32>
    %222 = tpu.matmul %219, %221, %cst_208 {dimension_numbers = #tpu.dot_dimension_numbers<[1], [0], [0], [1], [0, 0, 1, 1], [], []>} : vector<1x96xf32>, vector<96x120xf32>, vector<1x120xf32> -> vector<1x120xf32>
    %223 = arith.addf %218, %222 : vector<1x120xf32>
    %224 = vector.extract_strided_slice %207 {offsets = [3, 0], sizes = [1, 96], strides = [1, 1]} : vector<6x96xf32> to vector<1x96xf32>
    %c3_209 = arith.constant 3 : index
    %c0_210 = arith.constant 0 : index
    %c0_211 = arith.constant 0 : index
    %225 = vector.load %arg9[%c3_209, %c0_210, %c0_211] : memref<6x96x120xf32, #tpu.memory_space<vmem>>, vector<1x96x120xf32>
    %226 = vector.shape_cast %225 : vector<1x96x120xf32> to vector<96x120xf32>
    %cst_212 = arith.constant dense<0.000000e+00> : vector<1x120xf32>
    %227 = tpu.matmul %224, %226, %cst_212 {dimension_numbers = #tpu.dot_dimension_numbers<[1], [0], [0], [1], [0, 0, 1, 1], [], []>} : vector<1x96xf32>, vector<96x120xf32>, vector<1x120xf32> -> vector<1x120xf32>
    %228 = arith.addf %223, %227 : vector<1x120xf32>
    %229 = vector.extract_strided_slice %207 {offsets = [4, 0], sizes = [1, 96], strides = [1, 1]} : vector<6x96xf32> to vector<1x96xf32>
    %c4_213 = arith.constant 4 : index
    %c0_214 = arith.constant 0 : index
    %c0_215 = arith.constant 0 : index
    %230 = vector.load %arg9[%c4_213, %c0_214, %c0_215] : memref<6x96x120xf32, #tpu.memory_space<vmem>>, vector<1x96x120xf32>
    %231 = vector.shape_cast %230 : vector<1x96x120xf32> to vector<96x120xf32>
    %cst_216 = arith.constant dense<0.000000e+00> : vector<1x120xf32>
    %232 = tpu.matmul %229, %231, %cst_216 {dimension_numbers = #tpu.dot_dimension_numbers<[1], [0], [0], [1], [0, 0, 1, 1], [], []>} : vector<1x96xf32>, vector<96x120xf32>, vector<1x120xf32> -> vector<1x120xf32>
    %233 = arith.addf %228, %232 : vector<1x120xf32>
    %234 = vector.extract_strided_slice %207 {offsets = [5, 0], sizes = [1, 96], strides = [1, 1]} : vector<6x96xf32> to vector<1x96xf32>
    %c5_217 = arith.constant 5 : index
    %c0_218 = arith.constant 0 : index
    %c0_219 = arith.constant 0 : index
    %235 = vector.load %arg9[%c5_217, %c0_218, %c0_219] : memref<6x96x120xf32, #tpu.memory_space<vmem>>, vector<1x96x120xf32>
    %236 = vector.shape_cast %235 : vector<1x96x120xf32> to vector<96x120xf32>
    %cst_220 = arith.constant dense<0.000000e+00> : vector<1x120xf32>
    %237 = tpu.matmul %234, %236, %cst_220 {dimension_numbers = #tpu.dot_dimension_numbers<[1], [0], [0], [1], [0, 0, 1, 1], [], []>} : vector<1x96xf32>, vector<96x120xf32>, vector<1x120xf32> -> vector<1x120xf32>
    %238 = arith.addf %233, %237 : vector<1x120xf32>
    %cst_221 = arith.constant 0.000000e+00 : f32
    %239 = vector.broadcast %cst_221 : f32 to vector<1x120xf32>
    %240 = arith.maximumf %238, %239 : vector<1x120xf32>
    %c0_222 = arith.constant 0 : index
    %c0_223 = arith.constant 0 : index
    %241 = vector.load %arg11[%c0_222, %c0_223] : memref<120x84xf32, #tpu.memory_space<vmem>>, vector<120x84xf32>
    %cst_224 = arith.constant dense<0.000000e+00> : vector<1x84xf32>
    %242 = tpu.matmul %240, %241, %cst_224 {dimension_numbers = #tpu.dot_dimension_numbers<[1], [0], [0], [1], [0, 0, 1, 1], [], []>} : vector<1x120xf32>, vector<120x84xf32>, vector<1x84xf32> -> vector<1x84xf32>
    %c0_225 = arith.constant 0 : index
    %c0_226 = arith.constant 0 : index
    %243 = vector.load %arg12[%c0_225, %c0_226] : memref<1x84xf32, #tpu.memory_space<vmem>>, vector<1x84xf32>
    %244 = arith.addf %242, %243 : vector<1x84xf32>
    %cst_227 = arith.constant 0.000000e+00 : f32
    %245 = vector.broadcast %cst_227 : f32 to vector<1x84xf32>
    %246 = arith.maximumf %244, %245 : vector<1x84xf32>
    %c0_228 = arith.constant 0 : index
    %c0_229 = arith.constant 0 : index
    %247 = vector.load %arg13[%c0_228, %c0_229] : memref<84x10xf32, #tpu.memory_space<vmem>>, vector<84x10xf32>
    %cst_230 = arith.constant dense<0.000000e+00> : vector<1x10xf32>
    %248 = tpu.matmul %246, %247, %cst_230 {dimension_numbers = #tpu.dot_dimension_numbers<[1], [0], [0], [1], [0, 0, 1, 1], [], []>} : vector<1x84xf32>, vector<84x10xf32>, vector<1x10xf32> -> vector<1x10xf32>
    %c0_231 = arith.constant 0 : index
    %c0_232 = arith.constant 0 : index
    %249 = vector.load %arg14[%c0_231, %c0_232] : memref<1x10xf32, #tpu.memory_space<vmem>>, vector<1x10xf32>
    %250 = arith.addf %248, %249 : vector<1x10xf32>
    %c1_233 = arith.constant 1 : index
    %c0_234 = arith.constant 0 : index
    %251 = vector.load %arg15[%c1_233, %c0_234] : memref<2x10xf32, #tpu.memory_space<vmem>>, vector<1x10xf32>
    tpu.vector_store %arg15[%c1_233, %c0_234], %250 {strides = array<i32>} : memref<2x10xf32, #tpu.memory_space<vmem>>, vector<1x10xf32>,
    return
  }
}

</mosaic_0001>

<llo_original>
// kernel: tile.13
$region0: #{tile.13}
  #allocation0 [shape = 's32[1]{0}', space=sflag, size = 0x4, scoped, tag = 'scoped memory for tile.13']
  %s0 = inlined_call_operand.vmem [shape: f32[6], index: 0, kind: input, shape index: {}]
  %s1 = inlined_call_operand.vmem [shape: f32[30,6], index: 1, kind: output, shape index: {}]
  // Predicated region
  $region2: #{tile.13} parent=0 // pred_check
    _
  $region3: #{tile.13} parent=0 // pred_check_branch
    %3 = sbr.rel (0) target = $region5
  $region4: #{tile.13} parent=0 // pred_region
    _
  $region5: #{tile.13} parent=0 // pred_fallthru
    _
  %v4 = vld [vmem:[%s0] ss:$0 sm:$0xff]
  %5 = vst [vmem:[%s1] sm:$0xff] %v4
  %s6 = scalar_lea.vmem %s1, 8
  %7 = vst [vmem:[%s6] sm:$0xff] %v4
  %s8 = scalar_lea.vmem %s1, 16
  %9 = vst [vmem:[%s8] sm:$0xff] %v4
  %s10 = scalar_lea.vmem %s1, 24
  %11 = vst [vmem:[%s10] sm:$0xff] %v4

// kernel: tile.14
$region0: #{tile.14}
  %s0 = inlined_call_operand.vmem [shape: f32[30,6], index: 0, kind: input, shape index: {}]
  %s1 = inlined_call_operand.vmem [shape: f32[1,180], index: 1, kind: output, shape index: {}]
  $region1: #{tile.14} parent=0
    #allocation0 [shape = 'u8[8192]{0}', space=vmem, size = 0x2000, scoped, tag = 'scoped mem for output reshape']
    %v2 = vld [vmem:[%s0] sm:$0x1]
    %vm3 = vcmask 48128
    %4 = vst.msk [vmem:[#allocation0] sm:$0x1] %vm3, %v2
    %s5 = scalar_lea.vmem %s0, 21
    %v6 = vld [vmem:[%s5] sm:$0x1]
    %s7 = scalar_lea.vmem %s0, 21
    %v8 = vld [vmem:[%s7] sm:$0x1]
    %vm9 = vcmask 15360
    %v10 = vsel %vm9, %v8, %v6
    %11 = vrot.lane.b32.xlu0 %v10, 126
    %v12 = vpop.permute.xlu0 %11
    %vm13 = vcmask 31744
    %s14 = scalar_lea.vmem [#allocation0], 8
    %15 = vst.msk [vmem:[%s14] sm:$0x1] %vm13, %v12
    %vm16 = vcmask 1048560
    %17 = vst.msk [vmem:[#allocation0] sm:$0x1] %vm16, %v12
    %s18 = scalar_lea.vmem %s0, 20
    %v19 = vld [vmem:[%s18] sm:$0x1]
    %20 = vrot.lane.b32.xlu0 %v19, 120
    %v21 = vpop.permute.xlu0 %20
    %vm22 = vcmask 1032128
    %23 = vst.msk [vmem:[#allocation0] sm:$0x1] %vm22, %v21
    %s24 = scalar_lea.vmem %s0, 19
    %v25 = vld [vmem:[%s24] sm:$0x1]
    %26 = vrot.lane.b32.xlu0 %v25, 114
    %v27 = vpop.permute.xlu0 %26
    %vm28 = vcmask 982928
    %29 = vst.msk [vmem:[#allocation0] sm:$0x1] %vm28, %v27
    %s30 = scalar_lea.vmem %s0, 18
    %v31 = vld [vmem:[%s30] sm:$0x1]
    %32 = vrot.lane.b32.xlu0 %v31, 108
    %v33 = vpop.permute.xlu0 %32
    %vm34 = vcmask 933728
    %35 = vst.msk [vmem:[#allocation0] sm:$0x1] %vm34, %v33
    %s36 = scalar_lea.vmem %s0, 17
    %v37 = vld [vmem:[%s36] sm:$0x1]
    %38 = vrot.lane.b32.xlu0 %v37, 102
    %v39 = vpop.permute.xlu0 %38
    %vm40 = vcmask 884528
    %41 = vst.msk [vmem:[#allocation0] sm:$0x1] %vm40, %v39
    %s42 = scalar_lea.vmem %s0, 16
    %v43 = vld [vmem:[%s42] sm:$0x1]
    %44 = vrot.lane.b32.xlu0 %v43, 96
    %v45 = vpop.permute.xlu0 %44
    %vm46 = vcmask 835328
    %47 = vst.msk [vmem:[#allocation0] sm:$0x1] %vm46, %v45
    %s48 = scalar_lea.vmem %s0, 15
    %v49 = vld [vmem:[%s48] sm:$0x1]
    %50 = vrot.lane.b32.xlu0 %v49, 90
    %v51 = vpop.permute.xlu0 %50
    %vm52 = vcmask 786128
    %53 = vst.msk [vmem:[#allocation0] sm:$0x1] %vm52, %v51
    %s54 = scalar_lea.vmem %s0, 14
    %v55 = vld [vmem:[%s54] sm:$0x1]
    %56 = vrot.lane.b32.xlu0 %v55, 84
    %v57 = vpop.permute.xlu0 %56
    %vm58 = vcmask 736928
    %59 = vst.msk [vmem:[#allocation0] sm:$0x1] %vm58, %v57
    %s60 = scalar_lea.vmem %s0, 13
    %v61 = vld [vmem:[%s60] sm:$0x1]
    %62 = vrot.lane.b32.xlu0 %v61, 78
    %v63 = vpop.permute.xlu0 %62
    %vm64 = vcmask 687728
    %65 = vst.msk [vmem:[#allocation0] sm:$0x1] %vm64, %v63
    %s66 = scalar_lea.vmem %s0, 12
    %v67 = vld [vmem:[%s66] sm:$0x1]
    %68 = vrot.lane.b32.xlu0 %v67, 72
    %v69 = vpop.permute.xlu0 %68
    %vm70 = vcmask 638528
    %71 = vst.msk [vmem:[#allocation0] sm:$0x1] %vm70, %v69
    %s72 = scalar_lea.vmem %s0, 11
    %v73 = vld [vmem:[%s72] sm:$0x1]
    %74 = vrot.lane.b32.xlu0 %v73, 66
    %v75 = vpop.permute.xlu0 %74
    %vm76 = vcmask 589328
    %77 = vst.msk [vmem:[#allocation0] sm:$0x1] %vm76, %v75
    %s78 = scalar_lea.vmem %s0, 10
    %v79 = vld [vmem:[%s78] sm:$0x1]
    %80 = vrot.lane.b32.xlu0 %v79, 60
    %v81 = vpop.permute.xlu0 %80
    %vm82 = vcmask 540128
    %83 = vst.msk [vmem:[#allocation0] sm:$0x1] %vm82, %v81
    %s84 = scalar_lea.vmem %s0, 9
    %v85 = vld [vmem:[%s84] sm:$0x1]
    %86 = vrot.lane.b32.xlu0 %v85, 54
    %v87 = vpop.permute.xlu0 %86
    %vm88 = vcmask 490928
    %89 = vst.msk [vmem:[#allocation0] sm:$0x1] %vm88, %v87
    %s90 = scalar_lea.vmem %s0, 8
    %v91 = vld [vmem:[%s90] sm:$0x1]
    %92 = vrot.lane.b32.xlu0 %v91, 48
    %v93 = vpop.permute.xlu0 %92
    %vm94 = vcmask 441728
    %95 = vst.msk [vmem:[#allocation0] sm:$0x1] %vm94, %v93
    %s96 = scalar_lea.vmem %s0, 29
    %v97 = vld [vmem:[%s96] sm:$0x1]
    %98 = vrot.lane.b32.xlu0 %v97, 46
    %v99 = vpop.permute.xlu0 %98
    %vm100 = vcmask 425328
    %s101 = scalar_lea.vmem [#allocation0], 8
    %102 = vst.msk [vmem:[%s101] sm:$0x1] %vm100, %v99
    %s103 = scalar_lea.vmem %s0, 7
    %v104 = vld [vmem:[%s103] sm:$0x1]
    %105 = vrot.lane.b32.xlu0 %v104, 42
    %v106 = vpop.permute.xlu0 %105
    %vm107 = vcmask 392528
    %108 = vst.msk [vmem:[#allocation0] sm:$0x1] %vm107, %v106
    %s109 = scalar_lea.vmem %s0, 28
    %v110 = vld [vmem:[%s109] sm:$0x1]
    %111 = vrot.lane.b32.xlu0 %v110, 40
    %v112 = vpop.permute.xlu0 %111
    %vm113 = vcmask 376128
    %s114 = scalar_lea.vmem [#allocation0], 8
    %115 = vst.msk [vmem:[%s114] sm:$0x1] %vm113, %v112
    %s116 = scalar_lea.vmem %s0, 6
    %v117 = vld [vmem:[%s116] sm:$0x1]
    %118 = vrot.lane.b32.xlu0 %v117, 36
    %v119 = vpop.permute.xlu0 %118
    %vm120 = vcmask 343328
    %121 = vst.msk [vmem:[#allocation0] sm:$0x1] %vm120, %v119
    %s122 = scalar_lea.vmem %s0, 27
    %v123 = vld [vmem:[%s122] sm:$0x1]
    %124 = vrot.lane.b32.xlu0 %v123, 34
    %v125 = vpop.permute.xlu0 %124
    %vm126 = vcmask 326928
    %s127 = scalar_lea.vmem [#allocation0], 8
    %128 = vst.msk [vmem:[%s127] sm:$0x1] %vm126, %v125
    %s129 = scalar_lea.vmem %s0, 5
    %v130 = vld [vmem:[%s129] sm:$0x1]
    %131 = vrot.lane.b32.xlu0 %v130, 30
    %v132 = vpop.permute.xlu0 %131
    %vm133 = vcmask 294128
    %134 = vst.msk [vmem:[#allocation0] sm:$0x1] %vm133, %v132
    %s135 = scalar_lea.vmem %s0, 26
    %v136 = vld [vmem:[%s135] sm:$0x1]
    %137 = vrot.lane.b32.xlu0 %v136, 28
    %v138 = vpop.permute.xlu0 %137
    %vm139 = vcmask 277728
    %s140 = scalar_lea.vmem [#allocation0], 8
    %141 = vst.msk [vmem:[%s140] sm:$0x1] %vm139, %v138
    %s142 = scalar_lea.vmem %s0, 4
    %v143 = vld [vmem:[%s142] sm:$0x1]
    %144 = vrot.lane.b32.xlu0 %v143, 24
    %v145 = vpop.permute.xlu0 %144
    %vm146 = vcmask 244928
    %147 = vst.msk [vmem:[#allocation0] sm:$0x1] %vm146, %v145
    %s148 = scalar_lea.vmem %s0, 25
    %v149 = vld [vmem:[%s148] sm:$0x1]
    %150 = vrot.lane.b32.xlu0 %v149, 22
    %v151 = vpop.permute.xlu0 %150
    %vm152 = vcmask 228528
    %s153 = scalar_lea.vmem [#allocation0], 8
    %154 = vst.msk [vmem:[%s153] sm:$0x1] %vm152, %v151
    %s155 = scalar_lea.vmem %s0, 3
    %v156 = vld [vmem:[%s155] sm:$0x1]
    %157 = vrot.lane.b32.xlu0 %v156, 18
    %v158 = vpop.permute.xlu0 %157
    %vm159 = vcmask 195728
    %160 = vst.msk [vmem:[#allocation0] sm:$0x1] %vm159, %v158
    %s161 = scalar_lea.vmem %s0, 24
    %v162 = vld [vmem:[%s161] sm:$0x1]
    %163 = vrot.lane.b32.xlu0 %v162, 16
    %v164 = vpop.permute.xlu0 %163
    %vm165 = vcmask 179328
    %s166 = scalar_lea.vmem [#allocation0], 8
    %167 = vst.msk [vmem:[%s166] sm:$0x1] %vm165, %v164
    %s168 = scalar_lea.vmem %s0, 2
    %v169 = vld [vmem:[%s168] sm:$0x1]
    %170 = vrot.lane.b32.xlu0 %v169, 12
    %v171 = vpop.permute.xlu0 %170
    %vm172 = vcmask 146528
    %173 = vst.msk [vmem:[#allocation0] sm:$0x1] %vm172, %v171
    %s174 = scalar_lea.vmem %s0, 23
    %v175 = vld [vmem:[%s174] sm:$0x1]
    %176 = vrot.lane.b32.xlu0 %v175, 10
    %v177 = vpop.permute.xlu0 %176
    %vm178 = vcmask 130128
    %s179 = scalar_lea.vmem [#allocation0], 8
    %180 = vst.msk [vmem:[%s179] sm:$0x1] %vm178, %v177
    %s181 = scalar_lea.vmem %s0, 1
    %v182 = vld [vmem:[%s181] sm:$0x1]
    %183 = vrot.lane.b32.xlu0 %v182, 6
    %v184 = vpop.permute.xlu0 %183
    %vm185 = vcmask 97328
    %186 = vst.msk [vmem:[#allocation0] sm:$0x1] %vm185, %v184
    %s187 = scalar_lea.vmem %s0, 22
    %v188 = vld [vmem:[%s187] sm:$0x1]
    %189 = vrot.lane.b32.xlu0 %v188, 4
    %v190 = vpop.permute.xlu0 %189
    %vm191 = vcmask 80928
    %s192 = scalar_lea.vmem [#allocation0], 8
    %193 = vst.msk [vmem:[%s192] sm:$0x1] %vm191, %v190
    %s195 = sshllo.u32 0, 1
    %v197 = vld [vmem:[#allocation0] sm:%s195]
    %s198 = sshllo.u32 0, 1
    %199 = vst [vmem:[%s1] sm:%s198] %v197
    %s200 = scalar_lea.vmem [#allocation0], 8
    %v201 = vld [vmem:[%s200] sm:%s195]
    %s202 = sshllo.u32 0, 1
    %s203 = scalar_lea.vmem %s1, 1
    %204 = vst [vmem:[%s203] sm:%s202] %v201

// kernel: tile.18
$region0: #{tile.18}
  #allocation0 [shape = 's32[1]{0}', space=sflag, size = 0x4, scoped, tag = 'scoped memory for tile.18']
  %s0 = inlined_call_operand.vmem [shape: f32[16], index: 0, kind: input, shape index: {}]
  %s1 = inlined_call_operand.vmem [shape: f32[13,16], index: 1, kind: output, shape index: {}]
  // Predicated region
  $region2: #{tile.18} parent=0 // pred_check
    _
  $region3: #{tile.18} parent=0 // pred_check_branch
    %3 = sbr.rel (0) target = $region5
  $region4: #{tile.18} parent=0 // pred_region
    _
  $region5: #{tile.18} parent=0 // pred_fallthru
    _
  %v4 = vld [vmem:[%s0] ss:$0 sm:$0xff]
  %5 = vst [vmem:[%s1] sm:$0xff] %v4
  %s6 = scalar_lea.vmem %s1, 8
  %7 = vst [vmem:[%s6] sm:$0xff] %v4

// kernel: tile.19
$region0: #{tile.19}
  %s0 = inlined_call_operand.vmem [shape: f32[13,16], index: 0, kind: input, shape index: {}]
  %s1 = inlined_call_operand.vmem [shape: f32[1,208], index: 1, kind: output, shape index: {}]
  $region1: #{tile.19} parent=0
    #allocation0 [shape = 'u8[8192]{0}', space=vmem, size = 0x2000, scoped, tag = 'scoped mem for output reshape']
    %s2 = smov 3
    %v3 = vld [vmem:[%s0] ss:$8 sm:%s2]
    %vm4 = vcmask 130048
    %5 = vst.msk [vmem:[#allocation0] ss:$8 sm:$0x3] %vm4, %v3
    %s6 = scalar_lea.vmem %s0, 7
    %v7 = vld [vmem:[%s6] sm:$0x1]
    %8 = vrot.lane.b32.xlu0 %v7, 112
    %v9 = vpop.permute.xlu0 %8
    %vm10 = vcmask 1048448
    %11 = vst.msk [vmem:[#allocation0] sm:$0x1] %vm10, %v9
    %s12 = scalar_lea.vmem %s0, 6
    %v13 = vld [vmem:[%s12] sm:$0x1]
    %14 = vrot.lane.b32.xlu0 %v13, 96
    %v15 = vpop.permute.xlu0 %14
    %vm16 = vcmask 917248
    %17 = vst.msk [vmem:[#allocation0] sm:$0x1] %vm16, %v15
    %s18 = scalar_lea.vmem %s0, 5
    %v19 = vld [vmem:[%s18] sm:$0x1]
    %20 = vrot.lane.b32.xlu0 %v19, 80
    %v21 = vpop.permute.xlu0 %20
    %vm22 = vcmask 786048
    %23 = vst.msk [vmem:[#allocation0] sm:$0x1] %vm22, %v21
    %s24 = scalar_lea.vmem %s0, 4
    %s25 = smov 3
    %v26 = vld [vmem:[%s24] ss:$8 sm:%s25]
    %27 = vrot.lane.b32.xlu0 %v26, 64
    %v28 = vpop.permute.xlu0 %27
    %vm29 = vcmask 654848
    %30 = vst.msk [vmem:[#allocation0] ss:$8 sm:$0x3] %vm29, %v28
    %s31 = scalar_lea.vmem %s0, 3
    %s32 = smov 3
    %v33 = vld [vmem:[%s31] ss:$8 sm:%s32]
    %34 = vrot.lane.b32.xlu0 %v33, 48
    %v35 = vpop.permute.xlu0 %34
    %vm36 = vcmask 523648
    %37 = vst.msk [vmem:[#allocation0] ss:$8 sm:$0x3] %vm36, %v35
    %s38 = scalar_lea.vmem %s0, 2
    %s39 = smov 3
    %v40 = vld [vmem:[%s38] ss:$8 sm:%s39]
    %41 = vrot.lane.b32.xlu0 %v40, 32
    %v42 = vpop.permute.xlu0 %41
    %vm43 = vcmask 392448
    %44 = vst.msk [vmem:[#allocation0] ss:$8 sm:$0x3] %vm43, %v42
    %s45 = scalar_lea.vmem %s0, 1
    %s46 = smov 3
    %v47 = vld [vmem:[%s45] ss:$8 sm:%s46]
    %48 = vrot.lane.b32.xlu0 %v47, 16
    %v49 = vpop.permute.xlu0 %48
    %vm50 = vcmask 261248
    %51 = vst.msk [vmem:[#allocation0] ss:$8 sm:$0x3] %vm50, %v49
    %s53 = sshllo.u32 0, 1
    %v55 = vld [vmem:[#allocation0] sm:%s53]
    %s56 = sshllo.u32 0, 1
    %57 = vst [vmem:[%s1] sm:%s56] %v55
    %s58 = scalar_lea.vmem [#allocation0], 8
    %v59 = vld [vmem:[%s58] sm:%s53]
    %s60 = sshllo.u32 0, 1
    %s61 = scalar_lea.vmem %s1, 1
    %62 = vst [vmem:[%s61] sm:%s60] %v59

// kernel: net_forward.1
$region0: #{net_forward.1}
  #allocation0 [shape = 'u32[]', space=smem, size = 0x4, offset = 0x4, fixed_abs, tag = 'smem constant byte address 0x4 - core index']
  #allocation1 [shape = 'u32[144,128]{1,0:T(1,128)}', space=vmem, size = 0x12000, scoped, tag = 'internal scratch']
  %s0 = inlined_call_operand.vmem [shape: f32[2,32,32], index: 0, kind: input, shape index: {}]
  %s1 = inlined_call_operand.vmem [shape: f32[3,32,180], index: 1, kind: input, shape index: {}]
  %s2 = inlined_call_operand.vmem [shape: f32[1,180], index: 2, kind: input, shape index: {}]
  %s3 = inlined_call_operand.vmem [shape: f32[3,90,208], index: 3, kind: input, shape index: {}]
  %s4 = inlined_call_operand.vmem [shape: f32[1,208], index: 4, kind: input, shape index: {}]
  %s5 = inlined_call_operand.vmem [shape: f32[2,15,30], index: 5, kind: input, shape index: {}]
  %s6 = inlined_call_operand.vmem [shape: f32[2,180,90], index: 6, kind: input, shape index: {}]
  %s7 = inlined_call_operand.vmem [shape: f32[2,6,13], index: 7, kind: input, shape index: {}]
  %s8 = inlined_call_operand.vmem [shape: f32[2,208,96], index: 8, kind: input, shape index: {}]
  %s9 = inlined_call_operand.vmem [shape: f32[6,96,120], index: 9, kind: input, shape index: {}]
  %s10 = inlined_call_operand.vmem [shape: f32[1,120], index: 10, kind: input, shape index: {}]
  %s11 = inlined_call_operand.vmem [shape: f32[120,84], index: 11, kind: input, shape index: {}]
  %s12 = inlined_call_operand.vmem [shape: f32[1,84], index: 12, kind: input, shape index: {}]
  %s13 = inlined_call_operand.vmem [shape: f32[84,10], index: 13, kind: input, shape index: {}]
  %s14 = inlined_call_operand.vmem [shape: f32[1,10], index: 14, kind: input, shape index: {}]
  %s15 = inlined_call_operand.hbm [shape: f32[2,10], index: 15, kind: output, shape index: {}]
  %s16 = sld [smem:[#allocation0]]
  $region70: #{net_forward.1} parent=0
    _
  %s18 = ssub.s32 1, %s16
  %s19 = scalar_select 0, %s18, %s16
  $region1: #{net_forward.1} parent=0
    #allocation2 [shape = 'u8[1024]{0}', space=vmem, size = 0x400, scoped, tag = 'output window, operand 0, single buffered']
    #allocation3 [shape = 's32[1]{0}', space=sflag, size = 0x4, scoped, tag = 'scoped memory for net_forward.1']
    %20 = vsyncpa [#allocation3], 0
    // Predicated region
    $region2: #{net_forward.1} parent=1 // pred_check
      _
    $region3: #{net_forward.1} parent=1 // pred_check_branch
      %22 = sbr.rel (0) target = $region5
    $region4: #{net_forward.1} parent=1 // pred_region
      _
    $region5: #{net_forward.1} parent=1 // pred_fallthru
      _
    // Predicated region
    $region6: #{net_forward.1} parent=1 // pred_check
      _
    $region7: #{net_forward.1} parent=1 // pred_check_branch
      %24 = sbr.rel (0) target = $region9
    $region8: #{net_forward.1} parent=1 // pred_region
      _
    $region9: #{net_forward.1} parent=1 // pred_fallthru
      _
    // Predicated region
    $region10: #{net_forward.1} parent=1 // pred_check
      _
    $region11: #{net_forward.1} parent=1 // pred_check_branch
      %26 = sbr.rel (0) target = $region13
    $region12: #{net_forward.1} parent=1 // pred_region
      _
    $region13: #{net_forward.1} parent=1 // pred_fallthru
      _
    // Predicated region
    $region14: #{net_forward.1} parent=1 // pred_check
      _
    $region15: #{net_forward.1} parent=1 // pred_check_branch
      %28 = sbr.rel (0) target = $region17
    $region16: #{net_forward.1} parent=1 // pred_region
      _
    $region17: #{net_forward.1} parent=1 // pred_fallthru
      _
    // Predicated region
    $region18: #{net_forward.1} parent=1 // pred_check
      _
    $region19: #{net_forward.1} parent=1 // pred_check_branch
      %30 = sbr.rel (0) target = $region21
    $region20: #{net_forward.1} parent=1 // pred_region
      _
    $region21: #{net_forward.1} parent=1 // pred_fallthru
      _
    // Predicated region
    $region22: #{net_forward.1} parent=1 // pred_check
      _
    $region23: #{net_forward.1} parent=1 // pred_check_branch
      %32 = sbr.rel (0) target = $region25
    $region24: #{net_forward.1} parent=1 // pred_region
      _
    $region25: #{net_forward.1} parent=1 // pred_fallthru
      _
    // Predicated region
    $region26: #{net_forward.1} parent=1 // pred_check
      _
    $region27: #{net_forward.1} parent=1 // pred_check_branch
      %34 = sbr.rel (0) target = $region29
    $region28: #{net_forward.1} parent=1 // pred_region
      _
    $region29: #{net_forward.1} parent=1 // pred_fallthru
      _
    // Predicated region
    $region30: #{net_forward.1} parent=1 // pred_check
      _
    $region31: #{net_forward.1} parent=1 // pred_check_branch
      %36 = sbr.rel (0) target = $region33
    $region32: #{net_forward.1} parent=1 // pred_region
      _
    $region33: #{net_forward.1} parent=1 // pred_fallthru
      _
    // Predicated region
    $region34: #{net_forward.1} parent=1 // pred_check
      _
    $region35: #{net_forward.1} parent=1 // pred_check_branch
      %38 = sbr.rel (0) target = $region37
    $region36: #{net_forward.1} parent=1 // pred_region
      _
    $region37: #{net_forward.1} parent=1 // pred_fallthru
      _
    // Predicated region
    $region38: #{net_forward.1} parent=1 // pred_check
      _
    $region39: #{net_forward.1} parent=1 // pred_check_branch
      %40 = sbr.rel (0) target = $region41
    $region40: #{net_forward.1} parent=1 // pred_region
      _
    $region41: #{net_forward.1} parent=1 // pred_fallthru
      _
    // Predicated region
    $region42: #{net_forward.1} parent=1 // pred_check
      _
    $region43: #{net_forward.1} parent=1 // pred_check_branch
      %42 = sbr.rel (0) target = $region45
    $region44: #{net_forward.1} parent=1 // pred_region
      _
    $region45: #{net_forward.1} parent=1 // pred_fallthru
      _
    // Predicated region
    $region46: #{net_forward.1} parent=1 // pred_check
      _
    $region47: #{net_forward.1} parent=1 // pred_check_branch
      %44 = sbr.rel (0) target = $region49
    $region48: #{net_forward.1} parent=1 // pred_region
      _
    $region49: #{net_forward.1} parent=1 // pred_fallthru
      _
    // Predicated region
    $region50: #{net_forward.1} parent=1 // pred_check
      _
    $region51: #{net_forward.1} parent=1 // pred_check_branch
      %46 = sbr.rel (0) target = $region53
    $region52: #{net_forward.1} parent=1 // pred_region
      _
    $region53: #{net_forward.1} parent=1 // pred_fallthru
      _
    // Predicated region
    $region54: #{net_forward.1} parent=1 // pred_check
      _
    $region55: #{net_forward.1} parent=1 // pred_check_branch
      %48 = sbr.rel (0) target = $region57
    $region56: #{net_forward.1} parent=1 // pred_region
      _
    $region57: #{net_forward.1} parent=1 // pred_fallthru
      _
    // Predicated region
    $region58: #{net_forward.1} parent=1 // pred_check
      _
    $region59: #{net_forward.1} parent=1 // pred_check_branch
      %50 = sbr.rel (0) target = $region61
    $region60: #{net_forward.1} parent=1 // pred_region
      _
    $region61: #{net_forward.1} parent=1 // pred_fallthru
      _
    %v51 = vld [vmem:[%s0] sm:$0xff]
    %v52 = vld [vmem:[%s0 + $0x8] sm:$0xff]
    %v53 = vld [vmem:[%s0 + $0x10] sm:$0xff]
    %v54 = vld [vmem:[%s0 + $0x18] sm:$0xff]
    %v55 = vld [vmem:[%s1] sm:$0xff]
    %v56 = vld [vmem:[%s1 + $0x8] sm:$0xff]
    %v57 = vld [vmem:[%s1 + $0x10] sm:$0xff]
    %v58 = vld [vmem:[%s1 + $0x18] sm:$0xff]
    %v59 = vld [vmem:[%s1 + $0x20] sm:$0xff]
    %v60 = vld [vmem:[%s1 + $0x28] sm:$0xff]
    %v61 = vld [vmem:[%s1 + $0x30] sm:$0xff]
    %v62 = vld [vmem:[%s1 + $0x38] sm:$0xff]
    %s63 = scalar_lea.vmem %s1, 64
    %v64 = vld [vmem:[%s63] sm:$0xff]
    %v65 = vld [vmem:[%s63 + $0x8] sm:$0xff]
    %v66 = vld [vmem:[%s63 + $0x10] sm:$0xff]
    %v67 = vld [vmem:[%s63 + $0x18] sm:$0xff]
    %v68 = vld [vmem:[%s63 + $0x20] sm:$0xff]
    %v69 = vld [vmem:[%s63 + $0x28] sm:$0xff]
    %v70 = vld [vmem:[%s63 + $0x30] sm:$0xff]
    %v71 = vld [vmem:[%s63 + $0x38] sm:$0xff]
    %vm76 = vcmask 1046528
    %v77 = vrot.slane %v51, 1
    %v78 = vrot.slane %v52, 1
    %v79 = vsel %vm76, %v77, %v78
    %v80 = vrot.slane %v53, 1
    %v81 = vsel %vm76, %v78, %v80
    %v82 = vrot.slane %v54, 1
    %v83 = vsel %vm76, %v80, %v82
    %vm84 = vcmask 261120
    %v85 = vsel %vm84, %v79, 0
    %v87 = vsel %vm84, %v81, 0
    %v89 = vsel %vm84, %v83, 0
    %v91 = vsel %vm84, %v82, 0
    %93 = vmatprep.subr.mxu0 %v65
    %94 = vmatpush1.msra.mxu0 %v64
    %95 = vmatprep.subr.mxu0 %v67
    %96 = vmatpush1.msra.mxu0 %v66
    %97 = vmatprep.subr.mxu0 %v69
    %98 = vmatpush1.msra.mxu0 %v68
    %99 = vmatprep.subr.mxu0 %v71
    %100 = vmatpush1.msra.mxu0 %v70
    %101 = vmatprep.subr.mxu0 0.0
    %102 = vmatpush1.msra.mxu0 0.0
    %103 = vmatprep.subr.mxu0 0.0
    %104 = vmatpush1.msra.mxu0 0.0
    %105 = vmatprep.subr.mxu0 0.0
    %106 = vmatpush1.msra.mxu0 0.0
    %107 = vmatprep.subr.mxu0 0.0
    %108 = vmatpush1.msra.mxu0 0.0
    %109 = vmatprep.subr.mxu0 0.0
    %110 = vmatpush1.msra.mxu0 0.0
    %111 = vmatprep.subr.mxu0 0.0
    %112 = vmatpush1.msra.mxu0 0.0
    %113 = vmatprep.subr.mxu0 0.0
    %114 = vmatpush1.msra.mxu0 0.0
    %115 = vmatprep.subr.mxu0 0.0
    %116 = vmatpush1.msra.mxu0 0.0
    %117 = vmatprep.subr.mxu0 0.0
    %118 = vmatpush1.msra.mxu0 0.0
    %119 = vmatprep.subr.mxu0 0.0
    %120 = vmatpush1.msra.mxu0 0.0
    %121 = vmatprep.subr.mxu0 0.0
    %122 = vmatpush1.msra.mxu0 0.0
    %123 = vmatprep.subr.mxu0 0.0
    %124 = vmatpush1.msra.mxu0 0.0
    %125 = vmatprep.subr.mxu0 0.0
    %126 = vmatpush1.msra.mxu0 0.0
    %127 = vmatprep.subr.mxu0 0.0
    %128 = vmatpush1.msra.mxu0 0.0
    %129 = vmatprep.subr.mxu0 0.0
    %130 = vmatpush1.msra.mxu0 0.0
    %131 = vmatprep.subr.mxu0 0.0
    %132 = vmatpush1.msra.mxu0 0.0
    %133 = vmatprep.subr.mxu0 0.0
    %134 = vmatpush1.msra.mxu0 0.0
    %135 = vmatprep.subr.mxu0 0.0
    %136 = vmatpush1.msra.mxu0 0.0
    %137 = vmatprep.subr.mxu0 0.0
    %138 = vmatpush1.msra.mxu0 0.0
    %139 = vmatprep.subr.mxu0 0.0
    %140 = vmatpush1.msra.mxu0 0.0
    %141 = vmatprep.subr.mxu0 0.0
    %142 = vmatpush1.msra.mxu0 0.0
    %143 = vmatprep.subr.mxu0 0.0
    %144 = vmatpush1.msra.mxu0 0.0
    %145 = vmatprep.subr.mxu0 0.0
    %146 = vmatpush1.msra.mxu0 0.0
    %147 = vmatprep.subr.mxu0 0.0
    %148 = vmatpush1.msra.mxu0 0.0
    %149 = vmatprep.subr.mxu0 0.0
    %150 = vmatpush1.msra.mxu0 0.0
    %151 = vmatprep.subr.mxu0 0.0
    %152 = vmatpush1.msra.mxu0 0.0
    %153 = vmatprep.subr.mxu0 0.0
    %154 = vmatpush1.msra.mxu0 0.0
    %155 = vmatprep.subr.mxu0 0.0
    %156 = vmatpush1.msra.mxu0 0.0
    %157 = vmatprep.mubr.f32.mxu0 0.0
    %158 = vmatmul.mubr.f32.gmra.mrb[0].mxu0 %v85
    %v159 = vpop.f32.mrb[0].mxu0
    %v160 = vadd.f32 0.0, %v159
    %v161 = vpop.f32.mrb[0].mxu0
    %v162 = vadd.f32 0.0, %v161
    %163 = vmatprep.mubr.f32.mxu0 0.0
    %164 = vmatmul.mubr.f32.gmra.mrb[0].mxu0 %v87
    %v165 = vpop.f32.mrb[0].mxu0
    %v166 = vadd.f32 0.0, %v165
    %v167 = vpop.f32.mrb[0].mxu0
    %v168 = vadd.f32 0.0, %v167
    %169 = vmatprep.mubr.f32.mxu0 0.0
    %170 = vmatmul.mubr.f32.gmra.mrb[0].mxu0 %v89
    %v171 = vpop.f32.mrb[0].mxu0
    %v172 = vadd.f32 0.0, %v171
    %v173 = vpop.f32.mrb[0].mxu0
    %v174 = vadd.f32 0.0, %v173
    %175 = vmatprep.mubr.f32.mxu0 0.0
    %176 = vmatmul.mubr.f32.gmra.mrb[0].mxu0 %v91
    %v177 = vpop.f32.mrb[0].mxu0
    %v178 = vadd.f32 0.0, %v177
    %v179 = vpop.f32.mrb[0].mxu0
    %v180 = vadd.f32 0.0, %v179
    %181 = vdwg.mxu0
    %v182 = vsel %vm84, %v51, 0
    %v184 = vsel %vm84, %v52, 0
    %v186 = vsel %vm84, %v53, 0
    %v188 = vsel %vm84, %v54, 0
    %190 = vmatprep.subr.mxu0 %v56
    %191 = vmatpush1.msra.mxu0 %v55
    %192 = vmatprep.subr.mxu0 %v58
    %193 = vmatpush1.msra.mxu0 %v57
    %194 = vmatprep.subr.mxu0 %v60
    %195 = vmatpush1.msra.mxu0 %v59
    %196 = vmatprep.subr.mxu0 %v62
    %197 = vmatpush1.msra.mxu0 %v61
    %198 = vmatprep.subr.mxu0 0.0
    %199 = vmatpush1.msra.mxu0 0.0
    %200 = vmatprep.subr.mxu0 0.0
    %201 = vmatpush1.msra.mxu0 0.0
    %202 = vmatprep.subr.mxu0 0.0
    %203 = vmatpush1.msra.mxu0 0.0
    %204 = vmatprep.subr.mxu0 0.0
    %205 = vmatpush1.msra.mxu0 0.0
    %206 = vmatprep.subr.mxu0 0.0
    %207 = vmatpush1.msra.mxu0 0.0
    %208 = vmatprep.subr.mxu0 0.0
    %209 = vmatpush1.msra.mxu0 0.0
    %210 = vmatprep.subr.mxu0 0.0
    %211 = vmatpush1.msra.mxu0 0.0
    %212 = vmatprep.subr.mxu0 0.0
    %213 = vmatpush1.msra.mxu0 0.0
    %214 = vmatprep.subr.mxu0 0.0
    %215 = vmatpush1.msra.mxu0 0.0
    %216 = vmatprep.subr.mxu0 0.0
    %217 = vmatpush1.msra.mxu0 0.0
    %218 = vmatprep.subr.mxu0 0.0
    %219 = vmatpush1.msra.mxu0 0.0
    %220 = vmatprep.subr.mxu0 0.0
    %221 = vmatpush1.msra.mxu0 0.0
    %222 = vmatprep.subr.mxu0 0.0
    %223 = vmatpush1.msra.mxu0 0.0
    %224 = vmatprep.subr.mxu0 0.0
    %225 = vmatpush1.msra.mxu0 0.0
    %226 = vmatprep.subr.mxu0 0.0
    %227 = vmatpush1.msra.mxu0 0.0
    %228 = vmatprep.subr.mxu0 0.0
    %229 = vmatpush1.msra.mxu0 0.0
    %230 = vmatprep.subr.mxu0 0.0
    %231 = vmatpush1.msra.mxu0 0.0
    %232 = vmatprep.subr.mxu0 0.0
    %233 = vmatpush1.msra.mxu0 0.0
    %234 = vmatprep.subr.mxu0 0.0
    %235 = vmatpush1.msra.mxu0 0.0
    %236 = vmatprep.subr.mxu0 0.0
    %237 = vmatpush1.msra.mxu0 0.0
    %238 = vmatprep.subr.mxu0 0.0
    %239 = vmatpush1.msra.mxu0 0.0
    %240 = vmatprep.subr.mxu0 0.0
    %241 = vmatpush1.msra.mxu0 0.0
    %242 = vmatprep.subr.mxu0 0.0
    %243 = vmatpush1.msra.mxu0 0.0
    %244 = vmatprep.subr.mxu0 0.0
    %245 = vmatpush1.msra.mxu0 0.0
    %246 = vmatprep.subr.mxu0 0.0
    %247 = vmatpush1.msra.mxu0 0.0
    %248 = vmatprep.subr.mxu0 0.0
    %249 = vmatpush1.msra.mxu0 0.0
    %250 = vmatprep.subr.mxu0 0.0
    %251 = vmatpush1.msra.mxu0 0.0
    %252 = vmatprep.subr.mxu0 0.0
    %253 = vmatpush1.msra.mxu0 0.0
    %254 = vmatprep.mubr.f32.mxu0 0.0
    %255 = vmatmul.mubr.f32.gmra.mrb[0].mxu0 %v182
    %v256 = vpop.f32.mrb[0].mxu0
    %v257 = vadd.f32 %v160, %v256
    %v258 = vpop.f32.mrb[0].mxu0
    %v259 = vadd.f32 %v162, %v258
    %260 = vmatprep.mubr.f32.mxu0 0.0
    %261 = vmatmul.mubr.f32.gmra.mrb[0].mxu0 %v184
    %v262 = vpop.f32.mrb[0].mxu0
    %v263 = vadd.f32 %v166, %v262
    %v264 = vpop.f32.mrb[0].mxu0
    %v265 = vadd.f32 %v168, %v264
    %266 = vmatprep.mubr.f32.mxu0 0.0
    %267 = vmatmul.mubr.f32.gmra.mrb[0].mxu0 %v186
    %v268 = vpop.f32.mrb[0].mxu0
    %v269 = vadd.f32 %v172, %v268
    %v270 = vpop.f32.mrb[0].mxu0
    %v271 = vadd.f32 %v174, %v270
    %272 = vmatprep.mubr.f32.mxu0 0.0
    %273 = vmatmul.mubr.f32.gmra.mrb[0].mxu0 %v188
    %v274 = vpop.f32.mrb[0].mxu0
    %v275 = vadd.f32 %v178, %v274
    %v276 = vpop.f32.mrb[0].mxu0
    %v277 = vadd.f32 %v180, %v276
    %278 = vdwg.mxu0
    %s279 = scalar_lea.vmem %s1, 128
    %v280 = vld [vmem:[%s279] sm:$0xff]
    %v281 = vld [vmem:[%s279 + $0x8] sm:$0xff]
    %v282 = vld [vmem:[%s279 + $0x10] sm:$0xff]
    %v283 = vld [vmem:[%s279 + $0x18] sm:$0xff]
    %v284 = vld [vmem:[%s279 + $0x20] sm:$0xff]
    %v285 = vld [vmem:[%s279 + $0x28] sm:$0xff]
    %v286 = vld [vmem:[%s279 + $0x30] sm:$0xff]
    %v287 = vld [vmem:[%s279 + $0x38] sm:$0xff]
    %vm288 = vcmask 1045504
    %v289 = vrot.slane %v51, 2
    %v290 = vrot.slane %v52, 2
    %v291 = vsel %vm288, %v289, %v290
    %v292 = vrot.slane %v53, 2
    %v293 = vsel %vm288, %v290, %v292
    %v294 = vrot.slane %v54, 2
    %v295 = vsel %vm288, %v292, %v294
    %v296 = vsel %vm84, %v291, 0
    %v298 = vsel %vm84, %v293, 0
    %v300 = vsel %vm84, %v295, 0
    %v302 = vsel %vm84, %v294, 0
    %304 = vmatprep.subr.mxu0 %v281
    %305 = vmatpush1.msra.mxu0 %v280
    %306 = vmatprep.subr.mxu0 %v283
    %307 = vmatpush1.msra.mxu0 %v282
    %308 = vmatprep.subr.mxu0 %v285
    %309 = vmatpush1.msra.mxu0 %v284
    %310 = vmatprep.subr.mxu0 %v287
    %311 = vmatpush1.msra.mxu0 %v286
    %312 = vmatprep.subr.mxu0 0.0
    %313 = vmatpush1.msra.mxu0 0.0
    %314 = vmatprep.subr.mxu0 0.0
    %315 = vmatpush1.msra.mxu0 0.0
    %316 = vmatprep.subr.mxu0 0.0
    %317 = vmatpush1.msra.mxu0 0.0
    %318 = vmatprep.subr.mxu0 0.0
    %319 = vmatpush1.msra.mxu0 0.0
    %320 = vmatprep.subr.mxu0 0.0
    %321 = vmatpush1.msra.mxu0 0.0
    %322 = vmatprep.subr.mxu0 0.0
    %323 = vmatpush1.msra.mxu0 0.0
    %324 = vmatprep.subr.mxu0 0.0
    %325 = vmatpush1.msra.mxu0 0.0
    %326 = vmatprep.subr.mxu0 0.0
    %327 = vmatpush1.msra.mxu0 0.0
    %328 = vmatprep.subr.mxu0 0.0
    %329 = vmatpush1.msra.mxu0 0.0
    %330 = vmatprep.subr.mxu0 0.0
    %331 = vmatpush1.msra.mxu0 0.0
    %332 = vmatprep.subr.mxu0 0.0
    %333 = vmatpush1.msra.mxu0 0.0
    %334 = vmatprep.subr.mxu0 0.0
    %335 = vmatpush1.msra.mxu0 0.0
    %336 = vmatprep.subr.mxu0 0.0
    %337 = vmatpush1.msra.mxu0 0.0
    %338 = vmatprep.subr.mxu0 0.0
    %339 = vmatpush1.msra.mxu0 0.0
    %340 = vmatprep.subr.mxu0 0.0
    %341 = vmatpush1.msra.mxu0 0.0
    %342 = vmatprep.subr.mxu0 0.0
    %343 = vmatpush1.msra.mxu0 0.0
    %344 = vmatprep.subr.mxu0 0.0
    %345 = vmatpush1.msra.mxu0 0.0
    %346 = vmatprep.subr.mxu0 0.0
    %347 = vmatpush1.msra.mxu0 0.0
    %348 = vmatprep.subr.mxu0 0.0
    %349 = vmatpush1.msra.mxu0 0.0
    %350 = vmatprep.subr.mxu0 0.0
    %351 = vmatpush1.msra.mxu0 0.0
    %352 = vmatprep.subr.mxu0 0.0
    %353 = vmatpush1.msra.mxu0 0.0
    %354 = vmatprep.subr.mxu0 0.0
    %355 = vmatpush1.msra.mxu0 0.0
    %356 = vmatprep.subr.mxu0 0.0
    %357 = vmatpush1.msra.mxu0 0.0
    %358 = vmatprep.subr.mxu0 0.0
    %359 = vmatpush1.msra.mxu0 0.0
    %360 = vmatprep.subr.mxu0 0.0
    %361 = vmatpush1.msra.mxu0 0.0
    %362 = vmatprep.subr.mxu0 0.0
    %363 = vmatpush1.msra.mxu0 0.0
    %364 = vmatprep.subr.mxu0 0.0
    %365 = vmatpush1.msra.mxu0 0.0
    %366 = vmatprep.subr.mxu0 0.0
    %367 = vmatpush1.msra.mxu0 0.0
    %368 = vmatprep.mubr.f32.mxu0 0.0
    %369 = vmatmul.mubr.f32.gmra.mrb[0].mxu0 %v296
    %v370 = vpop.f32.mrb[0].mxu0
    %v371 = vadd.f32 0.0, %v370
    %v372 = vpop.f32.mrb[0].mxu0
    %v373 = vadd.f32 0.0, %v372
    %374 = vmatprep.mubr.f32.mxu0 0.0
    %375 = vmatmul.mubr.f32.gmra.mrb[0].mxu0 %v298
    %v376 = vpop.f32.mrb[0].mxu0
    %v377 = vadd.f32 0.0, %v376
    %v378 = vpop.f32.mrb[0].mxu0
    %v379 = vadd.f32 0.0, %v378
    %380 = vmatprep.mubr.f32.mxu0 0.0
    %381 = vmatmul.mubr.f32.gmra.mrb[0].mxu0 %v300
    %v382 = vpop.f32.mrb[0].mxu0
    %v383 = vadd.f32 0.0, %v382
    %v384 = vpop.f32.mrb[0].mxu0
    %v385 = vadd.f32 0.0, %v384
    %386 = vmatprep.mubr.f32.mxu0 0.0
    %387 = vmatmul.mubr.f32.gmra.mrb[0].mxu0 %v302
    %v388 = vpop.f32.mrb[0].mxu0
    %v389 = vadd.f32 0.0, %v388
    %v390 = vpop.f32.mrb[0].mxu0
    %v391 = vadd.f32 0.0, %v390
    %392 = vdwg.mxu0
    %v393 = vadd.f32 %v257, %v371
    %v394 = vadd.f32 %v259, %v373
    %v395 = vadd.f32 %v263, %v377
    %v396 = vadd.f32 %v265, %v379
    %v397 = vadd.f32 %v269, %v383
    %v398 = vadd.f32 %v271, %v385
    %v399 = vadd.f32 %v275, %v389
    %v400 = vadd.f32 %v277, %v391
    %v401 = vld [vmem:[%s2] sm:$0x3]
    %v403 = vlaneseq
    %v404 = vshrl.u32 %v403, 7
    %v405 = vsub.s32 0, %v404
    %v406 = vrot.slane %v401, %v405
    %v407 = vlaneseq
    %v408 = vshrl.u32 %v407, 7
    %v409 = vsub.s32 1, %v408
    %v410 = vrot.slane %v401, %v409
    %v413 = vadd.f32 %v393, %v406
    %v414 = vadd.f32 %v394, %v410
    %v415 = vadd.f32 %v395, %v406
    %v416 = vadd.f32 %v396, %v410
    %v417 = vadd.f32 %v397, %v406
    %v418 = vadd.f32 %v398, %v410
    %v419 = vadd.f32 %v399, %v406
    %v420 = vadd.f32 %v400, %v410
    %v421 = vmax.f32 %v413, 0.0
    %v422 = vmax.f32 %v414, 0.0
    %v423 = vmax.f32 %v415, 0.0
    %v424 = vmax.f32 %v416, 0.0
    %v425 = vmax.f32 %v417, 0.0
    %v426 = vmax.f32 %v418, 0.0
    %v427 = vmax.f32 %v419, 0.0
    %v428 = vmax.f32 %v420, 0.0
    %v429 = vld [vmem:[%s5] sm:$0xff]
    %v430 = vld [vmem:[%s5 + $0x8] sm:$0x7f]
    %vm431 = vcmask 244736
    %v433 = vsel %vm431, %v429, 0
    %v436 = vsel %vm431, %v430, 0
    %v439 = vsel %vm288, %v427, 0
    %v442 = vsel %vm288, %v428, 0
    %444 = vmatprep.subr.mxu0 %v422
    %445 = vmatpush1.msra.mxu0 %v421
    %446 = vmatprep.subr.mxu0 %v424
    %447 = vmatpush1.msra.mxu0 %v423
    %448 = vmatprep.subr.mxu0 %v426
    %449 = vmatpush1.msra.mxu0 %v425
    %450 = vmatprep.subr.mxu0 %v442
    %451 = vmatpush1.msra.mxu0 %v439
    %452 = vmatprep.subr.mxu0 0.0
    %453 = vmatpush1.msra.mxu0 0.0
    %454 = vmatprep.subr.mxu0 0.0
    %455 = vmatpush1.msra.mxu0 0.0
    %456 = vmatprep.subr.mxu0 0.0
    %457 = vmatpush1.msra.mxu0 0.0
    %458 = vmatprep.subr.mxu0 0.0
    %459 = vmatpush1.msra.mxu0 0.0
    %460 = vmatprep.subr.mxu0 0.0
    %461 = vmatpush1.msra.mxu0 0.0
    %462 = vmatprep.subr.mxu0 0.0
    %463 = vmatpush1.msra.mxu0 0.0
    %464 = vmatprep.subr.mxu0 0.0
    %465 = vmatpush1.msra.mxu0 0.0
    %466 = vmatprep.subr.mxu0 0.0
    %467 = vmatpush1.msra.mxu0 0.0
    %468 = vmatprep.subr.mxu0 0.0
    %469 = vmatpush1.msra.mxu0 0.0
    %470 = vmatprep.subr.mxu0 0.0
    %471 = vmatpush1.msra.mxu0 0.0
    %472 = vmatprep.subr.mxu0 0.0
    %473 = vmatpush1.msra.mxu0 0.0
    %474 = vmatprep.subr.mxu0 0.0
    %475 = vmatpush1.msra.mxu0 0.0
    %476 = vmatprep.subr.mxu0 0.0
    %477 = vmatpush1.msra.mxu0 0.0
    %478 = vmatprep.subr.mxu0 0.0
    %479 = vmatpush1.msra.mxu0 0.0
    %480 = vmatprep.subr.mxu0 0.0
    %481 = vmatpush1.msra.mxu0 0.0
    %482 = vmatprep.subr.mxu0 0.0
    %483 = vmatpush1.msra.mxu0 0.0
    %484 = vmatprep.subr.mxu0 0.0
    %485 = vmatpush1.msra.mxu0 0.0
    %486 = vmatprep.subr.mxu0 0.0
    %487 = vmatpush1.msra.mxu0 0.0
    %488 = vmatprep.subr.mxu0 0.0
    %489 = vmatpush1.msra.mxu0 0.0
    %490 = vmatprep.subr.mxu0 0.0
    %491 = vmatpush1.msra.mxu0 0.0
    %492 = vmatprep.subr.mxu0 0.0
    %493 = vmatpush1.msra.mxu0 0.0
    %494 = vmatprep.subr.mxu0 0.0
    %495 = vmatpush1.msra.mxu0 0.0
    %496 = vmatprep.subr.mxu0 0.0
    %497 = vmatpush1.msra.mxu0 0.0
    %498 = vmatprep.subr.mxu0 0.0
    %499 = vmatpush1.msra.mxu0 0.0
    %500 = vmatprep.subr.mxu0 0.0
    %501 = vmatpush1.msra.mxu0 0.0
    %502 = vmatprep.subr.mxu0 0.0
    %503 = vmatpush1.msra.mxu0 0.0
    %504 = vmatprep.subr.mxu0 0.0
    %505 = vmatpush1.msra.mxu0 0.0
    %506 = vmatprep.subr.mxu0 0.0
    %507 = vmatpush1.msra.mxu0 0.0
    %508 = vmatprep.mubr.f32.mxu0 0.0
    %509 = vmatmul.mubr.f32.gmra.mrb[0].mxu0 %v433
    %v510 = vpop.f32.mrb[0].mxu0
    %v511 = vadd.f32 0.0, %v510
    %v512 = vpop.f32.mrb[0].mxu0
    %v513 = vadd.f32 0.0, %v512
    %514 = vmatprep.mubr.f32.mxu0 0.0
    %515 = vmatmul.mubr.f32.gmra.mrb[0].mxu0 %v436
    %v516 = vpop.f32.mrb[0].mxu0
    %v517 = vadd.f32 0.0, %v516
    %v518 = vpop.f32.mrb[0].mxu0
    %v519 = vadd.f32 0.0, %v518
    %520 = vdwg.mxu0
    %s521 = scalar_lea.vmem %s5, 16
    %v522 = vld [vmem:[%s521] sm:$0xff]
    %v523 = vld [vmem:[%s521 + $0x8] sm:$0x7f]
    %v525 = vsel %vm431, %v522, 0
    %v528 = vsel %vm431, %v523, 0
    %530 = vmatprep.subr.mxu0 %v422
    %531 = vmatpush1.msra.mxu0 %v421
    %532 = vmatprep.subr.mxu0 %v424
    %533 = vmatpush1.msra.mxu0 %v423
    %534 = vmatprep.subr.mxu0 %v426
    %535 = vmatpush1.msra.mxu0 %v425
    %536 = vmatprep.subr.mxu0 %v442
    %537 = vmatpush1.msra.mxu0 %v439
    %538 = vmatprep.subr.mxu0 0.0
    %539 = vmatpush1.msra.mxu0 0.0
    %540 = vmatprep.subr.mxu0 0.0
    %541 = vmatpush1.msra.mxu0 0.0
    %542 = vmatprep.subr.mxu0 0.0
    %543 = vmatpush1.msra.mxu0 0.0
    %544 = vmatprep.subr.mxu0 0.0
    %545 = vmatpush1.msra.mxu0 0.0
    %546 = vmatprep.subr.mxu0 0.0
    %547 = vmatpush1.msra.mxu0 0.0
    %548 = vmatprep.subr.mxu0 0.0
    %549 = vmatpush1.msra.mxu0 0.0
    %550 = vmatprep.subr.mxu0 0.0
    %551 = vmatpush1.msra.mxu0 0.0
    %552 = vmatprep.subr.mxu0 0.0
    %553 = vmatpush1.msra.mxu0 0.0
    %554 = vmatprep.subr.mxu0 0.0
    %555 = vmatpush1.msra.mxu0 0.0
    %556 = vmatprep.subr.mxu0 0.0
    %557 = vmatpush1.msra.mxu0 0.0
    %558 = vmatprep.subr.mxu0 0.0
    %559 = vmatpush1.msra.mxu0 0.0
    %560 = vmatprep.subr.mxu0 0.0
    %561 = vmatpush1.msra.mxu0 0.0
    %562 = vmatprep.subr.mxu0 0.0
    %563 = vmatpush1.msra.mxu0 0.0
    %564 = vmatprep.subr.mxu0 0.0
    %565 = vmatpush1.msra.mxu0 0.0
    %566 = vmatprep.subr.mxu0 0.0
    %567 = vmatpush1.msra.mxu0 0.0
    %568 = vmatprep.subr.mxu0 0.0
    %569 = vmatpush1.msra.mxu0 0.0
    %570 = vmatprep.subr.mxu0 0.0
    %571 = vmatpush1.msra.mxu0 0.0
    %572 = vmatprep.subr.mxu0 0.0
    %573 = vmatpush1.msra.mxu0 0.0
    %574 = vmatprep.subr.mxu0 0.0
    %575 = vmatpush1.msra.mxu0 0.0
    %576 = vmatprep.subr.mxu0 0.0
    %577 = vmatpush1.msra.mxu0 0.0
    %578 = vmatprep.subr.mxu0 0.0
    %579 = vmatpush1.msra.mxu0 0.0
    %580 = vmatprep.subr.mxu0 0.0
    %581 = vmatpush1.msra.mxu0 0.0
    %582 = vmatprep.subr.mxu0 0.0
    %583 = vmatpush1.msra.mxu0 0.0
    %584 = vmatprep.subr.mxu0 0.0
    %585 = vmatpush1.msra.mxu0 0.0
    %586 = vmatprep.subr.mxu0 0.0
    %587 = vmatpush1.msra.mxu0 0.0
    %588 = vmatprep.subr.mxu0 0.0
    %589 = vmatpush1.msra.mxu0 0.0
    %590 = vmatprep.subr.mxu0 0.0
    %591 = vmatpush1.msra.mxu0 0.0
    %592 = vmatprep.subr.mxu0 0.0
    %593 = vmatpush1.msra.mxu0 0.0
    %594 = vmatprep.mubr.f32.mxu0 0.0
    %595 = vmatmul.mubr.f32.gmra.mrb[0].mxu0 %v525
    %v596 = vpop.f32.mrb[0].mxu0
    %v597 = vadd.f32 0.0, %v596
    %v598 = vpop.f32.mrb[0].mxu0
    %v599 = vadd.f32 0.0, %v598
    %600 = vmatprep.mubr.f32.mxu0 0.0
    %601 = vmatmul.mubr.f32.gmra.mrb[0].mxu0 %v528
    %v602 = vpop.f32.mrb[0].mxu0
    %v603 = vadd.f32 0.0, %v602
    %v604 = vpop.f32.mrb[0].mxu0
    %v605 = vadd.f32 0.0, %v604
    %606 = vdwg.mxu0
    %v607 = vld [vmem:[%s6] sm:$0xff]
    %v608 = vld [vmem:[%s6 + $0x8] sm:$0xff]
    %v609 = vld [vmem:[%s6 + $0x10] sm:$0xff]
    %v610 = vld [vmem:[%s6 + $0x18] sm:$0xff]
    %v611 = vld [vmem:[%s6 + $0x20] sm:$0xff]
    %v612 = vld [vmem:[%s6 + $0x28] sm:$0xff]
    %v613 = vld [vmem:[%s6 + $0x30] sm:$0xff]
    %v614 = vld [vmem:[%s6 + $0x38] sm:$0xff]
    %v615 = vld [vmem:[%s6 + $0x40] sm:$0xff]
    %v616 = vld [vmem:[%s6 + $0x48] sm:$0xff]
    %v617 = vld [vmem:[%s6 + $0x50] sm:$0xff]
    %v618 = vld [vmem:[%s6 + $0x58] sm:$0xff]
    %v619 = vld [vmem:[%s6 + $0x60] sm:$0xff]
    %v620 = vld [vmem:[%s6 + $0x68] sm:$0xff]
    %v621 = vld [vmem:[%s6 + $0x70] sm:$0xff]
    %v622 = vld [vmem:[%s6 + $0x78] sm:$0xff]
    %v623 = vld [vmem:[%s6 + $0x80] sm:$0xff]
    %v624 = vld [vmem:[%s6 + $0x88] sm:$0xff]
    %v625 = vld [vmem:[%s6 + $0x90] sm:$0xff]
    %v626 = vld [vmem:[%s6 + $0x98] sm:$0xff]
    %v627 = vld [vmem:[%s6 + $0xa0] sm:$0xff]
    %v628 = vld [vmem:[%s6 + $0xa8] sm:$0xff]
    %v629 = vld [vmem:[%s6 + $0xb0] sm:$0xf]
    %vm630 = vcmask 424960
    %v632 = vsel %vm630, %v513, 0
    %v635 = vsel %vm630, %v519, 0
    %vm637 = vcmask 1043456
    %v639 = vsel %vm637, %v629, 0
    %641 = vmatprep.subr.mxu0 0.0
    %642 = vmatpush1.msra.mxu0 %v607
    %643 = vmatprep.subr.mxu0 0.0
    %644 = vmatpush1.msra.mxu0 %v608
    %645 = vmatprep.subr.mxu0 0.0
    %646 = vmatpush1.msra.mxu0 %v609
    %647 = vmatprep.subr.mxu0 0.0
    %648 = vmatpush1.msra.mxu0 %v610
    %649 = vmatprep.subr.mxu0 0.0
    %650 = vmatpush1.msra.mxu0 %v611
    %651 = vmatprep.subr.mxu0 0.0
    %652 = vmatpush1.msra.mxu0 %v612
    %653 = vmatprep.subr.mxu0 0.0
    %654 = vmatpush1.msra.mxu0 %v613
    %655 = vmatprep.subr.mxu0 0.0
    %656 = vmatpush1.msra.mxu0 %v614
    %657 = vmatprep.subr.mxu0 0.0
    %658 = vmatpush1.msra.mxu0 %v615
    %659 = vmatprep.subr.mxu0 0.0
    %660 = vmatpush1.msra.mxu0 %v616
    %661 = vmatprep.subr.mxu0 0.0
    %662 = vmatpush1.msra.mxu0 %v617
    %663 = vmatprep.subr.mxu0 0.0
    %664 = vmatpush1.msra.mxu0 %v618
    %665 = vmatprep.subr.mxu0 0.0
    %666 = vmatpush1.msra.mxu0 %v619
    %667 = vmatprep.subr.mxu0 0.0
    %668 = vmatpush1.msra.mxu0 %v620
    %669 = vmatprep.subr.mxu0 0.0
    %670 = vmatpush1.msra.mxu0 %v621
    %671 = vmatprep.subr.mxu0 0.0
    %672 = vmatpush1.msra.mxu0 %v622
    %673 = vmatprep.subr.mxu0 0.0
    %674 = vmatpush1.msra.mxu0 %v623
    %675 = vmatprep.subr.mxu0 0.0
    %676 = vmatpush1.msra.mxu0 %v624
    %677 = vmatprep.subr.mxu0 0.0
    %678 = vmatpush1.msra.mxu0 %v625
    %679 = vmatprep.subr.mxu0 0.0
    %680 = vmatpush1.msra.mxu0 %v626
    %681 = vmatprep.subr.mxu0 0.0
    %682 = vmatpush1.msra.mxu0 %v627
    %683 = vmatprep.subr.mxu0 0.0
    %684 = vmatpush1.msra.mxu0 %v628
    %685 = vmatprep.subr.mxu0 0.0
    %686 = vmatpush1.msra.mxu0 %v639
    %687 = vmatprep.subr.mxu0 0.0
    %688 = vmatpush1.msra.mxu0 0.0
    %689 = vmatprep.subr.mxu0 0.0
    %690 = vmatpush1.msra.mxu0 0.0
    %691 = vmatprep.subr.mxu0 0.0
    %692 = vmatpush1.msra.mxu0 0.0
    %693 = vmatprep.subr.mxu0 0.0
    %694 = vmatpush1.msra.mxu0 0.0
    %695 = vmatprep.subr.mxu0 0.0
    %696 = vmatpush1.msra.mxu0 0.0
    %697 = vmatprep.subr.mxu0 0.0
    %698 = vmatpush1.msra.mxu0 0.0
    %699 = vmatprep.subr.mxu0 0.0
    %700 = vmatpush1.msra.mxu0 0.0
    %701 = vmatprep.subr.mxu0 0.0
    %702 = vmatpush1.msra.mxu0 0.0
    %703 = vmatprep.subr.mxu0 0.0
    %704 = vmatpush1.msra.mxu0 0.0
    %705 = vmatprep.mubr.f32.mxu0 %v632
    %706 = vmatmul.mubr.f32.gmra.mrb[0].mxu0 %v511
    %v707 = vpop.f32.mrb[0].mxu0
    %v708 = vadd.f32 0.0, %v707
    %v709 = vpop.f32.mrb[0].mxu0
    %710 = vmatprep.mubr.f32.mxu0 %v635
    %711 = vmatmul.mubr.f32.gmra.mrb[0].mxu0 %v517
    %v712 = vpop.f32.mrb[0].mxu0
    %v713 = vadd.f32 0.0, %v712
    %v714 = vpop.f32.mrb[0].mxu0
    %715 = vdwg.mxu0
    %s716 = scalar_lea.vmem %s6, 184
    %v717 = vld [vmem:[%s716] sm:$0xff]
    %v718 = vld [vmem:[%s716 + $0x8] sm:$0xff]
    %v719 = vld [vmem:[%s716 + $0x10] sm:$0xff]
    %v720 = vld [vmem:[%s716 + $0x18] sm:$0xff]
    %v721 = vld [vmem:[%s716 + $0x20] sm:$0xff]
    %v722 = vld [vmem:[%s716 + $0x28] sm:$0xff]
    %v723 = vld [vmem:[%s716 + $0x30] sm:$0xff]
    %v724 = vld [vmem:[%s716 + $0x38] sm:$0xff]
    %v725 = vld [vmem:[%s716 + $0x40] sm:$0xff]
    %v726 = vld [vmem:[%s716 + $0x48] sm:$0xff]
    %v727 = vld [vmem:[%s716 + $0x50] sm:$0xff]
    %v728 = vld [vmem:[%s716 + $0x58] sm:$0xff]
    %v729 = vld [vmem:[%s716 + $0x60] sm:$0xff]
    %v730 = vld [vmem:[%s716 + $0x68] sm:$0xff]
    %v731 = vld [vmem:[%s716 + $0x70] sm:$0xff]
    %v732 = vld [vmem:[%s716 + $0x78] sm:$0xff]
    %v733 = vld [vmem:[%s716 + $0x80] sm:$0xff]
    %v734 = vld [vmem:[%s716 + $0x88] sm:$0xff]
    %v735 = vld [vmem:[%s716 + $0x90] sm:$0xff]
    %v736 = vld [vmem:[%s716 + $0x98] sm:$0xff]
    %v737 = vld [vmem:[%s716 + $0xa0] sm:$0xff]
    %v738 = vld [vmem:[%s716 + $0xa8] sm:$0xff]
    %v739 = vld [vmem:[%s716 + $0xb0] sm:$0xf]
    %v741 = vsel %vm637, %v739, 0
    %743 = vmatprep.subr.mxu0 0.0
    %744 = vmatpush1.msra.mxu0 %v717
    %745 = vmatprep.subr.mxu0 0.0
    %746 = vmatpush1.msra.mxu0 %v718
    %747 = vmatprep.subr.mxu0 0.0
    %748 = vmatpush1.msra.mxu0 %v719
    %749 = vmatprep.subr.mxu0 0.0
    %750 = vmatpush1.msra.mxu0 %v720
    %751 = vmatprep.subr.mxu0 0.0
    %752 = vmatpush1.msra.mxu0 %v721
    %753 = vmatprep.subr.mxu0 0.0
    %754 = vmatpush1.msra.mxu0 %v722
    %755 = vmatprep.subr.mxu0 0.0
    %756 = vmatpush1.msra.mxu0 %v723
    %757 = vmatprep.subr.mxu0 0.0
    %758 = vmatpush1.msra.mxu0 %v724
    %759 = vmatprep.subr.mxu0 0.0
    %760 = vmatpush1.msra.mxu0 %v725
    %761 = vmatprep.subr.mxu0 0.0
    %762 = vmatpush1.msra.mxu0 %v726
    %763 = vmatprep.subr.mxu0 0.0
    %764 = vmatpush1.msra.mxu0 %v727
    %765 = vmatprep.subr.mxu0 0.0
    %766 = vmatpush1.msra.mxu0 %v728
    %767 = vmatprep.subr.mxu0 0.0
    %768 = vmatpush1.msra.mxu0 %v729
    %769 = vmatprep.subr.mxu0 0.0
    %770 = vmatpush1.msra.mxu0 %v730
    %771 = vmatprep.subr.mxu0 0.0
    %772 = vmatpush1.msra.mxu0 %v731
    %773 = vmatprep.subr.mxu0 0.0
    %774 = vmatpush1.msra.mxu0 %v732
    %775 = vmatprep.subr.mxu0 0.0
    %776 = vmatpush1.msra.mxu0 %v733
    %777 = vmatprep.subr.mxu0 0.0
    %778 = vmatpush1.msra.mxu0 %v734
    %779 = vmatprep.subr.mxu0 0.0
    %780 = vmatpush1.msra.mxu0 %v735
    %781 = vmatprep.subr.mxu0 0.0
    %782 = vmatpush1.msra.mxu0 %v736
    %783 = vmatprep.subr.mxu0 0.0
    %784 = vmatpush1.msra.mxu0 %v737
    %785 = vmatprep.subr.mxu0 0.0
    %786 = vmatpush1.msra.mxu0 %v738
    %787 = vmatprep.subr.mxu0 0.0
    %788 = vmatpush1.msra.mxu0 %v741
    %789 = vmatprep.subr.mxu0 0.0
    %790 = vmatpush1.msra.mxu0 0.0
    %791 = vmatprep.subr.mxu0 0.0
    %792 = vmatpush1.msra.mxu0 0.0
    %793 = vmatprep.subr.mxu0 0.0
    %794 = vmatpush1.msra.mxu0 0.0
    %795 = vmatprep.subr.mxu0 0.0
    %796 = vmatpush1.msra.mxu0 0.0
    %797 = vmatprep.subr.mxu0 0.0
    %798 = vmatpush1.msra.mxu0 0.0
    %799 = vmatprep.subr.mxu0 0.0
    %800 = vmatpush1.msra.mxu0 0.0
    %801 = vmatprep.subr.mxu0 0.0
    %802 = vmatpush1.msra.mxu0 0.0
    %803 = vmatprep.subr.mxu0 0.0
    %804 = vmatpush1.msra.mxu0 0.0
    %805 = vmatprep.subr.mxu0 0.0
    %806 = vmatpush1.msra.mxu0 0.0
    %807 = vmatprep.mubr.f32.mxu0 %v632
    %808 = vmatmul.mubr.f32.gmra.mrb[0].mxu0 %v511
    %v809 = vpop.f32.mrb[0].mxu0
    %v810 = vadd.f32 0.0, %v809
    %v811 = vpop.f32.mrb[0].mxu0
    %812 = vmatprep.mubr.f32.mxu0 %v635
    %813 = vmatmul.mubr.f32.gmra.mrb[0].mxu0 %v517
    %v814 = vpop.f32.mrb[0].mxu0
    %v815 = vadd.f32 0.0, %v814
    %v816 = vpop.f32.mrb[0].mxu0
    %817 = vdwg.mxu0
    %v818 = vmax.f32 %v708, %v810
    %v819 = vmax.f32 %v713, %v815
    %v821 = vsel %vm630, %v599, 0
    %v824 = vsel %vm630, %v605, 0
    %826 = vmatprep.subr.mxu0 0.0
    %827 = vmatpush1.msra.mxu0 %v607
    %828 = vmatprep.subr.mxu0 0.0
    %829 = vmatpush1.msra.mxu0 %v608
    %830 = vmatprep.subr.mxu0 0.0
    %831 = vmatpush1.msra.mxu0 %v609
    %832 = vmatprep.subr.mxu0 0.0
    %833 = vmatpush1.msra.mxu0 %v610
    %834 = vmatprep.subr.mxu0 0.0
    %835 = vmatpush1.msra.mxu0 %v611
    %836 = vmatprep.subr.mxu0 0.0
    %837 = vmatpush1.msra.mxu0 %v612
    %838 = vmatprep.subr.mxu0 0.0
    %839 = vmatpush1.msra.mxu0 %v613
    %840 = vmatprep.subr.mxu0 0.0
    %841 = vmatpush1.msra.mxu0 %v614
    %842 = vmatprep.subr.mxu0 0.0
    %843 = vmatpush1.msra.mxu0 %v615
    %844 = vmatprep.subr.mxu0 0.0
    %845 = vmatpush1.msra.mxu0 %v616
    %846 = vmatprep.subr.mxu0 0.0
    %847 = vmatpush1.msra.mxu0 %v617
    %848 = vmatprep.subr.mxu0 0.0
    %849 = vmatpush1.msra.mxu0 %v618
    %850 = vmatprep.subr.mxu0 0.0
    %851 = vmatpush1.msra.mxu0 %v619
    %852 = vmatprep.subr.mxu0 0.0
    %853 = vmatpush1.msra.mxu0 %v620
    %854 = vmatprep.subr.mxu0 0.0
    %855 = vmatpush1.msra.mxu0 %v621
    %856 = vmatprep.subr.mxu0 0.0
    %857 = vmatpush1.msra.mxu0 %v622
    %858 = vmatprep.subr.mxu0 0.0
    %859 = vmatpush1.msra.mxu0 %v623
    %860 = vmatprep.subr.mxu0 0.0
    %861 = vmatpush1.msra.mxu0 %v624
    %862 = vmatprep.subr.mxu0 0.0
    %863 = vmatpush1.msra.mxu0 %v625
    %864 = vmatprep.subr.mxu0 0.0
    %865 = vmatpush1.msra.mxu0 %v626
    %866 = vmatprep.subr.mxu0 0.0
    %867 = vmatpush1.msra.mxu0 %v627
    %868 = vmatprep.subr.mxu0 0.0
    %869 = vmatpush1.msra.mxu0 %v628
    %870 = vmatprep.subr.mxu0 0.0
    %871 = vmatpush1.msra.mxu0 %v639
    %872 = vmatprep.subr.mxu0 0.0
    %873 = vmatpush1.msra.mxu0 0.0
    %874 = vmatprep.subr.mxu0 0.0
    %875 = vmatpush1.msra.mxu0 0.0
    %876 = vmatprep.subr.mxu0 0.0
    %877 = vmatpush1.msra.mxu0 0.0
    %878 = vmatprep.subr.mxu0 0.0
    %879 = vmatpush1.msra.mxu0 0.0
    %880 = vmatprep.subr.mxu0 0.0
    %881 = vmatpush1.msra.mxu0 0.0
    %882 = vmatprep.subr.mxu0 0.0
    %883 = vmatpush1.msra.mxu0 0.0
    %884 = vmatprep.subr.mxu0 0.0
    %885 = vmatpush1.msra.mxu0 0.0
    %886 = vmatprep.subr.mxu0 0.0
    %887 = vmatpush1.msra.mxu0 0.0
    %888 = vmatprep.subr.mxu0 0.0
    %889 = vmatpush1.msra.mxu0 0.0
    %890 = vmatprep.mubr.f32.mxu0 %v821
    %891 = vmatmul.mubr.f32.gmra.mrb[0].mxu0 %v597
    %v892 = vpop.f32.mrb[0].mxu0
    %v893 = vadd.f32 0.0, %v892
    %v894 = vpop.f32.mrb[0].mxu0
    %895 = vmatprep.mubr.f32.mxu0 %v824
    %896 = vmatmul.mubr.f32.gmra.mrb[0].mxu0 %v603
    %v897 = vpop.f32.mrb[0].mxu0
    %v898 = vadd.f32 0.0, %v897
    %v899 = vpop.f32.mrb[0].mxu0
    %900 = vdwg.mxu0
    %v901 = vmax.f32 %v818, %v893
    %v902 = vmax.f32 %v819, %v898
    %903 = vmatprep.subr.mxu0 0.0
    %904 = vmatpush1.msra.mxu0 %v717
    %905 = vmatprep.subr.mxu0 0.0
    %906 = vmatpush1.msra.mxu0 %v718
    %907 = vmatprep.subr.mxu0 0.0
    %908 = vmatpush1.msra.mxu0 %v719
    %909 = vmatprep.subr.mxu0 0.0
    %910 = vmatpush1.msra.mxu0 %v720
    %911 = vmatprep.subr.mxu0 0.0
    %912 = vmatpush1.msra.mxu0 %v721
    %913 = vmatprep.subr.mxu0 0.0
    %914 = vmatpush1.msra.mxu0 %v722
    %915 = vmatprep.subr.mxu0 0.0
    %916 = vmatpush1.msra.mxu0 %v723
    %917 = vmatprep.subr.mxu0 0.0
    %918 = vmatpush1.msra.mxu0 %v724
    %919 = vmatprep.subr.mxu0 0.0
    %920 = vmatpush1.msra.mxu0 %v725
    %921 = vmatprep.subr.mxu0 0.0
    %922 = vmatpush1.msra.mxu0 %v726
    %923 = vmatprep.subr.mxu0 0.0
    %924 = vmatpush1.msra.mxu0 %v727
    %925 = vmatprep.subr.mxu0 0.0
    %926 = vmatpush1.msra.mxu0 %v728
    %927 = vmatprep.subr.mxu0 0.0
    %928 = vmatpush1.msra.mxu0 %v729
    %929 = vmatprep.subr.mxu0 0.0
    %930 = vmatpush1.msra.mxu0 %v730
    %931 = vmatprep.subr.mxu0 0.0
    %932 = vmatpush1.msra.mxu0 %v731
    %933 = vmatprep.subr.mxu0 0.0
    %934 = vmatpush1.msra.mxu0 %v732
    %935 = vmatprep.subr.mxu0 0.0
    %936 = vmatpush1.msra.mxu0 %v733
    %937 = vmatprep.subr.mxu0 0.0
    %938 = vmatpush1.msra.mxu0 %v734
    %939 = vmatprep.subr.mxu0 0.0
    %940 = vmatpush1.msra.mxu0 %v735
    %941 = vmatprep.subr.mxu0 0.0
    %942 = vmatpush1.msra.mxu0 %v736
    %943 = vmatprep.subr.mxu0 0.0
    %944 = vmatpush1.msra.mxu0 %v737
    %945 = vmatprep.subr.mxu0 0.0
    %946 = vmatpush1.msra.mxu0 %v738
    %947 = vmatprep.subr.mxu0 0.0
    %948 = vmatpush1.msra.mxu0 %v741
    %949 = vmatprep.subr.mxu0 0.0
    %950 = vmatpush1.msra.mxu0 0.0
    %951 = vmatprep.subr.mxu0 0.0
    %952 = vmatpush1.msra.mxu0 0.0
    %953 = vmatprep.subr.mxu0 0.0
    %954 = vmatpush1.msra.mxu0 0.0
    %955 = vmatprep.subr.mxu0 0.0
    %956 = vmatpush1.msra.mxu0 0.0
    %957 = vmatprep.subr.mxu0 0.0
    %958 = vmatpush1.msra.mxu0 0.0
    %959 = vmatprep.subr.mxu0 0.0
    %960 = vmatpush1.msra.mxu0 0.0
    %961 = vmatprep.subr.mxu0 0.0
    %962 = vmatpush1.msra.mxu0 0.0
    %963 = vmatprep.subr.mxu0 0.0
    %964 = vmatpush1.msra.mxu0 0.0
    %965 = vmatprep.subr.mxu0 0.0
    %966 = vmatpush1.msra.mxu0 0.0
    %967 = vmatprep.mubr.f32.mxu0 %v821
    %968 = vmatmul.mubr.f32.gmra.mrb[0].mxu0 %v597
    %v969 = vpop.f32.mrb[0].mxu0
    %v970 = vadd.f32 0.0, %v969
    %v971 = vpop.f32.mrb[0].mxu0
    %972 = vmatprep.mubr.f32.mxu0 %v824
    %973 = vmatmul.mubr.f32.gmra.mrb[0].mxu0 %v603
    %v974 = vpop.f32.mrb[0].mxu0
    %v975 = vadd.f32 0.0, %v974
    %v976 = vpop.f32.mrb[0].mxu0
    %977 = vdwg.mxu0
    %v978 = vmax.f32 %v901, %v970
    %v979 = vmax.f32 %v902, %v975
    %v980 = vld [vmem:[%s3] sm:$0xff]
    %v981 = vld [vmem:[%s3 + $0x8] sm:$0xff]
    %v982 = vld [vmem:[%s3 + $0x10] sm:$0xff]
    %v983 = vld [vmem:[%s3 + $0x18] sm:$0xff]
    %v984 = vld [vmem:[%s3 + $0x20] sm:$0xff]
    %v985 = vld [vmem:[%s3 + $0x28] sm:$0xff]
    %v986 = vld [vmem:[%s3 + $0x30] sm:$0xff]
    %v987 = vld [vmem:[%s3 + $0x38] sm:$0xff]
    %v988 = vld [vmem:[%s3 + $0x40] sm:$0xff]
    %v989 = vld [vmem:[%s3 + $0x48] sm:$0xff]
    %v990 = vld [vmem:[%s3 + $0x50] sm:$0xff]
    %v991 = vld [vmem:[%s3 + $0x58] sm:$0xff]
    %v992 = vld [vmem:[%s3 + $0x60] sm:$0xff]
    %v993 = vld [vmem:[%s3 + $0x68] sm:$0xff]
    %v994 = vld [vmem:[%s3 + $0x70] sm:$0xff]
    %v995 = vld [vmem:[%s3 + $0x78] sm:$0xff]
    %v996 = vld [vmem:[%s3 + $0x80] sm:$0xff]
    %v997 = vld [vmem:[%s3 + $0x88] sm:$0xff]
    %v998 = vld [vmem:[%s3 + $0x90] sm:$0xff]
    %v999 = vld [vmem:[%s3 + $0x98] sm:$0xff]
    %v1000 = vld [vmem:[%s3 + $0xa0] sm:$0xff]
    %v1001 = vld [vmem:[%s3 + $0xa8] sm:$0xff]
    %v1002 = vld [vmem:[%s3 + $0xb0] sm:$0x3]
    %v1003 = vld [vmem:[%s3 + $0xb8] sm:$0x3]
    %s1004 = scalar_lea.vmem %s3, 192
    %v1005 = vld [vmem:[%s1004] sm:$0xff]
    %v1006 = vld [vmem:[%s1004 + $0x8] sm:$0xff]
    %v1007 = vld [vmem:[%s1004 + $0x10] sm:$0xff]
    %v1008 = vld [vmem:[%s1004 + $0x18] sm:$0xff]
    %v1009 = vld [vmem:[%s1004 + $0x20] sm:$0xff]
    %v1010 = vld [vmem:[%s1004 + $0x28] sm:$0xff]
    %v1011 = vld [vmem:[%s1004 + $0x30] sm:$0xff]
    %v1012 = vld [vmem:[%s1004 + $0x38] sm:$0xff]
    %v1013 = vld [vmem:[%s1004 + $0x40] sm:$0xff]
    %v1014 = vld [vmem:[%s1004 + $0x48] sm:$0xff]
    %v1015 = vld [vmem:[%s1004 + $0x50] sm:$0xff]
    %v1016 = vld [vmem:[%s1004 + $0x58] sm:$0xff]
    %v1017 = vld [vmem:[%s1004 + $0x60] sm:$0xff]
    %v1018 = vld [vmem:[%s1004 + $0x68] sm:$0xff]
    %v1019 = vld [vmem:[%s1004 + $0x70] sm:$0xff]
    %v1020 = vld [vmem:[%s1004 + $0x78] sm:$0xff]
    %v1021 = vld [vmem:[%s1004 + $0x80] sm:$0xff]
    %v1022 = vld [vmem:[%s1004 + $0x88] sm:$0xff]
    %v1023 = vld [vmem:[%s1004 + $0x90] sm:$0xff]
    %v1024 = vld [vmem:[%s1004 + $0x98] sm:$0xff]
    %v1025 = vld [vmem:[%s1004 + $0xa0] sm:$0xff]
    %v1026 = vld [vmem:[%s1004 + $0xa8] sm:$0xff]
    %v1027 = vld [vmem:[%s1004 + $0xb0] sm:$0x3]
    %v1028 = vld [vmem:[%s1004 + $0xb8] sm:$0x3]
    %v1031 = vrot.slane %v978, 1
    %v1032 = vrot.slane %v979, 1
    %v1033 = vsel %vm76, %v1031, %v1032
    %vm1034 = vcmask 736256
    %v1035 = vsel %vm1034, %v1033, 0
    %v1037 = vsel %vm1034, %v1032, 0
    %vm1039 = vcmask 1041408
    %v1041 = vsel %vm1039, %v1027, 0
    %v1044 = vsel %vm1039, %v1028, 0
    %1046 = vmatprep.subr.mxu0 %v1006
    %1047 = vmatpush1.msra.mxu0 %v1005
    %1048 = vmatprep.subr.mxu0 %v1008
    %1049 = vmatpush1.msra.mxu0 %v1007
    %1050 = vmatprep.subr.mxu0 %v1010
    %1051 = vmatpush1.msra.mxu0 %v1009
    %1052 = vmatprep.subr.mxu0 %v1012
    %1053 = vmatpush1.msra.mxu0 %v1011
    %1054 = vmatprep.subr.mxu0 %v1014
    %1055 = vmatpush1.msra.mxu0 %v1013
    %1056 = vmatprep.subr.mxu0 %v1016
    %1057 = vmatpush1.msra.mxu0 %v1015
    %1058 = vmatprep.subr.mxu0 %v1018
    %1059 = vmatpush1.msra.mxu0 %v1017
    %1060 = vmatprep.subr.mxu0 %v1020
    %1061 = vmatpush1.msra.mxu0 %v1019
    %1062 = vmatprep.subr.mxu0 %v1022
    %1063 = vmatpush1.msra.mxu0 %v1021
    %1064 = vmatprep.subr.mxu0 %v1024
    %1065 = vmatpush1.msra.mxu0 %v1023
    %1066 = vmatprep.subr.mxu0 %v1026
    %1067 = vmatpush1.msra.mxu0 %v1025
    %1068 = vmatprep.subr.mxu0 %v1044
    %1069 = vmatpush1.msra.mxu0 %v1041
    %1070 = vmatprep.subr.mxu0 0.0
    %1071 = vmatpush1.msra.mxu0 0.0
    %1072 = vmatprep.subr.mxu0 0.0
    %1073 = vmatpush1.msra.mxu0 0.0
    %1074 = vmatprep.subr.mxu0 0.0
    %1075 = vmatpush1.msra.mxu0 0.0
    %1076 = vmatprep.subr.mxu0 0.0
    %1077 = vmatpush1.msra.mxu0 0.0
    %1078 = vmatprep.subr.mxu0 0.0
    %1079 = vmatpush1.msra.mxu0 0.0
    %1080 = vmatprep.subr.mxu0 0.0
    %1081 = vmatpush1.msra.mxu0 0.0
    %1082 = vmatprep.subr.mxu0 0.0
    %1083 = vmatpush1.msra.mxu0 0.0
    %1084 = vmatprep.subr.mxu0 0.0
    %1085 = vmatpush1.msra.mxu0 0.0
    %1086 = vmatprep.subr.mxu0 0.0
    %1087 = vmatpush1.msra.mxu0 0.0
    %1088 = vmatprep.subr.mxu0 0.0
    %1089 = vmatpush1.msra.mxu0 0.0
    %1090 = vmatprep.subr.mxu0 0.0
    %1091 = vmatpush1.msra.mxu0 0.0
    %1092 = vmatprep.subr.mxu0 0.0
    %1093 = vmatpush1.msra.mxu0 0.0
    %1094 = vmatprep.subr.mxu0 0.0
    %1095 = vmatpush1.msra.mxu0 0.0
    %1096 = vmatprep.subr.mxu0 0.0
    %1097 = vmatpush1.msra.mxu0 0.0
    %1098 = vmatprep.subr.mxu0 0.0
    %1099 = vmatpush1.msra.mxu0 0.0
    %1100 = vmatprep.subr.mxu0 0.0
    %1101 = vmatpush1.msra.mxu0 0.0
    %1102 = vmatprep.subr.mxu0 0.0
    %1103 = vmatpush1.msra.mxu0 0.0
    %1104 = vmatprep.subr.mxu0 0.0
    %1105 = vmatpush1.msra.mxu0 0.0
    %1106 = vmatprep.subr.mxu0 0.0
    %1107 = vmatpush1.msra.mxu0 0.0
    %1108 = vmatprep.subr.mxu0 0.0
    %1109 = vmatpush1.msra.mxu0 0.0
    %1110 = vmatprep.mubr.f32.mxu0 0.0
    %1111 = vmatmul.mubr.f32.gmra.mrb[0].mxu0 %v1035
    %v1112 = vpop.f32.mrb[0].mxu0
    %v1113 = vadd.f32 0.0, %v1112
    %v1114 = vpop.f32.mrb[0].mxu0
    %v1115 = vadd.f32 0.0, %v1114
    %1116 = vmatprep.mubr.f32.mxu0 0.0
    %1117 = vmatmul.mubr.f32.gmra.mrb[0].mxu0 %v1037
    %v1118 = vpop.f32.mrb[0].mxu0
    %v1119 = vadd.f32 0.0, %v1118
    %v1120 = vpop.f32.mrb[0].mxu0
    %v1121 = vadd.f32 0.0, %v1120
    %1122 = vdwg.mxu0
    %v1123 = vsel %vm1034, %v978, 0
    %v1125 = vsel %vm1034, %v979, 0
    %v1128 = vsel %vm1039, %v1002, 0
    %v1131 = vsel %vm1039, %v1003, 0
    %1133 = vmatprep.subr.mxu0 %v981
    %1134 = vmatpush1.msra.mxu0 %v980
    %1135 = vmatprep.subr.mxu0 %v983
    %1136 = vmatpush1.msra.mxu0 %v982
    %1137 = vmatprep.subr.mxu0 %v985
    %1138 = vmatpush1.msra.mxu0 %v984
    %1139 = vmatprep.subr.mxu0 %v987
    %1140 = vmatpush1.msra.mxu0 %v986
    %1141 = vmatprep.subr.mxu0 %v989
    %1142 = vmatpush1.msra.mxu0 %v988
    %1143 = vmatprep.subr.mxu0 %v991
    %1144 = vmatpush1.msra.mxu0 %v990
    %1145 = vmatprep.subr.mxu0 %v993
    %1146 = vmatpush1.msra.mxu0 %v992
    %1147 = vmatprep.subr.mxu0 %v995
    %1148 = vmatpush1.msra.mxu0 %v994
    %1149 = vmatprep.subr.mxu0 %v997
    %1150 = vmatpush1.msra.mxu0 %v996
    %1151 = vmatprep.subr.mxu0 %v999
    %1152 = vmatpush1.msra.mxu0 %v998
    %1153 = vmatprep.subr.mxu0 %v1001
    %1154 = vmatpush1.msra.mxu0 %v1000
    %1155 = vmatprep.subr.mxu0 %v1131
    %1156 = vmatpush1.msra.mxu0 %v1128
    %1157 = vmatprep.subr.mxu0 0.0
    %1158 = vmatpush1.msra.mxu0 0.0
    %1159 = vmatprep.subr.mxu0 0.0
    %1160 = vmatpush1.msra.mxu0 0.0
    %1161 = vmatprep.subr.mxu0 0.0
    %1162 = vmatpush1.msra.mxu0 0.0
    %1163 = vmatprep.subr.mxu0 0.0
    %1164 = vmatpush1.msra.mxu0 0.0
    %1165 = vmatprep.subr.mxu0 0.0
    %1166 = vmatpush1.msra.mxu0 0.0
    %1167 = vmatprep.subr.mxu0 0.0
    %1168 = vmatpush1.msra.mxu0 0.0
    %1169 = vmatprep.subr.mxu0 0.0
    %1170 = vmatpush1.msra.mxu0 0.0
    %1171 = vmatprep.subr.mxu0 0.0
    %1172 = vmatpush1.msra.mxu0 0.0
    %1173 = vmatprep.subr.mxu0 0.0
    %1174 = vmatpush1.msra.mxu0 0.0
    %1175 = vmatprep.subr.mxu0 0.0
    %1176 = vmatpush1.msra.mxu0 0.0
    %1177 = vmatprep.subr.mxu0 0.0
    %1178 = vmatpush1.msra.mxu0 0.0
    %1179 = vmatprep.subr.mxu0 0.0
    %1180 = vmatpush1.msra.mxu0 0.0
    %1181 = vmatprep.subr.mxu0 0.0
    %1182 = vmatpush1.msra.mxu0 0.0
    %1183 = vmatprep.subr.mxu0 0.0
    %1184 = vmatpush1.msra.mxu0 0.0
    %1185 = vmatprep.subr.mxu0 0.0
    %1186 = vmatpush1.msra.mxu0 0.0
    %1187 = vmatprep.subr.mxu0 0.0
    %1188 = vmatpush1.msra.mxu0 0.0
    %1189 = vmatprep.subr.mxu0 0.0
    %1190 = vmatpush1.msra.mxu0 0.0
    %1191 = vmatprep.subr.mxu0 0.0
    %1192 = vmatpush1.msra.mxu0 0.0
    %1193 = vmatprep.subr.mxu0 0.0
    %1194 = vmatpush1.msra.mxu0 0.0
    %1195 = vmatprep.subr.mxu0 0.0
    %1196 = vmatpush1.msra.mxu0 0.0
    %1197 = vmatprep.mubr.f32.mxu0 0.0
    %1198 = vmatmul.mubr.f32.gmra.mrb[0].mxu0 %v1123
    %v1199 = vpop.f32.mrb[0].mxu0
    %v1200 = vadd.f32 %v1113, %v1199
    %v1201 = vpop.f32.mrb[0].mxu0
    %v1202 = vadd.f32 %v1115, %v1201
    %1203 = vmatprep.mubr.f32.mxu0 0.0
    %1204 = vmatmul.mubr.f32.gmra.mrb[0].mxu0 %v1125
    %v1205 = vpop.f32.mrb[0].mxu0
    %v1206 = vadd.f32 %v1119, %v1205
    %v1207 = vpop.f32.mrb[0].mxu0
    %v1208 = vadd.f32 %v1121, %v1207
    %1209 = vdwg.mxu0
    %s1210 = scalar_lea.vmem %s3, 384
    %v1211 = vld [vmem:[%s1210] sm:$0xff]
    %v1212 = vld [vmem:[%s1210 + $0x8] sm:$0xff]
    %v1213 = vld [vmem:[%s1210 + $0x10] sm:$0xff]
    %v1214 = vld [vmem:[%s1210 + $0x18] sm:$0xff]
    %v1215 = vld [vmem:[%s1210 + $0x20] sm:$0xff]
    %v1216 = vld [vmem:[%s1210 + $0x28] sm:$0xff]
    %v1217 = vld [vmem:[%s1210 + $0x30] sm:$0xff]
    %v1218 = vld [vmem:[%s1210 + $0x38] sm:$0xff]
    %v1219 = vld [vmem:[%s1210 + $0x40] sm:$0xff]
    %v1220 = vld [vmem:[%s1210 + $0x48] sm:$0xff]
    %v1221 = vld [vmem:[%s1210 + $0x50] sm:$0xff]
    %v1222 = vld [vmem:[%s1210 + $0x58] sm:$0xff]
    %v1223 = vld [vmem:[%s1210 + $0x60] sm:$0xff]
    %v1224 = vld [vmem:[%s1210 + $0x68] sm:$0xff]
    %v1225 = vld [vmem:[%s1210 + $0x70] sm:$0xff]
    %v1226 = vld [vmem:[%s1210 + $0x78] sm:$0xff]
    %v1227 = vld [vmem:[%s1210 + $0x80] sm:$0xff]
    %v1228 = vld [vmem:[%s1210 + $0x88] sm:$0xff]
    %v1229 = vld [vmem:[%s1210 + $0x90] sm:$0xff]
    %v1230 = vld [vmem:[%s1210 + $0x98] sm:$0xff]
    %v1231 = vld [vmem:[%s1210 + $0xa0] sm:$0xff]
    %v1232 = vld [vmem:[%s1210 + $0xa8] sm:$0xff]
    %v1233 = vld [vmem:[%s1210 + $0xb0] sm:$0x3]
    %v1234 = vld [vmem:[%s1210 + $0xb8] sm:$0x3]
    %v1235 = vrot.slane %v978, 2
    %v1236 = vrot.slane %v979, 2
    %v1237 = vsel %vm288, %v1235, %v1236
    %v1238 = vsel %vm1034, %v1237, 0
    %v1240 = vsel %vm1034, %v1236, 0
    %v1243 = vsel %vm1039, %v1233, 0
    %v1246 = vsel %vm1039, %v1234, 0
    %1248 = vmatprep.subr.mxu0 %v1212
    %1249 = vmatpush1.msra.mxu0 %v1211
    %1250 = vmatprep.subr.mxu0 %v1214
    %1251 = vmatpush1.msra.mxu0 %v1213
    %1252 = vmatprep.subr.mxu0 %v1216
    %1253 = vmatpush1.msra.mxu0 %v1215
    %1254 = vmatprep.subr.mxu0 %v1218
    %1255 = vmatpush1.msra.mxu0 %v1217
    %1256 = vmatprep.subr.mxu0 %v1220
    %1257 = vmatpush1.msra.mxu0 %v1219
    %1258 = vmatprep.subr.mxu0 %v1222
    %1259 = vmatpush1.msra.mxu0 %v1221
    %1260 = vmatprep.subr.mxu0 %v1224
    %1261 = vmatpush1.msra.mxu0 %v1223
    %1262 = vmatprep.subr.mxu0 %v1226
    %1263 = vmatpush1.msra.mxu0 %v1225
    %1264 = vmatprep.subr.mxu0 %v1228
    %1265 = vmatpush1.msra.mxu0 %v1227
    %1266 = vmatprep.subr.mxu0 %v1230
    %1267 = vmatpush1.msra.mxu0 %v1229
    %1268 = vmatprep.subr.mxu0 %v1232
    %1269 = vmatpush1.msra.mxu0 %v1231
    %1270 = vmatprep.subr.mxu0 %v1246
    %1271 = vmatpush1.msra.mxu0 %v1243
    %1272 = vmatprep.subr.mxu0 0.0
    %1273 = vmatpush1.msra.mxu0 0.0
    %1274 = vmatprep.subr.mxu0 0.0
    %1275 = vmatpush1.msra.mxu0 0.0
    %1276 = vmatprep.subr.mxu0 0.0
    %1277 = vmatpush1.msra.mxu0 0.0
    %1278 = vmatprep.subr.mxu0 0.0
    %1279 = vmatpush1.msra.mxu0 0.0
    %1280 = vmatprep.subr.mxu0 0.0
    %1281 = vmatpush1.msra.mxu0 0.0
    %1282 = vmatprep.subr.mxu0 0.0
    %1283 = vmatpush1.msra.mxu0 0.0
    %1284 = vmatprep.subr.mxu0 0.0
    %1285 = vmatpush1.msra.mxu0 0.0
    %1286 = vmatprep.subr.mxu0 0.0
    %1287 = vmatpush1.msra.mxu0 0.0
    %1288 = vmatprep.subr.mxu0 0.0
    %1289 = vmatpush1.msra.mxu0 0.0
    %1290 = vmatprep.subr.mxu0 0.0
    %1291 = vmatpush1.msra.mxu0 0.0
    %1292 = vmatprep.subr.mxu0 0.0
    %1293 = vmatpush1.msra.mxu0 0.0
    %1294 = vmatprep.subr.mxu0 0.0
    %1295 = vmatpush1.msra.mxu0 0.0
    %1296 = vmatprep.subr.mxu0 0.0
    %1297 = vmatpush1.msra.mxu0 0.0
    %1298 = vmatprep.subr.mxu0 0.0
    %1299 = vmatpush1.msra.mxu0 0.0
    %1300 = vmatprep.subr.mxu0 0.0
    %1301 = vmatpush1.msra.mxu0 0.0
    %1302 = vmatprep.subr.mxu0 0.0
    %1303 = vmatpush1.msra.mxu0 0.0
    %1304 = vmatprep.subr.mxu0 0.0
    %1305 = vmatpush1.msra.mxu0 0.0
    %1306 = vmatprep.subr.mxu0 0.0
    %1307 = vmatpush1.msra.mxu0 0.0
    %1308 = vmatprep.subr.mxu0 0.0
    %1309 = vmatpush1.msra.mxu0 0.0
    %1310 = vmatprep.subr.mxu0 0.0
    %1311 = vmatpush1.msra.mxu0 0.0
    %1312 = vmatprep.mubr.f32.mxu0 0.0
    %1313 = vmatmul.mubr.f32.gmra.mrb[0].mxu0 %v1238
    %v1314 = vpop.f32.mrb[0].mxu0
    %v1315 = vadd.f32 0.0, %v1314
    %v1316 = vpop.f32.mrb[0].mxu0
    %v1317 = vadd.f32 0.0, %v1316
    %1318 = vmatprep.mubr.f32.mxu0 0.0
    %1319 = vmatmul.mubr.f32.gmra.mrb[0].mxu0 %v1240
    %v1320 = vpop.f32.mrb[0].mxu0
    %v1321 = vadd.f32 0.0, %v1320
    %v1322 = vpop.f32.mrb[0].mxu0
    %v1323 = vadd.f32 0.0, %v1322
    %1324 = vdwg.mxu0
    %v1325 = vadd.f32 %v1200, %v1315
    %v1326 = vadd.f32 %v1202, %v1317
    %v1327 = vadd.f32 %v1206, %v1321
    %v1328 = vadd.f32 %v1208, %v1323
    %v1329 = vld [vmem:[%s4] sm:$0x3]
    %v1331 = vlaneseq
    %v1332 = vshrl.u32 %v1331, 7
    %v1333 = vsub.s32 0, %v1332
    %v1334 = vrot.slane %v1329, %v1333
    %v1335 = vlaneseq
    %v1336 = vshrl.u32 %v1335, 7
    %v1337 = vsub.s32 1, %v1336
    %v1338 = vrot.slane %v1329, %v1337
    %v1341 = vadd.f32 %v1325, %v1334
    %v1342 = vadd.f32 %v1326, %v1338
    %v1343 = vadd.f32 %v1327, %v1334
    %v1344 = vadd.f32 %v1328, %v1338
    %v1345 = vmax.f32 %v1341, 0.0
    %v1346 = vmax.f32 %v1342, 0.0
    %v1347 = vmax.f32 %v1343, 0.0
    %v1348 = vmax.f32 %v1344, 0.0
    %v1349 = vld [vmem:[%s7] sm:$0x3f]
    %vm1350 = vcmask 105472
    %v1352 = vsel %vm1350, %v1349, 0
    %vm1354 = vcmask 1044480
    %v1356 = vsel %vm1354, %v1347, 0
    %v1359 = vsel %vm1354, %v1348, 0
    %1361 = vmatprep.subr.mxu0 %v1346
    %1362 = vmatpush1.msra.mxu0 %v1345
    %1363 = vmatprep.subr.mxu0 %v1359
    %1364 = vmatpush1.msra.mxu0 %v1356
    %1365 = vmatprep.subr.mxu0 0.0
    %1366 = vmatpush1.msra.mxu0 0.0
    %1367 = vmatprep.subr.mxu0 0.0
    %1368 = vmatpush1.msra.mxu0 0.0
    %1369 = vmatprep.subr.mxu0 0.0
    %1370 = vmatpush1.msra.mxu0 0.0
    %1371 = vmatprep.subr.mxu0 0.0
    %1372 = vmatpush1.msra.mxu0 0.0
    %1373 = vmatprep.subr.mxu0 0.0
    %1374 = vmatpush1.msra.mxu0 0.0
    %1375 = vmatprep.subr.mxu0 0.0
    %1376 = vmatpush1.msra.mxu0 0.0
    %1377 = vmatprep.subr.mxu0 0.0
    %1378 = vmatpush1.msra.mxu0 0.0
    %1379 = vmatprep.subr.mxu0 0.0
    %1380 = vmatpush1.msra.mxu0 0.0
    %1381 = vmatprep.subr.mxu0 0.0
    %1382 = vmatpush1.msra.mxu0 0.0
    %1383 = vmatprep.subr.mxu0 0.0
    %1384 = vmatpush1.msra.mxu0 0.0
    %1385 = vmatprep.subr.mxu0 0.0
    %1386 = vmatpush1.msra.mxu0 0.0
    %1387 = vmatprep.subr.mxu0 0.0
    %1388 = vmatpush1.msra.mxu0 0.0
    %1389 = vmatprep.subr.mxu0 0.0
    %1390 = vmatpush1.msra.mxu0 0.0
    %1391 = vmatprep.subr.mxu0 0.0
    %1392 = vmatpush1.msra.mxu0 0.0
    %1393 = vmatprep.subr.mxu0 0.0
    %1394 = vmatpush1.msra.mxu0 0.0
    %1395 = vmatprep.subr.mxu0 0.0
    %1396 = vmatpush1.msra.mxu0 0.0
    %1397 = vmatprep.subr.mxu0 0.0
    %1398 = vmatpush1.msra.mxu0 0.0
    %1399 = vmatprep.subr.mxu0 0.0
    %1400 = vmatpush1.msra.mxu0 0.0
    %1401 = vmatprep.subr.mxu0 0.0
    %1402 = vmatpush1.msra.mxu0 0.0
    %1403 = vmatprep.subr.mxu0 0.0
    %1404 = vmatpush1.msra.mxu0 0.0
    %1405 = vmatprep.subr.mxu0 0.0
    %1406 = vmatpush1.msra.mxu0 0.0
    %1407 = vmatprep.subr.mxu0 0.0
    %1408 = vmatpush1.msra.mxu0 0.0
    %1409 = vmatprep.subr.mxu0 0.0
    %1410 = vmatpush1.msra.mxu0 0.0
    %1411 = vmatprep.subr.mxu0 0.0
    %1412 = vmatpush1.msra.mxu0 0.0
    %1413 = vmatprep.subr.mxu0 0.0
    %1414 = vmatpush1.msra.mxu0 0.0
    %1415 = vmatprep.subr.mxu0 0.0
    %1416 = vmatpush1.msra.mxu0 0.0
    %1417 = vmatprep.subr.mxu0 0.0
    %1418 = vmatpush1.msra.mxu0 0.0
    %1419 = vmatprep.subr.mxu0 0.0
    %1420 = vmatpush1.msra.mxu0 0.0
    %1421 = vmatprep.subr.mxu0 0.0
    %1422 = vmatpush1.msra.mxu0 0.0
    %1423 = vmatprep.subr.mxu0 0.0
    %1424 = vmatpush1.msra.mxu0 0.0
    %1425 = vmatprep.mubr.f32.mxu0 0.0
    %1426 = vmatmul.mubr.f32.gmra.mrb[0].mxu0 %v1352
    %v1427 = vpop.f32.mrb[0].mxu0
    %v1428 = vadd.f32 0.0, %v1427
    %v1429 = vpop.f32.mrb[0].mxu0
    %v1430 = vadd.f32 0.0, %v1429
    %1431 = vdwg.mxu0
    %s1432 = scalar_lea.vmem %s7, 8
    %v1433 = vld [vmem:[%s1432] sm:$0x3f]
    %v1435 = vsel %vm1350, %v1433, 0
    %1437 = vmatprep.subr.mxu0 %v1346
    %1438 = vmatpush1.msra.mxu0 %v1345
    %1439 = vmatprep.subr.mxu0 %v1359
    %1440 = vmatpush1.msra.mxu0 %v1356
    %1441 = vmatprep.subr.mxu0 0.0
    %1442 = vmatpush1.msra.mxu0 0.0
    %1443 = vmatprep.subr.mxu0 0.0
    %1444 = vmatpush1.msra.mxu0 0.0
    %1445 = vmatprep.subr.mxu0 0.0
    %1446 = vmatpush1.msra.mxu0 0.0
    %1447 = vmatprep.subr.mxu0 0.0
    %1448 = vmatpush1.msra.mxu0 0.0
    %1449 = vmatprep.subr.mxu0 0.0
    %1450 = vmatpush1.msra.mxu0 0.0
    %1451 = vmatprep.subr.mxu0 0.0
    %1452 = vmatpush1.msra.mxu0 0.0
    %1453 = vmatprep.subr.mxu0 0.0
    %1454 = vmatpush1.msra.mxu0 0.0
    %1455 = vmatprep.subr.mxu0 0.0
    %1456 = vmatpush1.msra.mxu0 0.0
    %1457 = vmatprep.subr.mxu0 0.0
    %1458 = vmatpush1.msra.mxu0 0.0
    %1459 = vmatprep.subr.mxu0 0.0
    %1460 = vmatpush1.msra.mxu0 0.0
    %1461 = vmatprep.subr.mxu0 0.0
    %1462 = vmatpush1.msra.mxu0 0.0
    %1463 = vmatprep.subr.mxu0 0.0
    %1464 = vmatpush1.msra.mxu0 0.0
    %1465 = vmatprep.subr.mxu0 0.0
    %1466 = vmatpush1.msra.mxu0 0.0
    %1467 = vmatprep.subr.mxu0 0.0
    %1468 = vmatpush1.msra.mxu0 0.0
    %1469 = vmatprep.subr.mxu0 0.0
    %1470 = vmatpush1.msra.mxu0 0.0
    %1471 = vmatprep.subr.mxu0 0.0
    %1472 = vmatpush1.msra.mxu0 0.0
    %1473 = vmatprep.subr.mxu0 0.0
    %1474 = vmatpush1.msra.mxu0 0.0
    %1475 = vmatprep.subr.mxu0 0.0
    %1476 = vmatpush1.msra.mxu0 0.0
    %1477 = vmatprep.subr.mxu0 0.0
    %1478 = vmatpush1.msra.mxu0 0.0
    %1479 = vmatprep.subr.mxu0 0.0
    %1480 = vmatpush1.msra.mxu0 0.0
    %1481 = vmatprep.subr.mxu0 0.0
    %1482 = vmatpush1.msra.mxu0 0.0
    %1483 = vmatprep.subr.mxu0 0.0
    %1484 = vmatpush1.msra.mxu0 0.0
    %1485 = vmatprep.subr.mxu0 0.0
    %1486 = vmatpush1.msra.mxu0 0.0
    %1487 = vmatprep.subr.mxu0 0.0
    %1488 = vmatpush1.msra.mxu0 0.0
    %1489 = vmatprep.subr.mxu0 0.0
    %1490 = vmatpush1.msra.mxu0 0.0
    %1491 = vmatprep.subr.mxu0 0.0
    %1492 = vmatpush1.msra.mxu0 0.0
    %1493 = vmatprep.subr.mxu0 0.0
    %1494 = vmatpush1.msra.mxu0 0.0
    %1495 = vmatprep.subr.mxu0 0.0
    %1496 = vmatpush1.msra.mxu0 0.0
    %1497 = vmatprep.subr.mxu0 0.0
    %1498 = vmatpush1.msra.mxu0 0.0
    %1499 = vmatprep.subr.mxu0 0.0
    %1500 = vmatpush1.msra.mxu0 0.0
    %1501 = vmatprep.mubr.f32.mxu0 0.0
    %1502 = vmatmul.mubr.f32.gmra.mrb[0].mxu0 %v1435
    %v1503 = vpop.f32.mrb[0].mxu0
    %v1504 = vadd.f32 0.0, %v1503
    %v1505 = vpop.f32.mrb[0].mxu0
    %v1506 = vadd.f32 0.0, %v1505
    %1507 = vdwg.mxu0
    %v1508 = vld [vmem:[%s8] sm:$0xff]
    %v1509 = vld [vmem:[%s8 + $0x8] sm:$0xff]
    %v1510 = vld [vmem:[%s8 + $0x10] sm:$0xff]
    %v1511 = vld [vmem:[%s8 + $0x18] sm:$0xff]
    %v1512 = vld [vmem:[%s8 + $0x20] sm:$0xff]
    %v1513 = vld [vmem:[%s8 + $0x28] sm:$0xff]
    %v1514 = vld [vmem:[%s8 + $0x30] sm:$0xff]
    %v1515 = vld [vmem:[%s8 + $0x38] sm:$0xff]
    %v1516 = vld [vmem:[%s8 + $0x40] sm:$0xff]
    %v1517 = vld [vmem:[%s8 + $0x48] sm:$0xff]
    %v1518 = vld [vmem:[%s8 + $0x50] sm:$0xff]
    %v1519 = vld [vmem:[%s8 + $0x58] sm:$0xff]
    %v1520 = vld [vmem:[%s8 + $0x60] sm:$0xff]
    %v1521 = vld [vmem:[%s8 + $0x68] sm:$0xff]
    %v1522 = vld [vmem:[%s8 + $0x70] sm:$0xff]
    %v1523 = vld [vmem:[%s8 + $0x78] sm:$0xff]
    %v1524 = vld [vmem:[%s8 + $0x80] sm:$0xff]
    %v1525 = vld [vmem:[%s8 + $0x88] sm:$0xff]
    %v1526 = vld [vmem:[%s8 + $0x90] sm:$0xff]
    %v1527 = vld [vmem:[%s8 + $0x98] sm:$0xff]
    %v1528 = vld [vmem:[%s8 + $0xa0] sm:$0xff]
    %v1529 = vld [vmem:[%s8 + $0xa8] sm:$0xff]
    %v1530 = vld [vmem:[%s8 + $0xb0] sm:$0xff]
    %v1531 = vld [vmem:[%s8 + $0xb8] sm:$0xff]
    %v1532 = vld [vmem:[%s8 + $0xc0] sm:$0xff]
    %v1533 = vld [vmem:[%s8 + $0xc8] sm:$0xff]
    %vm1534 = vcmask 654336
    %v1536 = vsel %vm1534, %v1430, 0
    %1538 = vmatprep.subr.mxu0 0.0
    %1539 = vmatpush1.msra.mxu0 %v1508
    %1540 = vmatprep.subr.mxu0 0.0
    %1541 = vmatpush1.msra.mxu0 %v1509
    %1542 = vmatprep.subr.mxu0 0.0
    %1543 = vmatpush1.msra.mxu0 %v1510
    %1544 = vmatprep.subr.mxu0 0.0
    %1545 = vmatpush1.msra.mxu0 %v1511
    %1546 = vmatprep.subr.mxu0 0.0
    %1547 = vmatpush1.msra.mxu0 %v1512
    %1548 = vmatprep.subr.mxu0 0.0
    %1549 = vmatpush1.msra.mxu0 %v1513
    %1550 = vmatprep.subr.mxu0 0.0
    %1551 = vmatpush1.msra.mxu0 %v1514
    %1552 = vmatprep.subr.mxu0 0.0
    %1553 = vmatpush1.msra.mxu0 %v1515
    %1554 = vmatprep.subr.mxu0 0.0
    %1555 = vmatpush1.msra.mxu0 %v1516
    %1556 = vmatprep.subr.mxu0 0.0
    %1557 = vmatpush1.msra.mxu0 %v1517
    %1558 = vmatprep.subr.mxu0 0.0
    %1559 = vmatpush1.msra.mxu0 %v1518
    %1560 = vmatprep.subr.mxu0 0.0
    %1561 = vmatpush1.msra.mxu0 %v1519
    %1562 = vmatprep.subr.mxu0 0.0
    %1563 = vmatpush1.msra.mxu0 %v1520
    %1564 = vmatprep.subr.mxu0 0.0
    %1565 = vmatpush1.msra.mxu0 %v1521
    %1566 = vmatprep.subr.mxu0 0.0
    %1567 = vmatpush1.msra.mxu0 %v1522
    %1568 = vmatprep.subr.mxu0 0.0
    %1569 = vmatpush1.msra.mxu0 %v1523
    %1570 = vmatprep.subr.mxu0 0.0
    %1571 = vmatpush1.msra.mxu0 %v1524
    %1572 = vmatprep.subr.mxu0 0.0
    %1573 = vmatpush1.msra.mxu0 %v1525
    %1574 = vmatprep.subr.mxu0 0.0
    %1575 = vmatpush1.msra.mxu0 %v1526
    %1576 = vmatprep.subr.mxu0 0.0
    %1577 = vmatpush1.msra.mxu0 %v1527
    %1578 = vmatprep.subr.mxu0 0.0
    %1579 = vmatpush1.msra.mxu0 %v1528
    %1580 = vmatprep.subr.mxu0 0.0
    %1581 = vmatpush1.msra.mxu0 %v1529
    %1582 = vmatprep.subr.mxu0 0.0
    %1583 = vmatpush1.msra.mxu0 %v1530
    %1584 = vmatprep.subr.mxu0 0.0
    %1585 = vmatpush1.msra.mxu0 %v1531
    %1586 = vmatprep.subr.mxu0 0.0
    %1587 = vmatpush1.msra.mxu0 %v1532
    %1588 = vmatprep.subr.mxu0 0.0
    %1589 = vmatpush1.msra.mxu0 %v1533
    %1590 = vmatprep.subr.mxu0 0.0
    %1591 = vmatpush1.msra.mxu0 0.0
    %1592 = vmatprep.subr.mxu0 0.0
    %1593 = vmatpush1.msra.mxu0 0.0
    %1594 = vmatprep.subr.mxu0 0.0
    %1595 = vmatpush1.msra.mxu0 0.0
    %1596 = vmatprep.subr.mxu0 0.0
    %1597 = vmatpush1.msra.mxu0 0.0
    %1598 = vmatprep.subr.mxu0 0.0
    %1599 = vmatpush1.msra.mxu0 0.0
    %1600 = vmatprep.subr.mxu0 0.0
    %1601 = vmatpush1.msra.mxu0 0.0
    %1602 = vmatprep.mubr.f32.mxu0 %v1536
    %1603 = vmatmul.mubr.f32.gmra.mrb[0].mxu0 %v1428
    %v1604 = vpop.f32.mrb[0].mxu0
    %v1605 = vadd.f32 0.0, %v1604
    %v1606 = vpop.f32.mrb[0].mxu0
    %1607 = vdwg.mxu0
    %s1608 = scalar_lea.vmem %s8, 208
    %v1609 = vld [vmem:[%s1608] sm:$0xff]
    %v1610 = vld [vmem:[%s1608 + $0x8] sm:$0xff]
    %v1611 = vld [vmem:[%s1608 + $0x10] sm:$0xff]
    %v1612 = vld [vmem:[%s1608 + $0x18] sm:$0xff]
    %v1613 = vld [vmem:[%s1608 + $0x20] sm:$0xff]
    %v1614 = vld [vmem:[%s1608 + $0x28] sm:$0xff]
    %v1615 = vld [vmem:[%s1608 + $0x30] sm:$0xff]
    %v1616 = vld [vmem:[%s1608 + $0x38] sm:$0xff]
    %v1617 = vld [vmem:[%s1608 + $0x40] sm:$0xff]
    %v1618 = vld [vmem:[%s1608 + $0x48] sm:$0xff]
    %v1619 = vld [vmem:[%s1608 + $0x50] sm:$0xff]
    %v1620 = vld [vmem:[%s1608 + $0x58] sm:$0xff]
    %v1621 = vld [vmem:[%s1608 + $0x60] sm:$0xff]
    %v1622 = vld [vmem:[%s1608 + $0x68] sm:$0xff]
    %v1623 = vld [vmem:[%s1608 + $0x70] sm:$0xff]
    %v1624 = vld [vmem:[%s1608 + $0x78] sm:$0xff]
    %v1625 = vld [vmem:[%s1608 + $0x80] sm:$0xff]
    %v1626 = vld [vmem:[%s1608 + $0x88] sm:$0xff]
    %v1627 = vld [vmem:[%s1608 + $0x90] sm:$0xff]
    %v1628 = vld [vmem:[%s1608 + $0x98] sm:$0xff]
    %v1629 = vld [vmem:[%s1608 + $0xa0] sm:$0xff]
    %v1630 = vld [vmem:[%s1608 + $0xa8] sm:$0xff]
    %v1631 = vld [vmem:[%s1608 + $0xb0] sm:$0xff]
    %v1632 = vld [vmem:[%s1608 + $0xb8] sm:$0xff]
    %v1633 = vld [vmem:[%s1608 + $0xc0] sm:$0xff]
    %v1634 = vld [vmem:[%s1608 + $0xc8] sm:$0xff]
    %1635 = vmatprep.subr.mxu0 0.0
    %1636 = vmatpush1.msra.mxu0 %v1609
    %1637 = vmatprep.subr.mxu0 0.0
    %1638 = vmatpush1.msra.mxu0 %v1610
    %1639 = vmatprep.subr.mxu0 0.0
    %1640 = vmatpush1.msra.mxu0 %v1611
    %1641 = vmatprep.subr.mxu0 0.0
    %1642 = vmatpush1.msra.mxu0 %v1612
    %1643 = vmatprep.subr.mxu0 0.0
    %1644 = vmatpush1.msra.mxu0 %v1613
    %1645 = vmatprep.subr.mxu0 0.0
    %1646 = vmatpush1.msra.mxu0 %v1614
    %1647 = vmatprep.subr.mxu0 0.0
    %1648 = vmatpush1.msra.mxu0 %v1615
    %1649 = vmatprep.subr.mxu0 0.0
    %1650 = vmatpush1.msra.mxu0 %v1616
    %1651 = vmatprep.subr.mxu0 0.0
    %1652 = vmatpush1.msra.mxu0 %v1617
    %1653 = vmatprep.subr.mxu0 0.0
    %1654 = vmatpush1.msra.mxu0 %v1618
    %1655 = vmatprep.subr.mxu0 0.0
    %1656 = vmatpush1.msra.mxu0 %v1619
    %1657 = vmatprep.subr.mxu0 0.0
    %1658 = vmatpush1.msra.mxu0 %v1620
    %1659 = vmatprep.subr.mxu0 0.0
    %1660 = vmatpush1.msra.mxu0 %v1621
    %1661 = vmatprep.subr.mxu0 0.0
    %1662 = vmatpush1.msra.mxu0 %v1622
    %1663 = vmatprep.subr.mxu0 0.0
    %1664 = vmatpush1.msra.mxu0 %v1623
    %1665 = vmatprep.subr.mxu0 0.0
    %1666 = vmatpush1.msra.mxu0 %v1624
    %1667 = vmatprep.subr.mxu0 0.0
    %1668 = vmatpush1.msra.mxu0 %v1625
    %1669 = vmatprep.subr.mxu0 0.0
    %1670 = vmatpush1.msra.mxu0 %v1626
    %1671 = vmatprep.subr.mxu0 0.0
    %1672 = vmatpush1.msra.mxu0 %v1627
    %1673 = vmatprep.subr.mxu0 0.0
    %1674 = vmatpush1.msra.mxu0 %v1628
    %1675 = vmatprep.subr.mxu0 0.0
    %1676 = vmatpush1.msra.mxu0 %v1629
    %1677 = vmatprep.subr.mxu0 0.0
    %1678 = vmatpush1.msra.mxu0 %v1630
    %1679 = vmatprep.subr.mxu0 0.0
    %1680 = vmatpush1.msra.mxu0 %v1631
    %1681 = vmatprep.subr.mxu0 0.0
    %1682 = vmatpush1.msra.mxu0 %v1632
    %1683 = vmatprep.subr.mxu0 0.0
    %1684 = vmatpush1.msra.mxu0 %v1633
    %1685 = vmatprep.subr.mxu0 0.0
    %1686 = vmatpush1.msra.mxu0 %v1634
    %1687 = vmatprep.subr.mxu0 0.0
    %1688 = vmatpush1.msra.mxu0 0.0
    %1689 = vmatprep.subr.mxu0 0.0
    %1690 = vmatpush1.msra.mxu0 0.0
    %1691 = vmatprep.subr.mxu0 0.0
    %1692 = vmatpush1.msra.mxu0 0.0
    %1693 = vmatprep.subr.mxu0 0.0
    %1694 = vmatpush1.msra.mxu0 0.0
    %1695 = vmatprep.subr.mxu0 0.0
    %1696 = vmatpush1.msra.mxu0 0.0
    %1697 = vmatprep.subr.mxu0 0.0
    %1698 = vmatpush1.msra.mxu0 0.0
    %1699 = vmatprep.mubr.f32.mxu0 %v1536
    %1700 = vmatmul.mubr.f32.gmra.mrb[0].mxu0 %v1428
    %v1701 = vpop.f32.mrb[0].mxu0
    %v1702 = vadd.f32 0.0, %v1701
    %v1703 = vpop.f32.mrb[0].mxu0
    %1704 = vdwg.mxu0
    %v1705 = vmax.f32 %v1605, %v1702
    %v1707 = vsel %vm1534, %v1506, 0
    %1709 = vmatprep.subr.mxu0 0.0
    %1710 = vmatpush1.msra.mxu0 %v1508
    %1711 = vmatprep.subr.mxu0 0.0
    %1712 = vmatpush1.msra.mxu0 %v1509
    %1713 = vmatprep.subr.mxu0 0.0
    %1714 = vmatpush1.msra.mxu0 %v1510
    %1715 = vmatprep.subr.mxu0 0.0
    %1716 = vmatpush1.msra.mxu0 %v1511
    %1717 = vmatprep.subr.mxu0 0.0
    %1718 = vmatpush1.msra.mxu0 %v1512
    %1719 = vmatprep.subr.mxu0 0.0
    %1720 = vmatpush1.msra.mxu0 %v1513
    %1721 = vmatprep.subr.mxu0 0.0
    %1722 = vmatpush1.msra.mxu0 %v1514
    %1723 = vmatprep.subr.mxu0 0.0
    %1724 = vmatpush1.msra.mxu0 %v1515
    %1725 = vmatprep.subr.mxu0 0.0
    %1726 = vmatpush1.msra.mxu0 %v1516
    %1727 = vmatprep.subr.mxu0 0.0
    %1728 = vmatpush1.msra.mxu0 %v1517
    %1729 = vmatprep.subr.mxu0 0.0
    %1730 = vmatpush1.msra.mxu0 %v1518
    %1731 = vmatprep.subr.mxu0 0.0
    %1732 = vmatpush1.msra.mxu0 %v1519
    %1733 = vmatprep.subr.mxu0 0.0
    %1734 = vmatpush1.msra.mxu0 %v1520
    %1735 = vmatprep.subr.mxu0 0.0
    %1736 = vmatpush1.msra.mxu0 %v1521
    %1737 = vmatprep.subr.mxu0 0.0
    %1738 = vmatpush1.msra.mxu0 %v1522
    %1739 = vmatprep.subr.mxu0 0.0
    %1740 = vmatpush1.msra.mxu0 %v1523
    %1741 = vmatprep.subr.mxu0 0.0
    %1742 = vmatpush1.msra.mxu0 %v1524
    %1743 = vmatprep.subr.mxu0 0.0
    %1744 = vmatpush1.msra.mxu0 %v1525
    %1745 = vmatprep.subr.mxu0 0.0
    %1746 = vmatpush1.msra.mxu0 %v1526
    %1747 = vmatprep.subr.mxu0 0.0
    %1748 = vmatpush1.msra.mxu0 %v1527
    %1749 = vmatprep.subr.mxu0 0.0
    %1750 = vmatpush1.msra.mxu0 %v1528
    %1751 = vmatprep.subr.mxu0 0.0
    %1752 = vmatpush1.msra.mxu0 %v1529
    %1753 = vmatprep.subr.mxu0 0.0
    %1754 = vmatpush1.msra.mxu0 %v1530
    %1755 = vmatprep.subr.mxu0 0.0
    %1756 = vmatpush1.msra.mxu0 %v1531
    %1757 = vmatprep.subr.mxu0 0.0
    %1758 = vmatpush1.msra.mxu0 %v1532
    %1759 = vmatprep.subr.mxu0 0.0
    %1760 = vmatpush1.msra.mxu0 %v1533
    %1761 = vmatprep.subr.mxu0 0.0
    %1762 = vmatpush1.msra.mxu0 0.0
    %1763 = vmatprep.subr.mxu0 0.0
    %1764 = vmatpush1.msra.mxu0 0.0
    %1765 = vmatprep.subr.mxu0 0.0
    %1766 = vmatpush1.msra.mxu0 0.0
    %1767 = vmatprep.subr.mxu0 0.0
    %1768 = vmatpush1.msra.mxu0 0.0
    %1769 = vmatprep.subr.mxu0 0.0
    %1770 = vmatpush1.msra.mxu0 0.0
    %1771 = vmatprep.subr.mxu0 0.0
    %1772 = vmatpush1.msra.mxu0 0.0
    %1773 = vmatprep.mubr.f32.mxu0 %v1707
    %1774 = vmatmul.mubr.f32.gmra.mrb[0].mxu0 %v1504
    %v1775 = vpop.f32.mrb[0].mxu0
    %v1776 = vadd.f32 0.0, %v1775
    %v1777 = vpop.f32.mrb[0].mxu0
    %1778 = vdwg.mxu0
    %v1779 = vmax.f32 %v1705, %v1776
    %1780 = vmatprep.subr.mxu0 0.0
    %1781 = vmatpush1.msra.mxu0 %v1609
    %1782 = vmatprep.subr.mxu0 0.0
    %1783 = vmatpush1.msra.mxu0 %v1610
    %1784 = vmatprep.subr.mxu0 0.0
    %1785 = vmatpush1.msra.mxu0 %v1611
    %1786 = vmatprep.subr.mxu0 0.0
    %1787 = vmatpush1.msra.mxu0 %v1612
    %1788 = vmatprep.subr.mxu0 0.0
    %1789 = vmatpush1.msra.mxu0 %v1613
    %1790 = vmatprep.subr.mxu0 0.0
    %1791 = vmatpush1.msra.mxu0 %v1614
    %1792 = vmatprep.subr.mxu0 0.0
    %1793 = vmatpush1.msra.mxu0 %v1615
    %1794 = vmatprep.subr.mxu0 0.0
    %1795 = vmatpush1.msra.mxu0 %v1616
    %1796 = vmatprep.subr.mxu0 0.0
    %1797 = vmatpush1.msra.mxu0 %v1617
    %1798 = vmatprep.subr.mxu0 0.0
    %1799 = vmatpush1.msra.mxu0 %v1618
    %1800 = vmatprep.subr.mxu0 0.0
    %1801 = vmatpush1.msra.mxu0 %v1619
    %1802 = vmatprep.subr.mxu0 0.0
    %1803 = vmatpush1.msra.mxu0 %v1620
    %1804 = vmatprep.subr.mxu0 0.0
    %1805 = vmatpush1.msra.mxu0 %v1621
    %1806 = vmatprep.subr.mxu0 0.0
    %1807 = vmatpush1.msra.mxu0 %v1622
    %1808 = vmatprep.subr.mxu0 0.0
    %1809 = vmatpush1.msra.mxu0 %v1623
    %1810 = vmatprep.subr.mxu0 0.0
    %1811 = vmatpush1.msra.mxu0 %v1624
    %1812 = vmatprep.subr.mxu0 0.0
    %1813 = vmatpush1.msra.mxu0 %v1625
    %1814 = vmatprep.subr.mxu0 0.0
    %1815 = vmatpush1.msra.mxu0 %v1626
    %1816 = vmatprep.subr.mxu0 0.0
    %1817 = vmatpush1.msra.mxu0 %v1627
    %1818 = vmatprep.subr.mxu0 0.0
    %1819 = vmatpush1.msra.mxu0 %v1628
    %1820 = vmatprep.subr.mxu0 0.0
    %1821 = vmatpush1.msra.mxu0 %v1629
    %1822 = vmatprep.subr.mxu0 0.0
    %1823 = vmatpush1.msra.mxu0 %v1630
    %1824 = vmatprep.subr.mxu0 0.0
    %1825 = vmatpush1.msra.mxu0 %v1631
    %1826 = vmatprep.subr.mxu0 0.0
    %1827 = vmatpush1.msra.mxu0 %v1632
    %1828 = vmatprep.subr.mxu0 0.0
    %1829 = vmatpush1.msra.mxu0 %v1633
    %1830 = vmatprep.subr.mxu0 0.0
    %1831 = vmatpush1.msra.mxu0 %v1634
    %1832 = vmatprep.subr.mxu0 0.0
    %1833 = vmatpush1.msra.mxu0 0.0
    %1834 = vmatprep.subr.mxu0 0.0
    %1835 = vmatpush1.msra.mxu0 0.0
    %1836 = vmatprep.subr.mxu0 0.0
    %1837 = vmatpush1.msra.mxu0 0.0
    %1838 = vmatprep.subr.mxu0 0.0
    %1839 = vmatpush1.msra.mxu0 0.0
    %1840 = vmatprep.subr.mxu0 0.0
    %1841 = vmatpush1.msra.mxu0 0.0
    %1842 = vmatprep.subr.mxu0 0.0
    %1843 = vmatpush1.msra.mxu0 0.0
    %1844 = vmatprep.mubr.f32.mxu0 %v1707
    %1845 = vmatmul.mubr.f32.gmra.mrb[0].mxu0 %v1504
    %v1846 = vpop.f32.mrb[0].mxu0
    %v1847 = vadd.f32 0.0, %v1846
    %v1848 = vpop.f32.mrb[0].mxu0
    %1849 = vdwg.mxu0
    %v1850 = vmax.f32 %v1779, %v1847
    %v1851 = vld [vmem:[%s10] sm:$0x1]
    %v1852 = vld [vmem:[%s9] sm:$0xff]
    %v1853 = vld [vmem:[%s9 + $0x8] sm:$0xff]
    %v1854 = vld [vmem:[%s9 + $0x10] sm:$0xff]
    %v1855 = vld [vmem:[%s9 + $0x18] sm:$0xff]
    %v1856 = vld [vmem:[%s9 + $0x20] sm:$0xff]
    %v1857 = vld [vmem:[%s9 + $0x28] sm:$0xff]
    %v1858 = vld [vmem:[%s9 + $0x30] sm:$0xff]
    %v1859 = vld [vmem:[%s9 + $0x38] sm:$0xff]
    %v1860 = vld [vmem:[%s9 + $0x40] sm:$0xff]
    %v1861 = vld [vmem:[%s9 + $0x48] sm:$0xff]
    %v1862 = vld [vmem:[%s9 + $0x50] sm:$0xff]
    %v1863 = vld [vmem:[%s9 + $0x58] sm:$0xff]
    %vm1864 = vcmask 785408
    %v1866 = vsel %vm1864, %v1850, 0
    %1868 = vmatprep.subr.mxu0 0.0
    %1869 = vmatpush1.msra.mxu0 %v1852
    %1870 = vmatprep.subr.mxu0 0.0
    %1871 = vmatpush1.msra.mxu0 %v1853
    %1872 = vmatprep.subr.mxu0 0.0
    %1873 = vmatpush1.msra.mxu0 %v1854
    %1874 = vmatprep.subr.mxu0 0.0
    %1875 = vmatpush1.msra.mxu0 %v1855
    %1876 = vmatprep.subr.mxu0 0.0
    %1877 = vmatpush1.msra.mxu0 %v1856
    %1878 = vmatprep.subr.mxu0 0.0
    %1879 = vmatpush1.msra.mxu0 %v1857
    %1880 = vmatprep.subr.mxu0 0.0
    %1881 = vmatpush1.msra.mxu0 %v1858
    %1882 = vmatprep.subr.mxu0 0.0
    %1883 = vmatpush1.msra.mxu0 %v1859
    %1884 = vmatprep.subr.mxu0 0.0
    %1885 = vmatpush1.msra.mxu0 %v1860
    %1886 = vmatprep.subr.mxu0 0.0
    %1887 = vmatpush1.msra.mxu0 %v1861
    %1888 = vmatprep.subr.mxu0 0.0
    %1889 = vmatpush1.msra.mxu0 %v1862
    %1890 = vmatprep.subr.mxu0 0.0
    %1891 = vmatpush1.msra.mxu0 %v1863
    %1892 = vmatprep.subr.mxu0 0.0
    %1893 = vmatpush1.msra.mxu0 0.0
    %1894 = vmatprep.subr.mxu0 0.0
    %1895 = vmatpush1.msra.mxu0 0.0
    %1896 = vmatprep.subr.mxu0 0.0
    %1897 = vmatpush1.msra.mxu0 0.0
    %1898 = vmatprep.subr.mxu0 0.0
    %1899 = vmatpush1.msra.mxu0 0.0
    %1900 = vmatprep.subr.mxu0 0.0
    %1901 = vmatpush1.msra.mxu0 0.0
    %1902 = vmatprep.subr.mxu0 0.0
    %1903 = vmatpush1.msra.mxu0 0.0
    %1904 = vmatprep.subr.mxu0 0.0
    %1905 = vmatpush1.msra.mxu0 0.0
    %1906 = vmatprep.subr.mxu0 0.0
    %1907 = vmatpush1.msra.mxu0 0.0
    %1908 = vmatprep.subr.mxu0 0.0
    %1909 = vmatpush1.msra.mxu0 0.0
    %1910 = vmatprep.subr.mxu0 0.0
    %1911 = vmatpush1.msra.mxu0 0.0
    %1912 = vmatprep.subr.mxu0 0.0
    %1913 = vmatpush1.msra.mxu0 0.0
    %1914 = vmatprep.subr.mxu0 0.0
    %1915 = vmatpush1.msra.mxu0 0.0
    %1916 = vmatprep.subr.mxu0 0.0
    %1917 = vmatpush1.msra.mxu0 0.0
    %1918 = vmatprep.subr.mxu0 0.0
    %1919 = vmatpush1.msra.mxu0 0.0
    %1920 = vmatprep.subr.mxu0 0.0
    %1921 = vmatpush1.msra.mxu0 0.0
    %1922 = vmatprep.subr.mxu0 0.0
    %1923 = vmatpush1.msra.mxu0 0.0
    %1924 = vmatprep.subr.mxu0 0.0
    %1925 = vmatpush1.msra.mxu0 0.0
    %1926 = vmatprep.subr.mxu0 0.0
    %1927 = vmatpush1.msra.mxu0 0.0
    %1928 = vmatprep.subr.mxu0 0.0
    %1929 = vmatpush1.msra.mxu0 0.0
    %1930 = vmatprep.subr.mxu0 0.0
    %1931 = vmatpush1.msra.mxu0 0.0
    %1932 = vmatprep.mubr.f32.mxu0 0.0
    %1933 = vmatmul.mubr.f32.gmra.mrb[0].mxu0 %v1866
    %v1934 = vpop.f32.mrb[0].mxu0
    %v1935 = vadd.f32 0.0, %v1934
    %v1936 = vpop.f32.mrb[0].mxu0
    %1937 = vdwg.mxu0
    %v1938 = vadd.f32 %v1851, %v1935
    %s1939 = scalar_lea.vmem %s9, 96
    %v1940 = vld [vmem:[%s1939] sm:$0xff]
    %v1941 = vld [vmem:[%s1939 + $0x8] sm:$0xff]
    %v1942 = vld [vmem:[%s1939 + $0x10] sm:$0xff]
    %v1943 = vld [vmem:[%s1939 + $0x18] sm:$0xff]
    %v1944 = vld [vmem:[%s1939 + $0x20] sm:$0xff]
    %v1945 = vld [vmem:[%s1939 + $0x28] sm:$0xff]
    %v1946 = vld [vmem:[%s1939 + $0x30] sm:$0xff]
    %v1947 = vld [vmem:[%s1939 + $0x38] sm:$0xff]
    %v1948 = vld [vmem:[%s1939 + $0x40] sm:$0xff]
    %v1949 = vld [vmem:[%s1939 + $0x48] sm:$0xff]
    %v1950 = vld [vmem:[%s1939 + $0x50] sm:$0xff]
    %v1951 = vld [vmem:[%s1939 + $0x58] sm:$0xff]
    %v1952 = vrot.slane %v1850, 1
    %v1953 = vsel %vm1864, %v1952, 0
    %1955 = vmatprep.subr.mxu0 0.0
    %1956 = vmatpush1.msra.mxu0 %v1940
    %1957 = vmatprep.subr.mxu0 0.0
    %1958 = vmatpush1.msra.mxu0 %v1941
    %1959 = vmatprep.subr.mxu0 0.0
    %1960 = vmatpush1.msra.mxu0 %v1942
    %1961 = vmatprep.subr.mxu0 0.0
    %1962 = vmatpush1.msra.mxu0 %v1943
    %1963 = vmatprep.subr.mxu0 0.0
    %1964 = vmatpush1.msra.mxu0 %v1944
    %1965 = vmatprep.subr.mxu0 0.0
    %1966 = vmatpush1.msra.mxu0 %v1945
    %1967 = vmatprep.subr.mxu0 0.0
    %1968 = vmatpush1.msra.mxu0 %v1946
    %1969 = vmatprep.subr.mxu0 0.0
    %1970 = vmatpush1.msra.mxu0 %v1947
    %1971 = vmatprep.subr.mxu0 0.0
    %1972 = vmatpush1.msra.mxu0 %v1948
    %1973 = vmatprep.subr.mxu0 0.0
    %1974 = vmatpush1.msra.mxu0 %v1949
    %1975 = vmatprep.subr.mxu0 0.0
    %1976 = vmatpush1.msra.mxu0 %v1950
    %1977 = vmatprep.subr.mxu0 0.0
    %1978 = vmatpush1.msra.mxu0 %v1951
    %1979 = vmatprep.subr.mxu0 0.0
    %1980 = vmatpush1.msra.mxu0 0.0
    %1981 = vmatprep.subr.mxu0 0.0
    %1982 = vmatpush1.msra.mxu0 0.0
    %1983 = vmatprep.subr.mxu0 0.0
    %1984 = vmatpush1.msra.mxu0 0.0
    %1985 = vmatprep.subr.mxu0 0.0
    %1986 = vmatpush1.msra.mxu0 0.0
    %1987 = vmatprep.subr.mxu0 0.0
    %1988 = vmatpush1.msra.mxu0 0.0
    %1989 = vmatprep.subr.mxu0 0.0
    %1990 = vmatpush1.msra.mxu0 0.0
    %1991 = vmatprep.subr.mxu0 0.0
    %1992 = vmatpush1.msra.mxu0 0.0
    %1993 = vmatprep.subr.mxu0 0.0
    %1994 = vmatpush1.msra.mxu0 0.0
    %1995 = vmatprep.subr.mxu0 0.0
    %1996 = vmatpush1.msra.mxu0 0.0
    %1997 = vmatprep.subr.mxu0 0.0
    %1998 = vmatpush1.msra.mxu0 0.0
    %1999 = vmatprep.subr.mxu0 0.0
    %2000 = vmatpush1.msra.mxu0 0.0
    %2001 = vmatprep.subr.mxu0 0.0
    %2002 = vmatpush1.msra.mxu0 0.0
    %2003 = vmatprep.subr.mxu0 0.0
    %2004 = vmatpush1.msra.mxu0 0.0
    %2005 = vmatprep.subr.mxu0 0.0
    %2006 = vmatpush1.msra.mxu0 0.0
    %2007 = vmatprep.subr.mxu0 0.0
    %2008 = vmatpush1.msra.mxu0 0.0
    %2009 = vmatprep.subr.mxu0 0.0
    %2010 = vmatpush1.msra.mxu0 0.0
    %2011 = vmatprep.subr.mxu0 0.0
    %2012 = vmatpush1.msra.mxu0 0.0
    %2013 = vmatprep.subr.mxu0 0.0
    %2014 = vmatpush1.msra.mxu0 0.0
    %2015 = vmatprep.subr.mxu0 0.0
    %2016 = vmatpush1.msra.mxu0 0.0
    %2017 = vmatprep.subr.mxu0 0.0
    %2018 = vmatpush1.msra.mxu0 0.0
    %2019 = vmatprep.mubr.f32.mxu0 0.0
    %2020 = vmatmul.mubr.f32.gmra.mrb[0].mxu0 %v1953
    %v2021 = vpop.f32.mrb[0].mxu0
    %v2022 = vadd.f32 0.0, %v2021
    %v2023 = vpop.f32.mrb[0].mxu0
    %2024 = vdwg.mxu0
    %v2025 = vadd.f32 %v1938, %v2022
    %s2026 = scalar_lea.vmem %s9, 192
    %v2027 = vld [vmem:[%s2026] sm:$0xff]
    %v2028 = vld [vmem:[%s2026 + $0x8] sm:$0xff]
    %v2029 = vld [vmem:[%s2026 + $0x10] sm:$0xff]
    %v2030 = vld [vmem:[%s2026 + $0x18] sm:$0xff]
    %v2031 = vld [vmem:[%s2026 + $0x20] sm:$0xff]
    %v2032 = vld [vmem:[%s2026 + $0x28] sm:$0xff]
    %v2033 = vld [vmem:[%s2026 + $0x30] sm:$0xff]
    %v2034 = vld [vmem:[%s2026 + $0x38] sm:$0xff]
    %v2035 = vld [vmem:[%s2026 + $0x40] sm:$0xff]
    %v2036 = vld [vmem:[%s2026 + $0x48] sm:$0xff]
    %v2037 = vld [vmem:[%s2026 + $0x50] sm:$0xff]
    %v2038 = vld [vmem:[%s2026 + $0x58] sm:$0xff]
    %v2039 = vrot.slane %v1850, 2
    %v2040 = vsel %vm1864, %v2039, 0
    %2042 = vmatprep.subr.mxu0 0.0
    %2043 = vmatpush1.msra.mxu0 %v2027
    %2044 = vmatprep.subr.mxu0 0.0
    %2045 = vmatpush1.msra.mxu0 %v2028
    %2046 = vmatprep.subr.mxu0 0.0
    %2047 = vmatpush1.msra.mxu0 %v2029
    %2048 = vmatprep.subr.mxu0 0.0
    %2049 = vmatpush1.msra.mxu0 %v2030
    %2050 = vmatprep.subr.mxu0 0.0
    %2051 = vmatpush1.msra.mxu0 %v2031
    %2052 = vmatprep.subr.mxu0 0.0
    %2053 = vmatpush1.msra.mxu0 %v2032
    %2054 = vmatprep.subr.mxu0 0.0
    %2055 = vmatpush1.msra.mxu0 %v2033
    %2056 = vmatprep.subr.mxu0 0.0
    %2057 = vmatpush1.msra.mxu0 %v2034
    %2058 = vmatprep.subr.mxu0 0.0
    %2059 = vmatpush1.msra.mxu0 %v2035
    %2060 = vmatprep.subr.mxu0 0.0
    %2061 = vmatpush1.msra.mxu0 %v2036
    %2062 = vmatprep.subr.mxu0 0.0
    %2063 = vmatpush1.msra.mxu0 %v2037
    %2064 = vmatprep.subr.mxu0 0.0
    %2065 = vmatpush1.msra.mxu0 %v2038
    %2066 = vmatprep.subr.mxu0 0.0
    %2067 = vmatpush1.msra.mxu0 0.0
    %2068 = vmatprep.subr.mxu0 0.0
    %2069 = vmatpush1.msra.mxu0 0.0
    %2070 = vmatprep.subr.mxu0 0.0
    %2071 = vmatpush1.msra.mxu0 0.0
    %2072 = vmatprep.subr.mxu0 0.0
    %2073 = vmatpush1.msra.mxu0 0.0
    %2074 = vmatprep.subr.mxu0 0.0
    %2075 = vmatpush1.msra.mxu0 0.0
    %2076 = vmatprep.subr.mxu0 0.0
    %2077 = vmatpush1.msra.mxu0 0.0
    %2078 = vmatprep.subr.mxu0 0.0
    %2079 = vmatpush1.msra.mxu0 0.0
    %2080 = vmatprep.subr.mxu0 0.0
    %2081 = vmatpush1.msra.mxu0 0.0
    %2082 = vmatprep.subr.mxu0 0.0
    %2083 = vmatpush1.msra.mxu0 0.0
    %2084 = vmatprep.subr.mxu0 0.0
    %2085 = vmatpush1.msra.mxu0 0.0
    %2086 = vmatprep.subr.mxu0 0.0
    %2087 = vmatpush1.msra.mxu0 0.0
    %2088 = vmatprep.subr.mxu0 0.0
    %2089 = vmatpush1.msra.mxu0 0.0
    %2090 = vmatprep.subr.mxu0 0.0
    %2091 = vmatpush1.msra.mxu0 0.0
    %2092 = vmatprep.subr.mxu0 0.0
    %2093 = vmatpush1.msra.mxu0 0.0
    %2094 = vmatprep.subr.mxu0 0.0
    %2095 = vmatpush1.msra.mxu0 0.0
    %2096 = vmatprep.subr.mxu0 0.0
    %2097 = vmatpush1.msra.mxu0 0.0
    %2098 = vmatprep.subr.mxu0 0.0
    %2099 = vmatpush1.msra.mxu0 0.0
    %2100 = vmatprep.subr.mxu0 0.0
    %2101 = vmatpush1.msra.mxu0 0.0
    %2102 = vmatprep.subr.mxu0 0.0
    %2103 = vmatpush1.msra.mxu0 0.0
    %2104 = vmatprep.subr.mxu0 0.0
    %2105 = vmatpush1.msra.mxu0 0.0
    %2106 = vmatprep.mubr.f32.mxu0 0.0
    %2107 = vmatmul.mubr.f32.gmra.mrb[0].mxu0 %v2040
    %v2108 = vpop.f32.mrb[0].mxu0
    %v2109 = vadd.f32 0.0, %v2108
    %v2110 = vpop.f32.mrb[0].mxu0
    %2111 = vdwg.mxu0
    %v2112 = vadd.f32 %v2025, %v2109
    %s2113 = scalar_lea.vmem %s9, 288
    %v2114 = vld [vmem:[%s2113] sm:$0xff]
    %v2115 = vld [vmem:[%s2113 + $0x8] sm:$0xff]
    %v2116 = vld [vmem:[%s2113 + $0x10] sm:$0xff]
    %v2117 = vld [vmem:[%s2113 + $0x18] sm:$0xff]
    %v2118 = vld [vmem:[%s2113 + $0x20] sm:$0xff]
    %v2119 = vld [vmem:[%s2113 + $0x28] sm:$0xff]
    %v2120 = vld [vmem:[%s2113 + $0x30] sm:$0xff]
    %v2121 = vld [vmem:[%s2113 + $0x38] sm:$0xff]
    %v2122 = vld [vmem:[%s2113 + $0x40] sm:$0xff]
    %v2123 = vld [vmem:[%s2113 + $0x48] sm:$0xff]
    %v2124 = vld [vmem:[%s2113 + $0x50] sm:$0xff]
    %v2125 = vld [vmem:[%s2113 + $0x58] sm:$0xff]
    %v2126 = vrot.slane %v1850, 3
    %v2127 = vsel %vm1864, %v2126, 0
    %2129 = vmatprep.subr.mxu0 0.0
    %2130 = vmatpush1.msra.mxu0 %v2114
    %2131 = vmatprep.subr.mxu0 0.0
    %2132 = vmatpush1.msra.mxu0 %v2115
    %2133 = vmatprep.subr.mxu0 0.0
    %2134 = vmatpush1.msra.mxu0 %v2116
    %2135 = vmatprep.subr.mxu0 0.0
    %2136 = vmatpush1.msra.mxu0 %v2117
    %2137 = vmatprep.subr.mxu0 0.0
    %2138 = vmatpush1.msra.mxu0 %v2118
    %2139 = vmatprep.subr.mxu0 0.0
    %2140 = vmatpush1.msra.mxu0 %v2119
    %2141 = vmatprep.subr.mxu0 0.0
    %2142 = vmatpush1.msra.mxu0 %v2120
    %2143 = vmatprep.subr.mxu0 0.0
    %2144 = vmatpush1.msra.mxu0 %v2121
    %2145 = vmatprep.subr.mxu0 0.0
    %2146 = vmatpush1.msra.mxu0 %v2122
    %2147 = vmatprep.subr.mxu0 0.0
    %2148 = vmatpush1.msra.mxu0 %v2123
    %2149 = vmatprep.subr.mxu0 0.0
    %2150 = vmatpush1.msra.mxu0 %v2124
    %2151 = vmatprep.subr.mxu0 0.0
    %2152 = vmatpush1.msra.mxu0 %v2125
    %2153 = vmatprep.subr.mxu0 0.0
    %2154 = vmatpush1.msra.mxu0 0.0
    %2155 = vmatprep.subr.mxu0 0.0
    %2156 = vmatpush1.msra.mxu0 0.0
    %2157 = vmatprep.subr.mxu0 0.0
    %2158 = vmatpush1.msra.mxu0 0.0
    %2159 = vmatprep.subr.mxu0 0.0
    %2160 = vmatpush1.msra.mxu0 0.0
    %2161 = vmatprep.subr.mxu0 0.0
    %2162 = vmatpush1.msra.mxu0 0.0
    %2163 = vmatprep.subr.mxu0 0.0
    %2164 = vmatpush1.msra.mxu0 0.0
    %2165 = vmatprep.subr.mxu0 0.0
    %2166 = vmatpush1.msra.mxu0 0.0
    %2167 = vmatprep.subr.mxu0 0.0
    %2168 = vmatpush1.msra.mxu0 0.0
    %2169 = vmatprep.subr.mxu0 0.0
    %2170 = vmatpush1.msra.mxu0 0.0
    %2171 = vmatprep.subr.mxu0 0.0
    %2172 = vmatpush1.msra.mxu0 0.0
    %2173 = vmatprep.subr.mxu0 0.0
    %2174 = vmatpush1.msra.mxu0 0.0
    %2175 = vmatprep.subr.mxu0 0.0
    %2176 = vmatpush1.msra.mxu0 0.0
    %2177 = vmatprep.subr.mxu0 0.0
    %2178 = vmatpush1.msra.mxu0 0.0
    %2179 = vmatprep.subr.mxu0 0.0
    %2180 = vmatpush1.msra.mxu0 0.0
    %2181 = vmatprep.subr.mxu0 0.0
    %2182 = vmatpush1.msra.mxu0 0.0
    %2183 = vmatprep.subr.mxu0 0.0
    %2184 = vmatpush1.msra.mxu0 0.0
    %2185 = vmatprep.subr.mxu0 0.0
    %2186 = vmatpush1.msra.mxu0 0.0
    %2187 = vmatprep.subr.mxu0 0.0
    %2188 = vmatpush1.msra.mxu0 0.0
    %2189 = vmatprep.subr.mxu0 0.0
    %2190 = vmatpush1.msra.mxu0 0.0
    %2191 = vmatprep.subr.mxu0 0.0
    %2192 = vmatpush1.msra.mxu0 0.0
    %2193 = vmatprep.mubr.f32.mxu0 0.0
    %2194 = vmatmul.mubr.f32.gmra.mrb[0].mxu0 %v2127
    %v2195 = vpop.f32.mrb[0].mxu0
    %v2196 = vadd.f32 0.0, %v2195
    %v2197 = vpop.f32.mrb[0].mxu0
    %2198 = vdwg.mxu0
    %v2199 = vadd.f32 %v2112, %v2196
    %s2200 = scalar_lea.vmem %s9, 384
    %v2201 = vld [vmem:[%s2200] sm:$0xff]
    %v2202 = vld [vmem:[%s2200 + $0x8] sm:$0xff]
    %v2203 = vld [vmem:[%s2200 + $0x10] sm:$0xff]
    %v2204 = vld [vmem:[%s2200 + $0x18] sm:$0xff]
    %v2205 = vld [vmem:[%s2200 + $0x20] sm:$0xff]
    %v2206 = vld [vmem:[%s2200 + $0x28] sm:$0xff]
    %v2207 = vld [vmem:[%s2200 + $0x30] sm:$0xff]
    %v2208 = vld [vmem:[%s2200 + $0x38] sm:$0xff]
    %v2209 = vld [vmem:[%s2200 + $0x40] sm:$0xff]
    %v2210 = vld [vmem:[%s2200 + $0x48] sm:$0xff]
    %v2211 = vld [vmem:[%s2200 + $0x50] sm:$0xff]
    %v2212 = vld [vmem:[%s2200 + $0x58] sm:$0xff]
    %v2213 = vrot.slane %v1850, 4
    %v2214 = vsel %vm1864, %v2213, 0
    %2216 = vmatprep.subr.mxu0 0.0
    %2217 = vmatpush1.msra.mxu0 %v2201
    %2218 = vmatprep.subr.mxu0 0.0
    %2219 = vmatpush1.msra.mxu0 %v2202
    %2220 = vmatprep.subr.mxu0 0.0
    %2221 = vmatpush1.msra.mxu0 %v2203
    %2222 = vmatprep.subr.mxu0 0.0
    %2223 = vmatpush1.msra.mxu0 %v2204
    %2224 = vmatprep.subr.mxu0 0.0
    %2225 = vmatpush1.msra.mxu0 %v2205
    %2226 = vmatprep.subr.mxu0 0.0
    %2227 = vmatpush1.msra.mxu0 %v2206
    %2228 = vmatprep.subr.mxu0 0.0
    %2229 = vmatpush1.msra.mxu0 %v2207
    %2230 = vmatprep.subr.mxu0 0.0
    %2231 = vmatpush1.msra.mxu0 %v2208
    %2232 = vmatprep.subr.mxu0 0.0
    %2233 = vmatpush1.msra.mxu0 %v2209
    %2234 = vmatprep.subr.mxu0 0.0
    %2235 = vmatpush1.msra.mxu0 %v2210
    %2236 = vmatprep.subr.mxu0 0.0
    %2237 = vmatpush1.msra.mxu0 %v2211
    %2238 = vmatprep.subr.mxu0 0.0
    %2239 = vmatpush1.msra.mxu0 %v2212
    %2240 = vmatprep.subr.mxu0 0.0
    %2241 = vmatpush1.msra.mxu0 0.0
    %2242 = vmatprep.subr.mxu0 0.0
    %2243 = vmatpush1.msra.mxu0 0.0
    %2244 = vmatprep.subr.mxu0 0.0
    %2245 = vmatpush1.msra.mxu0 0.0
    %2246 = vmatprep.subr.mxu0 0.0
    %2247 = vmatpush1.msra.mxu0 0.0
    %2248 = vmatprep.subr.mxu0 0.0
    %2249 = vmatpush1.msra.mxu0 0.0
    %2250 = vmatprep.subr.mxu0 0.0
    %2251 = vmatpush1.msra.mxu0 0.0
    %2252 = vmatprep.subr.mxu0 0.0
    %2253 = vmatpush1.msra.mxu0 0.0
    %2254 = vmatprep.subr.mxu0 0.0
    %2255 = vmatpush1.msra.mxu0 0.0
    %2256 = vmatprep.subr.mxu0 0.0
    %2257 = vmatpush1.msra.mxu0 0.0
    %2258 = vmatprep.subr.mxu0 0.0
    %2259 = vmatpush1.msra.mxu0 0.0
    %2260 = vmatprep.subr.mxu0 0.0
    %2261 = vmatpush1.msra.mxu0 0.0
    %2262 = vmatprep.subr.mxu0 0.0
    %2263 = vmatpush1.msra.mxu0 0.0
    %2264 = vmatprep.subr.mxu0 0.0
    %2265 = vmatpush1.msra.mxu0 0.0
    %2266 = vmatprep.subr.mxu0 0.0
    %2267 = vmatpush1.msra.mxu0 0.0
    %2268 = vmatprep.subr.mxu0 0.0
    %2269 = vmatpush1.msra.mxu0 0.0
    %2270 = vmatprep.subr.mxu0 0.0
    %2271 = vmatpush1.msra.mxu0 0.0
    %2272 = vmatprep.subr.mxu0 0.0
    %2273 = vmatpush1.msra.mxu0 0.0
    %2274 = vmatprep.subr.mxu0 0.0
    %2275 = vmatpush1.msra.mxu0 0.0
    %2276 = vmatprep.subr.mxu0 0.0
    %2277 = vmatpush1.msra.mxu0 0.0
    %2278 = vmatprep.subr.mxu0 0.0
    %2279 = vmatpush1.msra.mxu0 0.0
    %2280 = vmatprep.mubr.f32.mxu0 0.0
    %2281 = vmatmul.mubr.f32.gmra.mrb[0].mxu0 %v2214
    %v2282 = vpop.f32.mrb[0].mxu0
    %v2283 = vadd.f32 0.0, %v2282
    %v2284 = vpop.f32.mrb[0].mxu0
    %2285 = vdwg.mxu0
    %v2286 = vadd.f32 %v2199, %v2283
    %s2287 = scalar_lea.vmem %s9, 480
    %v2288 = vld [vmem:[%s2287] sm:$0xff]
    %v2289 = vld [vmem:[%s2287 + $0x8] sm:$0xff]
    %v2290 = vld [vmem:[%s2287 + $0x10] sm:$0xff]
    %v2291 = vld [vmem:[%s2287 + $0x18] sm:$0xff]
    %v2292 = vld [vmem:[%s2287 + $0x20] sm:$0xff]
    %v2293 = vld [vmem:[%s2287 + $0x28] sm:$0xff]
    %v2294 = vld [vmem:[%s2287 + $0x30] sm:$0xff]
    %v2295 = vld [vmem:[%s2287 + $0x38] sm:$0xff]
    %v2296 = vld [vmem:[%s2287 + $0x40] sm:$0xff]
    %v2297 = vld [vmem:[%s2287 + $0x48] sm:$0xff]
    %v2298 = vld [vmem:[%s2287 + $0x50] sm:$0xff]
    %v2299 = vld [vmem:[%s2287 + $0x58] sm:$0xff]
    %v2300 = vrot.slane %v1850, 5
    %v2301 = vsel %vm1864, %v2300, 0
    %2303 = vmatprep.subr.mxu0 0.0
    %2304 = vmatpush1.msra.mxu0 %v2288
    %2305 = vmatprep.subr.mxu0 0.0
    %2306 = vmatpush1.msra.mxu0 %v2289
    %2307 = vmatprep.subr.mxu0 0.0
    %2308 = vmatpush1.msra.mxu0 %v2290
    %2309 = vmatprep.subr.mxu0 0.0
    %2310 = vmatpush1.msra.mxu0 %v2291
    %2311 = vmatprep.subr.mxu0 0.0
    %2312 = vmatpush1.msra.mxu0 %v2292
    %2313 = vmatprep.subr.mxu0 0.0
    %2314 = vmatpush1.msra.mxu0 %v2293
    %2315 = vmatprep.subr.mxu0 0.0
    %2316 = vmatpush1.msra.mxu0 %v2294
    %2317 = vmatprep.subr.mxu0 0.0
    %2318 = vmatpush1.msra.mxu0 %v2295
    %2319 = vmatprep.subr.mxu0 0.0
    %2320 = vmatpush1.msra.mxu0 %v2296
    %2321 = vmatprep.subr.mxu0 0.0
    %2322 = vmatpush1.msra.mxu0 %v2297
    %2323 = vmatprep.subr.mxu0 0.0
    %2324 = vmatpush1.msra.mxu0 %v2298
    %2325 = vmatprep.subr.mxu0 0.0
    %2326 = vmatpush1.msra.mxu0 %v2299
    %2327 = vmatprep.subr.mxu0 0.0
    %2328 = vmatpush1.msra.mxu0 0.0
    %2329 = vmatprep.subr.mxu0 0.0
    %2330 = vmatpush1.msra.mxu0 0.0
    %2331 = vmatprep.subr.mxu0 0.0
    %2332 = vmatpush1.msra.mxu0 0.0
    %2333 = vmatprep.subr.mxu0 0.0
    %2334 = vmatpush1.msra.mxu0 0.0
    %2335 = vmatprep.subr.mxu0 0.0
    %2336 = vmatpush1.msra.mxu0 0.0
    %2337 = vmatprep.subr.mxu0 0.0
    %2338 = vmatpush1.msra.mxu0 0.0
    %2339 = vmatprep.subr.mxu0 0.0
    %2340 = vmatpush1.msra.mxu0 0.0
    %2341 = vmatprep.subr.mxu0 0.0
    %2342 = vmatpush1.msra.mxu0 0.0
    %2343 = vmatprep.subr.mxu0 0.0
    %2344 = vmatpush1.msra.mxu0 0.0
    %2345 = vmatprep.subr.mxu0 0.0
    %2346 = vmatpush1.msra.mxu0 0.0
    %2347 = vmatprep.subr.mxu0 0.0
    %2348 = vmatpush1.msra.mxu0 0.0
    %2349 = vmatprep.subr.mxu0 0.0
    %2350 = vmatpush1.msra.mxu0 0.0
    %2351 = vmatprep.subr.mxu0 0.0
    %2352 = vmatpush1.msra.mxu0 0.0
    %2353 = vmatprep.subr.mxu0 0.0
    %2354 = vmatpush1.msra.mxu0 0.0
    %2355 = vmatprep.subr.mxu0 0.0
    %2356 = vmatpush1.msra.mxu0 0.0
    %2357 = vmatprep.subr.mxu0 0.0
    %2358 = vmatpush1.msra.mxu0 0.0
    %2359 = vmatprep.subr.mxu0 0.0
    %2360 = vmatpush1.msra.mxu0 0.0
    %2361 = vmatprep.subr.mxu0 0.0
    %2362 = vmatpush1.msra.mxu0 0.0
    %2363 = vmatprep.subr.mxu0 0.0
    %2364 = vmatpush1.msra.mxu0 0.0
    %2365 = vmatprep.subr.mxu0 0.0
    %2366 = vmatpush1.msra.mxu0 0.0
    %2367 = vmatprep.mubr.f32.mxu0 0.0
    %2368 = vmatmul.mubr.f32.gmra.mrb[0].mxu0 %v2301
    %v2369 = vpop.f32.mrb[0].mxu0
    %v2370 = vadd.f32 0.0, %v2369
    %v2371 = vpop.f32.mrb[0].mxu0
    %2372 = vdwg.mxu0
    %v2373 = vadd.f32 %v2286, %v2370
    %v2374 = vmax.f32 %v2373, 0.0
    %v2375 = vld [vmem:[%s11] sm:$0xff]
    %v2376 = vld [vmem:[%s11 + $0x8] sm:$0xff]
    %v2377 = vld [vmem:[%s11 + $0x10] sm:$0xff]
    %v2378 = vld [vmem:[%s11 + $0x18] sm:$0xff]
    %v2379 = vld [vmem:[%s11 + $0x20] sm:$0xff]
    %v2380 = vld [vmem:[%s11 + $0x28] sm:$0xff]
    %v2381 = vld [vmem:[%s11 + $0x30] sm:$0xff]
    %v2382 = vld [vmem:[%s11 + $0x38] sm:$0xff]
    %v2383 = vld [vmem:[%s11 + $0x40] sm:$0xff]
    %v2384 = vld [vmem:[%s11 + $0x48] sm:$0xff]
    %v2385 = vld [vmem:[%s11 + $0x50] sm:$0xff]
    %v2386 = vld [vmem:[%s11 + $0x58] sm:$0xff]
    %v2387 = vld [vmem:[%s11 + $0x60] sm:$0xff]
    %v2388 = vld [vmem:[%s11 + $0x68] sm:$0xff]
    %v2389 = vld [vmem:[%s11 + $0x70] sm:$0xff]
    %v2390 = vld [vmem:[%s12] sm:$0x1]
    %vm2391 = vcmask 982016
    %v2393 = vsel %vm2391, %v2374, 0
    %2395 = vmatprep.subr.mxu0 0.0
    %2396 = vmatpush1.msra.mxu0 %v2375
    %2397 = vmatprep.subr.mxu0 0.0
    %2398 = vmatpush1.msra.mxu0 %v2376
    %2399 = vmatprep.subr.mxu0 0.0
    %2400 = vmatpush1.msra.mxu0 %v2377
    %2401 = vmatprep.subr.mxu0 0.0
    %2402 = vmatpush1.msra.mxu0 %v2378
    %2403 = vmatprep.subr.mxu0 0.0
    %2404 = vmatpush1.msra.mxu0 %v2379
    %2405 = vmatprep.subr.mxu0 0.0
    %2406 = vmatpush1.msra.mxu0 %v2380
    %2407 = vmatprep.subr.mxu0 0.0
    %2408 = vmatpush1.msra.mxu0 %v2381
    %2409 = vmatprep.subr.mxu0 0.0
    %2410 = vmatpush1.msra.mxu0 %v2382
    %2411 = vmatprep.subr.mxu0 0.0
    %2412 = vmatpush1.msra.mxu0 %v2383
    %2413 = vmatprep.subr.mxu0 0.0
    %2414 = vmatpush1.msra.mxu0 %v2384
    %2415 = vmatprep.subr.mxu0 0.0
    %2416 = vmatpush1.msra.mxu0 %v2385
    %2417 = vmatprep.subr.mxu0 0.0
    %2418 = vmatpush1.msra.mxu0 %v2386
    %2419 = vmatprep.subr.mxu0 0.0
    %2420 = vmatpush1.msra.mxu0 %v2387
    %2421 = vmatprep.subr.mxu0 0.0
    %2422 = vmatpush1.msra.mxu0 %v2388
    %2423 = vmatprep.subr.mxu0 0.0
    %2424 = vmatpush1.msra.mxu0 %v2389
    %2425 = vmatprep.subr.mxu0 0.0
    %2426 = vmatpush1.msra.mxu0 0.0
    %2427 = vmatprep.subr.mxu0 0.0
    %2428 = vmatpush1.msra.mxu0 0.0
    %2429 = vmatprep.subr.mxu0 0.0
    %2430 = vmatpush1.msra.mxu0 0.0
    %2431 = vmatprep.subr.mxu0 0.0
    %2432 = vmatpush1.msra.mxu0 0.0
    %2433 = vmatprep.subr.mxu0 0.0
    %2434 = vmatpush1.msra.mxu0 0.0
    %2435 = vmatprep.subr.mxu0 0.0
    %2436 = vmatpush1.msra.mxu0 0.0
    %2437 = vmatprep.subr.mxu0 0.0
    %2438 = vmatpush1.msra.mxu0 0.0
    %2439 = vmatprep.subr.mxu0 0.0
    %2440 = vmatpush1.msra.mxu0 0.0
    %2441 = vmatprep.subr.mxu0 0.0
    %2442 = vmatpush1.msra.mxu0 0.0
    %2443 = vmatprep.subr.mxu0 0.0
    %2444 = vmatpush1.msra.mxu0 0.0
    %2445 = vmatprep.subr.mxu0 0.0
    %2446 = vmatpush1.msra.mxu0 0.0
    %2447 = vmatprep.subr.mxu0 0.0
    %2448 = vmatpush1.msra.mxu0 0.0
    %2449 = vmatprep.subr.mxu0 0.0
    %2450 = vmatpush1.msra.mxu0 0.0
    %2451 = vmatprep.subr.mxu0 0.0
    %2452 = vmatpush1.msra.mxu0 0.0
    %2453 = vmatprep.subr.mxu0 0.0
    %2454 = vmatpush1.msra.mxu0 0.0
    %2455 = vmatprep.subr.mxu0 0.0
    %2456 = vmatpush1.msra.mxu0 0.0
    %2457 = vmatprep.subr.mxu0 0.0
    %2458 = vmatpush1.msra.mxu0 0.0
    %2459 = vmatprep.mubr.f32.mxu0 0.0
    %2460 = vmatmul.mubr.f32.gmra.mrb[0].mxu0 %v2393
    %v2461 = vpop.f32.mrb[0].mxu0
    %v2462 = vadd.f32 %v2390, %v2461
    %v2463 = vpop.f32.mrb[0].mxu0
    %2464 = vdwg.mxu0
    %v2465 = vmax.f32 %v2462, 0.0
    %v2466 = vld [vmem:[%s13] sm:$0xff]
    %v2467 = vld [vmem:[%s13 + $0x8] sm:$0xff]
    %v2468 = vld [vmem:[%s13 + $0x10] sm:$0xff]
    %v2469 = vld [vmem:[%s13 + $0x18] sm:$0xff]
    %v2470 = vld [vmem:[%s13 + $0x20] sm:$0xff]
    %v2471 = vld [vmem:[%s13 + $0x28] sm:$0xff]
    %v2472 = vld [vmem:[%s13 + $0x30] sm:$0xff]
    %v2473 = vld [vmem:[%s13 + $0x38] sm:$0xff]
    %v2474 = vld [vmem:[%s13 + $0x40] sm:$0xff]
    %v2475 = vld [vmem:[%s13 + $0x48] sm:$0xff]
    %v2476 = vld [vmem:[%s13 + $0x50] sm:$0xf]
    %v2477 = vld [vmem:[%s14] sm:$0x1]
    %vm2478 = vcmask 687104
    %v2480 = vsel %vm2478, %v2465, 0
    %v2483 = vsel %vm637, %v2476, 0
    %2485 = vmatprep.subr.mxu0 0.0
    %2486 = vmatpush1.msra.mxu0 %v2466
    %2487 = vmatprep.subr.mxu0 0.0
    %2488 = vmatpush1.msra.mxu0 %v2467
    %2489 = vmatprep.subr.mxu0 0.0
    %2490 = vmatpush1.msra.mxu0 %v2468
    %2491 = vmatprep.subr.mxu0 0.0
    %2492 = vmatpush1.msra.mxu0 %v2469
    %2493 = vmatprep.subr.mxu0 0.0
    %2494 = vmatpush1.msra.mxu0 %v2470
    %2495 = vmatprep.subr.mxu0 0.0
    %2496 = vmatpush1.msra.mxu0 %v2471
    %2497 = vmatprep.subr.mxu0 0.0
    %2498 = vmatpush1.msra.mxu0 %v2472
    %2499 = vmatprep.subr.mxu0 0.0
    %2500 = vmatpush1.msra.mxu0 %v2473
    %2501 = vmatprep.subr.mxu0 0.0
    %2502 = vmatpush1.msra.mxu0 %v2474
    %2503 = vmatprep.subr.mxu0 0.0
    %2504 = vmatpush1.msra.mxu0 %v2475
    %2505 = vmatprep.subr.mxu0 0.0
    %2506 = vmatpush1.msra.mxu0 %v2483
    %2507 = vmatprep.subr.mxu0 0.0
    %2508 = vmatpush1.msra.mxu0 0.0
    %2509 = vmatprep.subr.mxu0 0.0
    %2510 = vmatpush1.msra.mxu0 0.0
    %2511 = vmatprep.subr.mxu0 0.0
    %2512 = vmatpush1.msra.mxu0 0.0
    %2513 = vmatprep.subr.mxu0 0.0
    %2514 = vmatpush1.msra.mxu0 0.0
    %2515 = vmatprep.subr.mxu0 0.0
    %2516 = vmatpush1.msra.mxu0 0.0
    %2517 = vmatprep.subr.mxu0 0.0
    %2518 = vmatpush1.msra.mxu0 0.0
    %2519 = vmatprep.subr.mxu0 0.0
    %2520 = vmatpush1.msra.mxu0 0.0
    %2521 = vmatprep.subr.mxu0 0.0
    %2522 = vmatpush1.msra.mxu0 0.0
    %2523 = vmatprep.subr.mxu0 0.0
    %2524 = vmatpush1.msra.mxu0 0.0
    %2525 = vmatprep.subr.mxu0 0.0
    %2526 = vmatpush1.msra.mxu0 0.0
    %2527 = vmatprep.subr.mxu0 0.0
    %2528 = vmatpush1.msra.mxu0 0.0
    %2529 = vmatprep.subr.mxu0 0.0
    %2530 = vmatpush1.msra.mxu0 0.0
    %2531 = vmatprep.subr.mxu0 0.0
    %2532 = vmatpush1.msra.mxu0 0.0
    %2533 = vmatprep.subr.mxu0 0.0
    %2534 = vmatpush1.msra.mxu0 0.0
    %2535 = vmatprep.subr.mxu0 0.0
    %2536 = vmatpush1.msra.mxu0 0.0
    %2537 = vmatprep.subr.mxu0 0.0
    %2538 = vmatpush1.msra.mxu0 0.0
    %2539 = vmatprep.subr.mxu0 0.0
    %2540 = vmatpush1.msra.mxu0 0.0
    %2541 = vmatprep.subr.mxu0 0.0
    %2542 = vmatpush1.msra.mxu0 0.0
    %2543 = vmatprep.subr.mxu0 0.0
    %2544 = vmatpush1.msra.mxu0 0.0
    %2545 = vmatprep.subr.mxu0 0.0
    %2546 = vmatpush1.msra.mxu0 0.0
    %2547 = vmatprep.subr.mxu0 0.0
    %2548 = vmatpush1.msra.mxu0 0.0
    %2549 = vmatprep.mubr.f32.mxu0 0.0
    %2550 = vmatmul.mubr.f32.gmra.mrb[0].mxu0 %v2480
    %v2551 = vpop.f32.mrb[0].mxu0
    %v2552 = vadd.f32 %v2477, %v2551
    %v2553 = vpop.f32.mrb[0].mxu0
    %2554 = vdwg.mxu0
    %vm2555 = vcmask 73728
    %2556 = vst.msk [vmem:[#allocation2] sm:$0x1] %vm2555, %v2552
    %s2557 = scalar_lea.vmem %s0, 32
    %v2558 = vld [vmem:[%s2557] sm:$0xff]
    %v2559 = vld [vmem:[%s2557 + $0x8] sm:$0xff]
    %v2560 = vld [vmem:[%s2557 + $0x10] sm:$0xff]
    %v2561 = vld [vmem:[%s2557 + $0x18] sm:$0xff]
    %v2562 = vld [vmem:[%s1] sm:$0xff]
    %v2563 = vld [vmem:[%s1 + $0x8] sm:$0xff]
    %v2564 = vld [vmem:[%s1 + $0x10] sm:$0xff]
    %v2565 = vld [vmem:[%s1 + $0x18] sm:$0xff]
    %v2566 = vld [vmem:[%s1 + $0x20] sm:$0xff]
    %v2567 = vld [vmem:[%s1 + $0x28] sm:$0xff]
    %v2568 = vld [vmem:[%s1 + $0x30] sm:$0xff]
    %v2569 = vld [vmem:[%s1 + $0x38] sm:$0xff]
    %v2570 = vld [vmem:[%s63] sm:$0xff]
    %v2571 = vld [vmem:[%s63 + $0x8] sm:$0xff]
    %v2572 = vld [vmem:[%s63 + $0x10] sm:$0xff]
    %v2573 = vld [vmem:[%s63 + $0x18] sm:$0xff]
    %v2574 = vld [vmem:[%s63 + $0x20] sm:$0xff]
    %v2575 = vld [vmem:[%s63 + $0x28] sm:$0xff]
    %v2576 = vld [vmem:[%s63 + $0x30] sm:$0xff]
    %v2577 = vld [vmem:[%s63 + $0x38] sm:$0xff]
    %v2582 = vrot.slane %v2558, 1
    %v2583 = vrot.slane %v2559, 1
    %v2584 = vsel %vm76, %v2582, %v2583
    %v2585 = vrot.slane %v2560, 1
    %v2586 = vsel %vm76, %v2583, %v2585
    %v2587 = vrot.slane %v2561, 1
    %v2588 = vsel %vm76, %v2585, %v2587
    %v2589 = vsel %vm84, %v2584, 0
    %v2591 = vsel %vm84, %v2586, 0
    %v2593 = vsel %vm84, %v2588, 0
    %v2595 = vsel %vm84, %v2587, 0
    %2597 = vmatprep.subr.mxu0 %v2571
    %2598 = vmatpush1.msra.mxu0 %v2570
    %2599 = vmatprep.subr.mxu0 %v2573
    %2600 = vmatpush1.msra.mxu0 %v2572
    %2601 = vmatprep.subr.mxu0 %v2575
    %2602 = vmatpush1.msra.mxu0 %v2574
    %2603 = vmatprep.subr.mxu0 %v2577
    %2604 = vmatpush1.msra.mxu0 %v2576
    %2605 = vmatprep.subr.mxu0 0.0
    %2606 = vmatpush1.msra.mxu0 0.0
    %2607 = vmatprep.subr.mxu0 0.0
    %2608 = vmatpush1.msra.mxu0 0.0
    %2609 = vmatprep.subr.mxu0 0.0
    %2610 = vmatpush1.msra.mxu0 0.0
    %2611 = vmatprep.subr.mxu0 0.0
    %2612 = vmatpush1.msra.mxu0 0.0
    %2613 = vmatprep.subr.mxu0 0.0
    %2614 = vmatpush1.msra.mxu0 0.0
    %2615 = vmatprep.subr.mxu0 0.0
    %2616 = vmatpush1.msra.mxu0 0.0
    %2617 = vmatprep.subr.mxu0 0.0
    %2618 = vmatpush1.msra.mxu0 0.0
    %2619 = vmatprep.subr.mxu0 0.0
    %2620 = vmatpush1.msra.mxu0 0.0
    %2621 = vmatprep.subr.mxu0 0.0
    %2622 = vmatpush1.msra.mxu0 0.0
    %2623 = vmatprep.subr.mxu0 0.0
    %2624 = vmatpush1.msra.mxu0 0.0
    %2625 = vmatprep.subr.mxu0 0.0
    %2626 = vmatpush1.msra.mxu0 0.0
    %2627 = vmatprep.subr.mxu0 0.0
    %2628 = vmatpush1.msra.mxu0 0.0
    %2629 = vmatprep.subr.mxu0 0.0
    %2630 = vmatpush1.msra.mxu0 0.0
    %2631 = vmatprep.subr.mxu0 0.0
    %2632 = vmatpush1.msra.mxu0 0.0
    %2633 = vmatprep.subr.mxu0 0.0
    %2634 = vmatpush1.msra.mxu0 0.0
    %2635 = vmatprep.subr.mxu0 0.0
    %2636 = vmatpush1.msra.mxu0 0.0
    %2637 = vmatprep.subr.mxu0 0.0
    %2638 = vmatpush1.msra.mxu0 0.0
    %2639 = vmatprep.subr.mxu0 0.0
    %2640 = vmatpush1.msra.mxu0 0.0
    %2641 = vmatprep.subr.mxu0 0.0
    %2642 = vmatpush1.msra.mxu0 0.0
    %2643 = vmatprep.subr.mxu0 0.0
    %2644 = vmatpush1.msra.mxu0 0.0
    %2645 = vmatprep.subr.mxu0 0.0
    %2646 = vmatpush1.msra.mxu0 0.0
    %2647 = vmatprep.subr.mxu0 0.0
    %2648 = vmatpush1.msra.mxu0 0.0
    %2649 = vmatprep.subr.mxu0 0.0
    %2650 = vmatpush1.msra.mxu0 0.0
    %2651 = vmatprep.subr.mxu0 0.0
    %2652 = vmatpush1.msra.mxu0 0.0
    %2653 = vmatprep.subr.mxu0 0.0
    %2654 = vmatpush1.msra.mxu0 0.0
    %2655 = vmatprep.subr.mxu0 0.0
    %2656 = vmatpush1.msra.mxu0 0.0
    %2657 = vmatprep.subr.mxu0 0.0
    %2658 = vmatpush1.msra.mxu0 0.0
    %2659 = vmatprep.subr.mxu0 0.0
    %2660 = vmatpush1.msra.mxu0 0.0
    %2661 = vmatprep.mubr.f32.mxu0 0.0
    %2662 = vmatmul.mubr.f32.gmra.mrb[0].mxu0 %v2589
    %v2663 = vpop.f32.mrb[0].mxu0
    %v2664 = vadd.f32 0.0, %v2663
    %v2665 = vpop.f32.mrb[0].mxu0
    %v2666 = vadd.f32 0.0, %v2665
    %2667 = vmatprep.mubr.f32.mxu0 0.0
    %2668 = vmatmul.mubr.f32.gmra.mrb[0].mxu0 %v2591
    %v2669 = vpop.f32.mrb[0].mxu0
    %v2670 = vadd.f32 0.0, %v2669
    %v2671 = vpop.f32.mrb[0].mxu0
    %v2672 = vadd.f32 0.0, %v2671
    %2673 = vmatprep.mubr.f32.mxu0 0.0
    %2674 = vmatmul.mubr.f32.gmra.mrb[0].mxu0 %v2593
    %v2675 = vpop.f32.mrb[0].mxu0
    %v2676 = vadd.f32 0.0, %v2675
    %v2677 = vpop.f32.mrb[0].mxu0
    %v2678 = vadd.f32 0.0, %v2677
    %2679 = vmatprep.mubr.f32.mxu0 0.0
    %2680 = vmatmul.mubr.f32.gmra.mrb[0].mxu0 %v2595
    %v2681 = vpop.f32.mrb[0].mxu0
    %v2682 = vadd.f32 0.0, %v2681
    %v2683 = vpop.f32.mrb[0].mxu0
    %v2684 = vadd.f32 0.0, %v2683
    %2685 = vdwg.mxu0
    %v2686 = vsel %vm84, %v2558, 0
    %v2688 = vsel %vm84, %v2559, 0
    %v2690 = vsel %vm84, %v2560, 0
    %v2692 = vsel %vm84, %v2561, 0
    %2694 = vmatprep.subr.mxu0 %v2563
    %2695 = vmatpush1.msra.mxu0 %v2562
    %2696 = vmatprep.subr.mxu0 %v2565
    %2697 = vmatpush1.msra.mxu0 %v2564
    %2698 = vmatprep.subr.mxu0 %v2567
    %2699 = vmatpush1.msra.mxu0 %v2566
    %2700 = vmatprep.subr.mxu0 %v2569
    %2701 = vmatpush1.msra.mxu0 %v2568
    %2702 = vmatprep.subr.mxu0 0.0
    %2703 = vmatpush1.msra.mxu0 0.0
    %2704 = vmatprep.subr.mxu0 0.0
    %2705 = vmatpush1.msra.mxu0 0.0
    %2706 = vmatprep.subr.mxu0 0.0
    %2707 = vmatpush1.msra.mxu0 0.0
    %2708 = vmatprep.subr.mxu0 0.0
    %2709 = vmatpush1.msra.mxu0 0.0
    %2710 = vmatprep.subr.mxu0 0.0
    %2711 = vmatpush1.msra.mxu0 0.0
    %2712 = vmatprep.subr.mxu0 0.0
    %2713 = vmatpush1.msra.mxu0 0.0
    %2714 = vmatprep.subr.mxu0 0.0
    %2715 = vmatpush1.msra.mxu0 0.0
    %2716 = vmatprep.subr.mxu0 0.0
    %2717 = vmatpush1.msra.mxu0 0.0
    %2718 = vmatprep.subr.mxu0 0.0
    %2719 = vmatpush1.msra.mxu0 0.0
    %2720 = vmatprep.subr.mxu0 0.0
    %2721 = vmatpush1.msra.mxu0 0.0
    %2722 = vmatprep.subr.mxu0 0.0
    %2723 = vmatpush1.msra.mxu0 0.0
    %2724 = vmatprep.subr.mxu0 0.0
    %2725 = vmatpush1.msra.mxu0 0.0
    %2726 = vmatprep.subr.mxu0 0.0
    %2727 = vmatpush1.msra.mxu0 0.0
    %2728 = vmatprep.subr.mxu0 0.0
    %2729 = vmatpush1.msra.mxu0 0.0
    %2730 = vmatprep.subr.mxu0 0.0
    %2731 = vmatpush1.msra.mxu0 0.0
    %2732 = vmatprep.subr.mxu0 0.0
    %2733 = vmatpush1.msra.mxu0 0.0
    %2734 = vmatprep.subr.mxu0 0.0
    %2735 = vmatpush1.msra.mxu0 0.0
    %2736 = vmatprep.subr.mxu0 0.0
    %2737 = vmatpush1.msra.mxu0 0.0
    %2738 = vmatprep.subr.mxu0 0.0
    %2739 = vmatpush1.msra.mxu0 0.0
    %2740 = vmatprep.subr.mxu0 0.0
    %2741 = vmatpush1.msra.mxu0 0.0
    %2742 = vmatprep.subr.mxu0 0.0
    %2743 = vmatpush1.msra.mxu0 0.0
    %2744 = vmatprep.subr.mxu0 0.0
    %2745 = vmatpush1.msra.mxu0 0.0
    %2746 = vmatprep.subr.mxu0 0.0
    %2747 = vmatpush1.msra.mxu0 0.0
    %2748 = vmatprep.subr.mxu0 0.0
    %2749 = vmatpush1.msra.mxu0 0.0
    %2750 = vmatprep.subr.mxu0 0.0
    %2751 = vmatpush1.msra.mxu0 0.0
    %2752 = vmatprep.subr.mxu0 0.0
    %2753 = vmatpush1.msra.mxu0 0.0
    %2754 = vmatprep.subr.mxu0 0.0
    %2755 = vmatpush1.msra.mxu0 0.0
    %2756 = vmatprep.subr.mxu0 0.0
    %2757 = vmatpush1.msra.mxu0 0.0
    %2758 = vmatprep.mubr.f32.mxu0 0.0
    %2759 = vmatmul.mubr.f32.gmra.mrb[0].mxu0 %v2686
    %v2760 = vpop.f32.mrb[0].mxu0
    %v2761 = vadd.f32 %v2664, %v2760
    %v2762 = vpop.f32.mrb[0].mxu0
    %v2763 = vadd.f32 %v2666, %v2762
    %2764 = vmatprep.mubr.f32.mxu0 0.0
    %2765 = vmatmul.mubr.f32.gmra.mrb[0].mxu0 %v2688
    %v2766 = vpop.f32.mrb[0].mxu0
    %v2767 = vadd.f32 %v2670, %v2766
    %v2768 = vpop.f32.mrb[0].mxu0
    %v2769 = vadd.f32 %v2672, %v2768
    %2770 = vmatprep.mubr.f32.mxu0 0.0
    %2771 = vmatmul.mubr.f32.gmra.mrb[0].mxu0 %v2690
    %v2772 = vpop.f32.mrb[0].mxu0
    %v2773 = vadd.f32 %v2676, %v2772
    %v2774 = vpop.f32.mrb[0].mxu0
    %v2775 = vadd.f32 %v2678, %v2774
    %2776 = vmatprep.mubr.f32.mxu0 0.0
    %2777 = vmatmul.mubr.f32.gmra.mrb[0].mxu0 %v2692
    %v2778 = vpop.f32.mrb[0].mxu0
    %v2779 = vadd.f32 %v2682, %v2778
    %v2780 = vpop.f32.mrb[0].mxu0
    %v2781 = vadd.f32 %v2684, %v2780
    %2782 = vdwg.mxu0
    %v2783 = vld [vmem:[%s279] sm:$0xff]
    %v2784 = vld [vmem:[%s279 + $0x8] sm:$0xff]
    %v2785 = vld [vmem:[%s279 + $0x10] sm:$0xff]
    %v2786 = vld [vmem:[%s279 + $0x18] sm:$0xff]
    %v2787 = vld [vmem:[%s279 + $0x20] sm:$0xff]
    %v2788 = vld [vmem:[%s279 + $0x28] sm:$0xff]
    %v2789 = vld [vmem:[%s279 + $0x30] sm:$0xff]
    %v2790 = vld [vmem:[%s279 + $0x38] sm:$0xff]
    %v2791 = vrot.slane %v2558, 2
    %v2792 = vrot.slane %v2559, 2
    %v2793 = vsel %vm288, %v2791, %v2792
    %v2794 = vrot.slane %v2560, 2
    %v2795 = vsel %vm288, %v2792, %v2794
    %v2796 = vrot.slane %v2561, 2
    %v2797 = vsel %vm288, %v2794, %v2796
    %v2798 = vsel %vm84, %v2793, 0
    %v2800 = vsel %vm84, %v2795, 0
    %v2802 = vsel %vm84, %v2797, 0
    %v2804 = vsel %vm84, %v2796, 0
    %2806 = vmatprep.subr.mxu0 %v2784
    %2807 = vmatpush1.msra.mxu0 %v2783
    %2808 = vmatprep.subr.mxu0 %v2786
    %2809 = vmatpush1.msra.mxu0 %v2785
    %2810 = vmatprep.subr.mxu0 %v2788
    %2811 = vmatpush1.msra.mxu0 %v2787
    %2812 = vmatprep.subr.mxu0 %v2790
    %2813 = vmatpush1.msra.mxu0 %v2789
    %2814 = vmatprep.subr.mxu0 0.0
    %2815 = vmatpush1.msra.mxu0 0.0
    %2816 = vmatprep.subr.mxu0 0.0
    %2817 = vmatpush1.msra.mxu0 0.0
    %2818 = vmatprep.subr.mxu0 0.0
    %2819 = vmatpush1.msra.mxu0 0.0
    %2820 = vmatprep.subr.mxu0 0.0
    %2821 = vmatpush1.msra.mxu0 0.0
    %2822 = vmatprep.subr.mxu0 0.0
    %2823 = vmatpush1.msra.mxu0 0.0
    %2824 = vmatprep.subr.mxu0 0.0
    %2825 = vmatpush1.msra.mxu0 0.0
    %2826 = vmatprep.subr.mxu0 0.0
    %2827 = vmatpush1.msra.mxu0 0.0
    %2828 = vmatprep.subr.mxu0 0.0
    %2829 = vmatpush1.msra.mxu0 0.0
    %2830 = vmatprep.subr.mxu0 0.0
    %2831 = vmatpush1.msra.mxu0 0.0
    %2832 = vmatprep.subr.mxu0 0.0
    %2833 = vmatpush1.msra.mxu0 0.0
    %2834 = vmatprep.subr.mxu0 0.0
    %2835 = vmatpush1.msra.mxu0 0.0
    %2836 = vmatprep.subr.mxu0 0.0
    %2837 = vmatpush1.msra.mxu0 0.0
    %2838 = vmatprep.subr.mxu0 0.0
    %2839 = vmatpush1.msra.mxu0 0.0
    %2840 = vmatprep.subr.mxu0 0.0
    %2841 = vmatpush1.msra.mxu0 0.0
    %2842 = vmatprep.subr.mxu0 0.0
    %2843 = vmatpush1.msra.mxu0 0.0
    %2844 = vmatprep.subr.mxu0 0.0
    %2845 = vmatpush1.msra.mxu0 0.0
    %2846 = vmatprep.subr.mxu0 0.0
    %2847 = vmatpush1.msra.mxu0 0.0
    %2848 = vmatprep.subr.mxu0 0.0
    %2849 = vmatpush1.msra.mxu0 0.0
    %2850 = vmatprep.subr.mxu0 0.0
    %2851 = vmatpush1.msra.mxu0 0.0
    %2852 = vmatprep.subr.mxu0 0.0
    %2853 = vmatpush1.msra.mxu0 0.0
    %2854 = vmatprep.subr.mxu0 0.0
    %2855 = vmatpush1.msra.mxu0 0.0
    %2856 = vmatprep.subr.mxu0 0.0
    %2857 = vmatpush1.msra.mxu0 0.0
    %2858 = vmatprep.subr.mxu0 0.0
    %2859 = vmatpush1.msra.mxu0 0.0
    %2860 = vmatprep.subr.mxu0 0.0
    %2861 = vmatpush1.msra.mxu0 0.0
    %2862 = vmatprep.subr.mxu0 0.0
    %2863 = vmatpush1.msra.mxu0 0.0
    %2864 = vmatprep.subr.mxu0 0.0
    %2865 = vmatpush1.msra.mxu0 0.0
    %2866 = vmatprep.subr.mxu0 0.0
    %2867 = vmatpush1.msra.mxu0 0.0
    %2868 = vmatprep.subr.mxu0 0.0
    %2869 = vmatpush1.msra.mxu0 0.0
    %2870 = vmatprep.mubr.f32.mxu0 0.0
    %2871 = vmatmul.mubr.f32.gmra.mrb[0].mxu0 %v2798
    %v2872 = vpop.f32.mrb[0].mxu0
    %v2873 = vadd.f32 0.0, %v2872
    %v2874 = vpop.f32.mrb[0].mxu0
    %v2875 = vadd.f32 0.0, %v2874
    %2876 = vmatprep.mubr.f32.mxu0 0.0
    %2877 = vmatmul.mubr.f32.gmra.mrb[0].mxu0 %v2800
    %v2878 = vpop.f32.mrb[0].mxu0
    %v2879 = vadd.f32 0.0, %v2878
    %v2880 = vpop.f32.mrb[0].mxu0
    %v2881 = vadd.f32 0.0, %v2880
    %2882 = vmatprep.mubr.f32.mxu0 0.0
    %2883 = vmatmul.mubr.f32.gmra.mrb[0].mxu0 %v2802
    %v2884 = vpop.f32.mrb[0].mxu0
    %v2885 = vadd.f32 0.0, %v2884
    %v2886 = vpop.f32.mrb[0].mxu0
    %v2887 = vadd.f32 0.0, %v2886
    %2888 = vmatprep.mubr.f32.mxu0 0.0
    %2889 = vmatmul.mubr.f32.gmra.mrb[0].mxu0 %v2804
    %v2890 = vpop.f32.mrb[0].mxu0
    %v2891 = vadd.f32 0.0, %v2890
    %v2892 = vpop.f32.mrb[0].mxu0
    %v2893 = vadd.f32 0.0, %v2892
    %2894 = vdwg.mxu0
    %v2895 = vadd.f32 %v2761, %v2873
    %v2896 = vadd.f32 %v2763, %v2875
    %v2897 = vadd.f32 %v2767, %v2879
    %v2898 = vadd.f32 %v2769, %v2881
    %v2899 = vadd.f32 %v2773, %v2885
    %v2900 = vadd.f32 %v2775, %v2887
    %v2901 = vadd.f32 %v2779, %v2891
    %v2902 = vadd.f32 %v2781, %v2893
    %v2903 = vld [vmem:[%s2] sm:$0x3]
    %v2905 = vlaneseq
    %v2906 = vshrl.u32 %v2905, 7
    %v2907 = vsub.s32 0, %v2906
    %v2908 = vrot.slane %v2903, %v2907
    %v2909 = vlaneseq
    %v2910 = vshrl.u32 %v2909, 7
    %v2911 = vsub.s32 1, %v2910
    %v2912 = vrot.slane %v2903, %v2911
    %v2915 = vadd.f32 %v2895, %v2908
    %v2916 = vadd.f32 %v2896, %v2912
    %v2917 = vadd.f32 %v2897, %v2908
    %v2918 = vadd.f32 %v2898, %v2912
    %v2919 = vadd.f32 %v2899, %v2908
    %v2920 = vadd.f32 %v2900, %v2912
    %v2921 = vadd.f32 %v2901, %v2908
    %v2922 = vadd.f32 %v2902, %v2912
    %v2923 = vmax.f32 %v2915, 0.0
    %v2924 = vmax.f32 %v2916, 0.0
    %v2925 = vmax.f32 %v2917, 0.0
    %v2926 = vmax.f32 %v2918, 0.0
    %v2927 = vmax.f32 %v2919, 0.0
    %v2928 = vmax.f32 %v2920, 0.0
    %v2929 = vmax.f32 %v2921, 0.0
    %v2930 = vmax.f32 %v2922, 0.0
    %v2931 = vld [vmem:[%s5] sm:$0xff]
    %v2932 = vld [vmem:[%s5 + $0x8] sm:$0x7f]
    %v2934 = vsel %vm431, %v2931, 0
    %v2937 = vsel %vm431, %v2932, 0
    %v2940 = vsel %vm288, %v2929, 0
    %v2943 = vsel %vm288, %v2930, 0
    %2945 = vmatprep.subr.mxu0 %v2924
    %2946 = vmatpush1.msra.mxu0 %v2923
    %2947 = vmatprep.subr.mxu0 %v2926
    %2948 = vmatpush1.msra.mxu0 %v2925
    %2949 = vmatprep.subr.mxu0 %v2928
    %2950 = vmatpush1.msra.mxu0 %v2927
    %2951 = vmatprep.subr.mxu0 %v2943
    %2952 = vmatpush1.msra.mxu0 %v2940
    %2953 = vmatprep.subr.mxu0 0.0
    %2954 = vmatpush1.msra.mxu0 0.0
    %2955 = vmatprep.subr.mxu0 0.0
    %2956 = vmatpush1.msra.mxu0 0.0
    %2957 = vmatprep.subr.mxu0 0.0
    %2958 = vmatpush1.msra.mxu0 0.0
    %2959 = vmatprep.subr.mxu0 0.0
    %2960 = vmatpush1.msra.mxu0 0.0
    %2961 = vmatprep.subr.mxu0 0.0
    %2962 = vmatpush1.msra.mxu0 0.0
    %2963 = vmatprep.subr.mxu0 0.0
    %2964 = vmatpush1.msra.mxu0 0.0
    %2965 = vmatprep.subr.mxu0 0.0
    %2966 = vmatpush1.msra.mxu0 0.0
    %2967 = vmatprep.subr.mxu0 0.0
    %2968 = vmatpush1.msra.mxu0 0.0
    %2969 = vmatprep.subr.mxu0 0.0
    %2970 = vmatpush1.msra.mxu0 0.0
    %2971 = vmatprep.subr.mxu0 0.0
    %2972 = vmatpush1.msra.mxu0 0.0
    %2973 = vmatprep.subr.mxu0 0.0
    %2974 = vmatpush1.msra.mxu0 0.0
    %2975 = vmatprep.subr.mxu0 0.0
    %2976 = vmatpush1.msra.mxu0 0.0
    %2977 = vmatprep.subr.mxu0 0.0
    %2978 = vmatpush1.msra.mxu0 0.0
    %2979 = vmatprep.subr.mxu0 0.0
    %2980 = vmatpush1.msra.mxu0 0.0
    %2981 = vmatprep.subr.mxu0 0.0
    %2982 = vmatpush1.msra.mxu0 0.0
    %2983 = vmatprep.subr.mxu0 0.0
    %2984 = vmatpush1.msra.mxu0 0.0
    %2985 = vmatprep.subr.mxu0 0.0
    %2986 = vmatpush1.msra.mxu0 0.0
    %2987 = vmatprep.subr.mxu0 0.0
    %2988 = vmatpush1.msra.mxu0 0.0
    %2989 = vmatprep.subr.mxu0 0.0
    %2990 = vmatpush1.msra.mxu0 0.0
    %2991 = vmatprep.subr.mxu0 0.0
    %2992 = vmatpush1.msra.mxu0 0.0
    %2993 = vmatprep.subr.mxu0 0.0
    %2994 = vmatpush1.msra.mxu0 0.0
    %2995 = vmatprep.subr.mxu0 0.0
    %2996 = vmatpush1.msra.mxu0 0.0
    %2997 = vmatprep.subr.mxu0 0.0
    %2998 = vmatpush1.msra.mxu0 0.0
    %2999 = vmatprep.subr.mxu0 0.0
    %3000 = vmatpush1.msra.mxu0 0.0
    %3001 = vmatprep.subr.mxu0 0.0
    %3002 = vmatpush1.msra.mxu0 0.0
    %3003 = vmatprep.subr.mxu0 0.0
    %3004 = vmatpush1.msra.mxu0 0.0
    %3005 = vmatprep.subr.mxu0 0.0
    %3006 = vmatpush1.msra.mxu0 0.0
    %3007 = vmatprep.subr.mxu0 0.0
    %3008 = vmatpush1.msra.mxu0 0.0
    %3009 = vmatprep.mubr.f32.mxu0 0.0
    %3010 = vmatmul.mubr.f32.gmra.mrb[0].mxu0 %v2934
    %v3011 = vpop.f32.mrb[0].mxu0
    %v3012 = vadd.f32 0.0, %v3011
    %v3013 = vpop.f32.mrb[0].mxu0
    %v3014 = vadd.f32 0.0, %v3013
    %3015 = vmatprep.mubr.f32.mxu0 0.0
    %3016 = vmatmul.mubr.f32.gmra.mrb[0].mxu0 %v2937
    %v3017 = vpop.f32.mrb[0].mxu0
    %v3018 = vadd.f32 0.0, %v3017
    %v3019 = vpop.f32.mrb[0].mxu0
    %v3020 = vadd.f32 0.0, %v3019
    %3021 = vdwg.mxu0
    %v3022 = vld [vmem:[%s521] sm:$0xff]
    %v3023 = vld [vmem:[%s521 + $0x8] sm:$0x7f]
    %v3025 = vsel %vm431, %v3022, 0
    %v3028 = vsel %vm431, %v3023, 0
    %3030 = vmatprep.subr.mxu0 %v2924
    %3031 = vmatpush1.msra.mxu0 %v2923
    %3032 = vmatprep.subr.mxu0 %v2926
    %3033 = vmatpush1.msra.mxu0 %v2925
    %3034 = vmatprep.subr.mxu0 %v2928
    %3035 = vmatpush1.msra.mxu0 %v2927
    %3036 = vmatprep.subr.mxu0 %v2943
    %3037 = vmatpush1.msra.mxu0 %v2940
    %3038 = vmatprep.subr.mxu0 0.0
    %3039 = vmatpush1.msra.mxu0 0.0
    %3040 = vmatprep.subr.mxu0 0.0
    %3041 = vmatpush1.msra.mxu0 0.0
    %3042 = vmatprep.subr.mxu0 0.0
    %3043 = vmatpush1.msra.mxu0 0.0
    %3044 = vmatprep.subr.mxu0 0.0
    %3045 = vmatpush1.msra.mxu0 0.0
    %3046 = vmatprep.subr.mxu0 0.0
    %3047 = vmatpush1.msra.mxu0 0.0
    %3048 = vmatprep.subr.mxu0 0.0
    %3049 = vmatpush1.msra.mxu0 0.0
    %3050 = vmatprep.subr.mxu0 0.0
    %3051 = vmatpush1.msra.mxu0 0.0
    %3052 = vmatprep.subr.mxu0 0.0
    %3053 = vmatpush1.msra.mxu0 0.0
    %3054 = vmatprep.subr.mxu0 0.0
    %3055 = vmatpush1.msra.mxu0 0.0
    %3056 = vmatprep.subr.mxu0 0.0
    %3057 = vmatpush1.msra.mxu0 0.0
    %3058 = vmatprep.subr.mxu0 0.0
    %3059 = vmatpush1.msra.mxu0 0.0
    %3060 = vmatprep.subr.mxu0 0.0
    %3061 = vmatpush1.msra.mxu0 0.0
    %3062 = vmatprep.subr.mxu0 0.0
    %3063 = vmatpush1.msra.mxu0 0.0
    %3064 = vmatprep.subr.mxu0 0.0
    %3065 = vmatpush1.msra.mxu0 0.0
    %3066 = vmatprep.subr.mxu0 0.0
    %3067 = vmatpush1.msra.mxu0 0.0
    %3068 = vmatprep.subr.mxu0 0.0
    %3069 = vmatpush1.msra.mxu0 0.0
    %3070 = vmatprep.subr.mxu0 0.0
    %3071 = vmatpush1.msra.mxu0 0.0
    %3072 = vmatprep.subr.mxu0 0.0
    %3073 = vmatpush1.msra.mxu0 0.0
    %3074 = vmatprep.subr.mxu0 0.0
    %3075 = vmatpush1.msra.mxu0 0.0
    %3076 = vmatprep.subr.mxu0 0.0
    %3077 = vmatpush1.msra.mxu0 0.0
    %3078 = vmatprep.subr.mxu0 0.0
    %3079 = vmatpush1.msra.mxu0 0.0
    %3080 = vmatprep.subr.mxu0 0.0
    %3081 = vmatpush1.msra.mxu0 0.0
    %3082 = vmatprep.subr.mxu0 0.0
    %3083 = vmatpush1.msra.mxu0 0.0
    %3084 = vmatprep.subr.mxu0 0.0
    %3085 = vmatpush1.msra.mxu0 0.0
    %3086 = vmatprep.subr.mxu0 0.0
    %3087 = vmatpush1.msra.mxu0 0.0
    %3088 = vmatprep.subr.mxu0 0.0
    %3089 = vmatpush1.msra.mxu0 0.0
    %3090 = vmatprep.subr.mxu0 0.0
    %3091 = vmatpush1.msra.mxu0 0.0
    %3092 = vmatprep.subr.mxu0 0.0
    %3093 = vmatpush1.msra.mxu0 0.0
    %3094 = vmatprep.mubr.f32.mxu0 0.0
    %3095 = vmatmul.mubr.f32.gmra.mrb[0].mxu0 %v3025
    %v3096 = vpop.f32.mrb[0].mxu0
    %v3097 = vadd.f32 0.0, %v3096
    %v3098 = vpop.f32.mrb[0].mxu0
    %v3099 = vadd.f32 0.0, %v3098
    %3100 = vmatprep.mubr.f32.mxu0 0.0
    %3101 = vmatmul.mubr.f32.gmra.mrb[0].mxu0 %v3028
    %v3102 = vpop.f32.mrb[0].mxu0
    %v3103 = vadd.f32 0.0, %v3102
    %v3104 = vpop.f32.mrb[0].mxu0
    %v3105 = vadd.f32 0.0, %v3104
    %3106 = vdwg.mxu0
    %v3107 = vld [vmem:[%s6] sm:$0xff]
    %v3108 = vld [vmem:[%s6 + $0x8] sm:$0xff]
    %v3109 = vld [vmem:[%s6 + $0x10] sm:$0xff]
    %v3110 = vld [vmem:[%s6 + $0x18] sm:$0xff]
    %v3111 = vld [vmem:[%s6 + $0x20] sm:$0xff]
    %v3112 = vld [vmem:[%s6 + $0x28] sm:$0xff]
    %v3113 = vld [vmem:[%s6 + $0x30] sm:$0xff]
    %v3114 = vld [vmem:[%s6 + $0x38] sm:$0xff]
    %v3115 = vld [vmem:[%s6 + $0x40] sm:$0xff]
    %v3116 = vld [vmem:[%s6 + $0x48] sm:$0xff]
    %v3117 = vld [vmem:[%s6 + $0x50] sm:$0xff]
    %v3118 = vld [vmem:[%s6 + $0x58] sm:$0xff]
    %v3119 = vld [vmem:[%s6 + $0x60] sm:$0xff]
    %v3120 = vld [vmem:[%s6 + $0x68] sm:$0xff]
    %v3121 = vld [vmem:[%s6 + $0x70] sm:$0xff]
    %v3122 = vld [vmem:[%s6 + $0x78] sm:$0xff]
    %v3123 = vld [vmem:[%s6 + $0x80] sm:$0xff]
    %v3124 = vld [vmem:[%s6 + $0x88] sm:$0xff]
    %v3125 = vld [vmem:[%s6 + $0x90] sm:$0xff]
    %v3126 = vld [vmem:[%s6 + $0x98] sm:$0xff]
    %v3127 = vld [vmem:[%s6 + $0xa0] sm:$0xff]
    %v3128 = vld [vmem:[%s6 + $0xa8] sm:$0xff]
    %v3129 = vld [vmem:[%s6 + $0xb0] sm:$0xf]
    %v3131 = vsel %vm630, %v3014, 0
    %v3134 = vsel %vm630, %v3020, 0
    %v3137 = vsel %vm637, %v3129, 0
    %3139 = vmatprep.subr.mxu0 0.0
    %3140 = vmatpush1.msra.mxu0 %v3107
    %3141 = vmatprep.subr.mxu0 0.0
    %3142 = vmatpush1.msra.mxu0 %v3108
    %3143 = vmatprep.subr.mxu0 0.0
    %3144 = vmatpush1.msra.mxu0 %v3109
    %3145 = vmatprep.subr.mxu0 0.0
    %3146 = vmatpush1.msra.mxu0 %v3110
    %3147 = vmatprep.subr.mxu0 0.0
    %3148 = vmatpush1.msra.mxu0 %v3111
    %3149 = vmatprep.subr.mxu0 0.0
    %3150 = vmatpush1.msra.mxu0 %v3112
    %3151 = vmatprep.subr.mxu0 0.0
    %3152 = vmatpush1.msra.mxu0 %v3113
    %3153 = vmatprep.subr.mxu0 0.0
    %3154 = vmatpush1.msra.mxu0 %v3114
    %3155 = vmatprep.subr.mxu0 0.0
    %3156 = vmatpush1.msra.mxu0 %v3115
    %3157 = vmatprep.subr.mxu0 0.0
    %3158 = vmatpush1.msra.mxu0 %v3116
    %3159 = vmatprep.subr.mxu0 0.0
    %3160 = vmatpush1.msra.mxu0 %v3117
    %3161 = vmatprep.subr.mxu0 0.0
    %3162 = vmatpush1.msra.mxu0 %v3118
    %3163 = vmatprep.subr.mxu0 0.0
    %3164 = vmatpush1.msra.mxu0 %v3119
    %3165 = vmatprep.subr.mxu0 0.0
    %3166 = vmatpush1.msra.mxu0 %v3120
    %3167 = vmatprep.subr.mxu0 0.0
    %3168 = vmatpush1.msra.mxu0 %v3121
    %3169 = vmatprep.subr.mxu0 0.0
    %3170 = vmatpush1.msra.mxu0 %v3122
    %3171 = vmatprep.subr.mxu0 0.0
    %3172 = vmatpush1.msra.mxu0 %v3123
    %3173 = vmatprep.subr.mxu0 0.0
    %3174 = vmatpush1.msra.mxu0 %v3124
    %3175 = vmatprep.subr.mxu0 0.0
    %3176 = vmatpush1.msra.mxu0 %v3125
    %3177 = vmatprep.subr.mxu0 0.0
    %3178 = vmatpush1.msra.mxu0 %v3126
    %3179 = vmatprep.subr.mxu0 0.0
    %3180 = vmatpush1.msra.mxu0 %v3127
    %3181 = vmatprep.subr.mxu0 0.0
    %3182 = vmatpush1.msra.mxu0 %v3128
    %3183 = vmatprep.subr.mxu0 0.0
    %3184 = vmatpush1.msra.mxu0 %v3137
    %3185 = vmatprep.subr.mxu0 0.0
    %3186 = vmatpush1.msra.mxu0 0.0
    %3187 = vmatprep.subr.mxu0 0.0
    %3188 = vmatpush1.msra.mxu0 0.0
    %3189 = vmatprep.subr.mxu0 0.0
    %3190 = vmatpush1.msra.mxu0 0.0
    %3191 = vmatprep.subr.mxu0 0.0
    %3192 = vmatpush1.msra.mxu0 0.0
    %3193 = vmatprep.subr.mxu0 0.0
    %3194 = vmatpush1.msra.mxu0 0.0
    %3195 = vmatprep.subr.mxu0 0.0
    %3196 = vmatpush1.msra.mxu0 0.0
    %3197 = vmatprep.subr.mxu0 0.0
    %3198 = vmatpush1.msra.mxu0 0.0
    %3199 = vmatprep.subr.mxu0 0.0
    %3200 = vmatpush1.msra.mxu0 0.0
    %3201 = vmatprep.subr.mxu0 0.0
    %3202 = vmatpush1.msra.mxu0 0.0
    %3203 = vmatprep.mubr.f32.mxu0 %v3131
    %3204 = vmatmul.mubr.f32.gmra.mrb[0].mxu0 %v3012
    %v3205 = vpop.f32.mrb[0].mxu0
    %v3206 = vadd.f32 0.0, %v3205
    %v3207 = vpop.f32.mrb[0].mxu0
    %3208 = vmatprep.mubr.f32.mxu0 %v3134
    %3209 = vmatmul.mubr.f32.gmra.mrb[0].mxu0 %v3018
    %v3210 = vpop.f32.mrb[0].mxu0
    %v3211 = vadd.f32 0.0, %v3210
    %v3212 = vpop.f32.mrb[0].mxu0
    %3213 = vdwg.mxu0
    %v3214 = vld [vmem:[%s716] sm:$0xff]
    %v3215 = vld [vmem:[%s716 + $0x8] sm:$0xff]
    %v3216 = vld [vmem:[%s716 + $0x10] sm:$0xff]
    %v3217 = vld [vmem:[%s716 + $0x18] sm:$0xff]
    %v3218 = vld [vmem:[%s716 + $0x20] sm:$0xff]
    %v3219 = vld [vmem:[%s716 + $0x28] sm:$0xff]
    %v3220 = vld [vmem:[%s716 + $0x30] sm:$0xff]
    %v3221 = vld [vmem:[%s716 + $0x38] sm:$0xff]
    %v3222 = vld [vmem:[%s716 + $0x40] sm:$0xff]
    %v3223 = vld [vmem:[%s716 + $0x48] sm:$0xff]
    %v3224 = vld [vmem:[%s716 + $0x50] sm:$0xff]
    %v3225 = vld [vmem:[%s716 + $0x58] sm:$0xff]
    %v3226 = vld [vmem:[%s716 + $0x60] sm:$0xff]
    %v3227 = vld [vmem:[%s716 + $0x68] sm:$0xff]
    %v3228 = vld [vmem:[%s716 + $0x70] sm:$0xff]
    %v3229 = vld [vmem:[%s716 + $0x78] sm:$0xff]
    %v3230 = vld [vmem:[%s716 + $0x80] sm:$0xff]
    %v3231 = vld [vmem:[%s716 + $0x88] sm:$0xff]
    %v3232 = vld [vmem:[%s716 + $0x90] sm:$0xff]
    %v3233 = vld [vmem:[%s716 + $0x98] sm:$0xff]
    %v3234 = vld [vmem:[%s716 + $0xa0] sm:$0xff]
    %v3235 = vld [vmem:[%s716 + $0xa8] sm:$0xff]
    %v3236 = vld [vmem:[%s716 + $0xb0] sm:$0xf]
    %v3238 = vsel %vm637, %v3236, 0
    %3240 = vmatprep.subr.mxu0 0.0
    %3241 = vmatpush1.msra.mxu0 %v3214
    %3242 = vmatprep.subr.mxu0 0.0
    %3243 = vmatpush1.msra.mxu0 %v3215
    %3244 = vmatprep.subr.mxu0 0.0
    %3245 = vmatpush1.msra.mxu0 %v3216
    %3246 = vmatprep.subr.mxu0 0.0
    %3247 = vmatpush1.msra.mxu0 %v3217
    %3248 = vmatprep.subr.mxu0 0.0
    %3249 = vmatpush1.msra.mxu0 %v3218
    %3250 = vmatprep.subr.mxu0 0.0
    %3251 = vmatpush1.msra.mxu0 %v3219
    %3252 = vmatprep.subr.mxu0 0.0
    %3253 = vmatpush1.msra.mxu0 %v3220
    %3254 = vmatprep.subr.mxu0 0.0
    %3255 = vmatpush1.msra.mxu0 %v3221
    %3256 = vmatprep.subr.mxu0 0.0
    %3257 = vmatpush1.msra.mxu0 %v3222
    %3258 = vmatprep.subr.mxu0 0.0
    %3259 = vmatpush1.msra.mxu0 %v3223
    %3260 = vmatprep.subr.mxu0 0.0
    %3261 = vmatpush1.msra.mxu0 %v3224
    %3262 = vmatprep.subr.mxu0 0.0
    %3263 = vmatpush1.msra.mxu0 %v3225
    %3264 = vmatprep.subr.mxu0 0.0
    %3265 = vmatpush1.msra.mxu0 %v3226
    %3266 = vmatprep.subr.mxu0 0.0
    %3267 = vmatpush1.msra.mxu0 %v3227
    %3268 = vmatprep.subr.mxu0 0.0
    %3269 = vmatpush1.msra.mxu0 %v3228
    %3270 = vmatprep.subr.mxu0 0.0
    %3271 = vmatpush1.msra.mxu0 %v3229
    %3272 = vmatprep.subr.mxu0 0.0
    %3273 = vmatpush1.msra.mxu0 %v3230
    %3274 = vmatprep.subr.mxu0 0.0
    %3275 = vmatpush1.msra.mxu0 %v3231
    %3276 = vmatprep.subr.mxu0 0.0
    %3277 = vmatpush1.msra.mxu0 %v3232
    %3278 = vmatprep.subr.mxu0 0.0
    %3279 = vmatpush1.msra.mxu0 %v3233
    %3280 = vmatprep.subr.mxu0 0.0
    %3281 = vmatpush1.msra.mxu0 %v3234
    %3282 = vmatprep.subr.mxu0 0.0
    %3283 = vmatpush1.msra.mxu0 %v3235
    %3284 = vmatprep.subr.mxu0 0.0
    %3285 = vmatpush1.msra.mxu0 %v3238
    %3286 = vmatprep.subr.mxu0 0.0
    %3287 = vmatpush1.msra.mxu0 0.0
    %3288 = vmatprep.subr.mxu0 0.0
    %3289 = vmatpush1.msra.mxu0 0.0
    %3290 = vmatprep.subr.mxu0 0.0
    %3291 = vmatpush1.msra.mxu0 0.0
    %3292 = vmatprep.subr.mxu0 0.0
    %3293 = vmatpush1.msra.mxu0 0.0
    %3294 = vmatprep.subr.mxu0 0.0
    %3295 = vmatpush1.msra.mxu0 0.0
    %3296 = vmatprep.subr.mxu0 0.0
    %3297 = vmatpush1.msra.mxu0 0.0
    %3298 = vmatprep.subr.mxu0 0.0
    %3299 = vmatpush1.msra.mxu0 0.0
    %3300 = vmatprep.subr.mxu0 0.0
    %3301 = vmatpush1.msra.mxu0 0.0
    %3302 = vmatprep.subr.mxu0 0.0
    %3303 = vmatpush1.msra.mxu0 0.0
    %3304 = vmatprep.mubr.f32.mxu0 %v3131
    %3305 = vmatmul.mubr.f32.gmra.mrb[0].mxu0 %v3012
    %v3306 = vpop.f32.mrb[0].mxu0
    %v3307 = vadd.f32 0.0, %v3306
    %v3308 = vpop.f32.mrb[0].mxu0
    %3309 = vmatprep.mubr.f32.mxu0 %v3134
    %3310 = vmatmul.mubr.f32.gmra.mrb[0].mxu0 %v3018
    %v3311 = vpop.f32.mrb[0].mxu0
    %v3312 = vadd.f32 0.0, %v3311
    %v3313 = vpop.f32.mrb[0].mxu0
    %3314 = vdwg.mxu0
    %v3315 = vmax.f32 %v3206, %v3307
    %v3316 = vmax.f32 %v3211, %v3312
    %v3318 = vsel %vm630, %v3099, 0
    %v3321 = vsel %vm630, %v3105, 0
    %3323 = vmatprep.subr.mxu0 0.0
    %3324 = vmatpush1.msra.mxu0 %v3107
    %3325 = vmatprep.subr.mxu0 0.0
    %3326 = vmatpush1.msra.mxu0 %v3108
    %3327 = vmatprep.subr.mxu0 0.0
    %3328 = vmatpush1.msra.mxu0 %v3109
    %3329 = vmatprep.subr.mxu0 0.0
    %3330 = vmatpush1.msra.mxu0 %v3110
    %3331 = vmatprep.subr.mxu0 0.0
    %3332 = vmatpush1.msra.mxu0 %v3111
    %3333 = vmatprep.subr.mxu0 0.0
    %3334 = vmatpush1.msra.mxu0 %v3112
    %3335 = vmatprep.subr.mxu0 0.0
    %3336 = vmatpush1.msra.mxu0 %v3113
    %3337 = vmatprep.subr.mxu0 0.0
    %3338 = vmatpush1.msra.mxu0 %v3114
    %3339 = vmatprep.subr.mxu0 0.0
    %3340 = vmatpush1.msra.mxu0 %v3115
    %3341 = vmatprep.subr.mxu0 0.0
    %3342 = vmatpush1.msra.mxu0 %v3116
    %3343 = vmatprep.subr.mxu0 0.0
    %3344 = vmatpush1.msra.mxu0 %v3117
    %3345 = vmatprep.subr.mxu0 0.0
    %3346 = vmatpush1.msra.mxu0 %v3118
    %3347 = vmatprep.subr.mxu0 0.0
    %3348 = vmatpush1.msra.mxu0 %v3119
    %3349 = vmatprep.subr.mxu0 0.0
    %3350 = vmatpush1.msra.mxu0 %v3120
    %3351 = vmatprep.subr.mxu0 0.0
    %3352 = vmatpush1.msra.mxu0 %v3121
    %3353 = vmatprep.subr.mxu0 0.0
    %3354 = vmatpush1.msra.mxu0 %v3122
    %3355 = vmatprep.subr.mxu0 0.0
    %3356 = vmatpush1.msra.mxu0 %v3123
    %3357 = vmatprep.subr.mxu0 0.0
    %3358 = vmatpush1.msra.mxu0 %v3124
    %3359 = vmatprep.subr.mxu0 0.0
    %3360 = vmatpush1.msra.mxu0 %v3125
    %3361 = vmatprep.subr.mxu0 0.0
    %3362 = vmatpush1.msra.mxu0 %v3126
    %3363 = vmatprep.subr.mxu0 0.0
    %3364 = vmatpush1.msra.mxu0 %v3127
    %3365 = vmatprep.subr.mxu0 0.0
    %3366 = vmatpush1.msra.mxu0 %v3128
    %3367 = vmatprep.subr.mxu0 0.0
    %3368 = vmatpush1.msra.mxu0 %v3137
    %3369 = vmatprep.subr.mxu0 0.0
    %3370 = vmatpush1.msra.mxu0 0.0
    %3371 = vmatprep.subr.mxu0 0.0
    %3372 = vmatpush1.msra.mxu0 0.0
    %3373 = vmatprep.subr.mxu0 0.0
    %3374 = vmatpush1.msra.mxu0 0.0
    %3375 = vmatprep.subr.mxu0 0.0
    %3376 = vmatpush1.msra.mxu0 0.0
    %3377 = vmatprep.subr.mxu0 0.0
    %3378 = vmatpush1.msra.mxu0 0.0
    %3379 = vmatprep.subr.mxu0 0.0
    %3380 = vmatpush1.msra.mxu0 0.0
    %3381 = vmatprep.subr.mxu0 0.0
    %3382 = vmatpush1.msra.mxu0 0.0
    %3383 = vmatprep.subr.mxu0 0.0
    %3384 = vmatpush1.msra.mxu0 0.0
    %3385 = vmatprep.subr.mxu0 0.0
    %3386 = vmatpush1.msra.mxu0 0.0
    %3387 = vmatprep.mubr.f32.mxu0 %v3318
    %3388 = vmatmul.mubr.f32.gmra.mrb[0].mxu0 %v3097
    %v3389 = vpop.f32.mrb[0].mxu0
    %v3390 = vadd.f32 0.0, %v3389
    %v3391 = vpop.f32.mrb[0].mxu0
    %3392 = vmatprep.mubr.f32.mxu0 %v3321
    %3393 = vmatmul.mubr.f32.gmra.mrb[0].mxu0 %v3103
    %v3394 = vpop.f32.mrb[0].mxu0
    %v3395 = vadd.f32 0.0, %v3394
    %v3396 = vpop.f32.mrb[0].mxu0
    %3397 = vdwg.mxu0
    %v3398 = vmax.f32 %v3315, %v3390
    %v3399 = vmax.f32 %v3316, %v3395
    %3400 = vmatprep.subr.mxu0 0.0
    %3401 = vmatpush1.msra.mxu0 %v3214
    %3402 = vmatprep.subr.mxu0 0.0
    %3403 = vmatpush1.msra.mxu0 %v3215
    %3404 = vmatprep.subr.mxu0 0.0
    %3405 = vmatpush1.msra.mxu0 %v3216
    %3406 = vmatprep.subr.mxu0 0.0
    %3407 = vmatpush1.msra.mxu0 %v3217
    %3408 = vmatprep.subr.mxu0 0.0
    %3409 = vmatpush1.msra.mxu0 %v3218
    %3410 = vmatprep.subr.mxu0 0.0
    %3411 = vmatpush1.msra.mxu0 %v3219
    %3412 = vmatprep.subr.mxu0 0.0
    %3413 = vmatpush1.msra.mxu0 %v3220
    %3414 = vmatprep.subr.mxu0 0.0
    %3415 = vmatpush1.msra.mxu0 %v3221
    %3416 = vmatprep.subr.mxu0 0.0
    %3417 = vmatpush1.msra.mxu0 %v3222
    %3418 = vmatprep.subr.mxu0 0.0
    %3419 = vmatpush1.msra.mxu0 %v3223
    %3420 = vmatprep.subr.mxu0 0.0
    %3421 = vmatpush1.msra.mxu0 %v3224
    %3422 = vmatprep.subr.mxu0 0.0
    %3423 = vmatpush1.msra.mxu0 %v3225
    %3424 = vmatprep.subr.mxu0 0.0
    %3425 = vmatpush1.msra.mxu0 %v3226
    %3426 = vmatprep.subr.mxu0 0.0
    %3427 = vmatpush1.msra.mxu0 %v3227
    %3428 = vmatprep.subr.mxu0 0.0
    %3429 = vmatpush1.msra.mxu0 %v3228
    %3430 = vmatprep.subr.mxu0 0.0
    %3431 = vmatpush1.msra.mxu0 %v3229
    %3432 = vmatprep.subr.mxu0 0.0
    %3433 = vmatpush1.msra.mxu0 %v3230
    %3434 = vmatprep.subr.mxu0 0.0
    %3435 = vmatpush1.msra.mxu0 %v3231
    %3436 = vmatprep.subr.mxu0 0.0
    %3437 = vmatpush1.msra.mxu0 %v3232
    %3438 = vmatprep.subr.mxu0 0.0
    %3439 = vmatpush1.msra.mxu0 %v3233
    %3440 = vmatprep.subr.mxu0 0.0
    %3441 = vmatpush1.msra.mxu0 %v3234
    %3442 = vmatprep.subr.mxu0 0.0
    %3443 = vmatpush1.msra.mxu0 %v3235
    %3444 = vmatprep.subr.mxu0 0.0
    %3445 = vmatpush1.msra.mxu0 %v3238
    %3446 = vmatprep.subr.mxu0 0.0
    %3447 = vmatpush1.msra.mxu0 0.0
    %3448 = vmatprep.subr.mxu0 0.0
    %3449 = vmatpush1.msra.mxu0 0.0
    %3450 = vmatprep.subr.mxu0 0.0
    %3451 = vmatpush1.msra.mxu0 0.0
    %3452 = vmatprep.subr.mxu0 0.0
    %3453 = vmatpush1.msra.mxu0 0.0
    %3454 = vmatprep.subr.mxu0 0.0
    %3455 = vmatpush1.msra.mxu0 0.0
    %3456 = vmatprep.subr.mxu0 0.0
    %3457 = vmatpush1.msra.mxu0 0.0
    %3458 = vmatprep.subr.mxu0 0.0
    %3459 = vmatpush1.msra.mxu0 0.0
    %3460 = vmatprep.subr.mxu0 0.0
    %3461 = vmatpush1.msra.mxu0 0.0
    %3462 = vmatprep.subr.mxu0 0.0
    %3463 = vmatpush1.msra.mxu0 0.0
    %3464 = vmatprep.mubr.f32.mxu0 %v3318
    %3465 = vmatmul.mubr.f32.gmra.mrb[0].mxu0 %v3097
    %v3466 = vpop.f32.mrb[0].mxu0
    %v3467 = vadd.f32 0.0, %v3466
    %v3468 = vpop.f32.mrb[0].mxu0
    %3469 = vmatprep.mubr.f32.mxu0 %v3321
    %3470 = vmatmul.mubr.f32.gmra.mrb[0].mxu0 %v3103
    %v3471 = vpop.f32.mrb[0].mxu0
    %v3472 = vadd.f32 0.0, %v3471
    %v3473 = vpop.f32.mrb[0].mxu0
    %3474 = vdwg.mxu0
    %v3475 = vmax.f32 %v3398, %v3467
    %v3476 = vmax.f32 %v3399, %v3472
    %v3477 = vld [vmem:[%s3] sm:$0xff]
    %v3478 = vld [vmem:[%s3 + $0x8] sm:$0xff]
    %v3479 = vld [vmem:[%s3 + $0x10] sm:$0xff]
    %v3480 = vld [vmem:[%s3 + $0x18] sm:$0xff]
    %v3481 = vld [vmem:[%s3 + $0x20] sm:$0xff]
    %v3482 = vld [vmem:[%s3 + $0x28] sm:$0xff]
    %v3483 = vld [vmem:[%s3 + $0x30] sm:$0xff]
    %v3484 = vld [vmem:[%s3 + $0x38] sm:$0xff]
    %v3485 = vld [vmem:[%s3 + $0x40] sm:$0xff]
    %v3486 = vld [vmem:[%s3 + $0x48] sm:$0xff]
    %v3487 = vld [vmem:[%s3 + $0x50] sm:$0xff]
    %v3488 = vld [vmem:[%s3 + $0x58] sm:$0xff]
    %v3489 = vld [vmem:[%s3 + $0x60] sm:$0xff]
    %v3490 = vld [vmem:[%s3 + $0x68] sm:$0xff]
    %v3491 = vld [vmem:[%s3 + $0x70] sm:$0xff]
    %v3492 = vld [vmem:[%s3 + $0x78] sm:$0xff]
    %v3493 = vld [vmem:[%s3 + $0x80] sm:$0xff]
    %v3494 = vld [vmem:[%s3 + $0x88] sm:$0xff]
    %v3495 = vld [vmem:[%s3 + $0x90] sm:$0xff]
    %v3496 = vld [vmem:[%s3 + $0x98] sm:$0xff]
    %v3497 = vld [vmem:[%s3 + $0xa0] sm:$0xff]
    %v3498 = vld [vmem:[%s3 + $0xa8] sm:$0xff]
    %v3499 = vld [vmem:[%s3 + $0xb0] sm:$0x3]
    %v3500 = vld [vmem:[%s3 + $0xb8] sm:$0x3]
    %v3501 = vld [vmem:[%s1004] sm:$0xff]
    %v3502 = vld [vmem:[%s1004 + $0x8] sm:$0xff]
    %v3503 = vld [vmem:[%s1004 + $0x10] sm:$0xff]
    %v3504 = vld [vmem:[%s1004 + $0x18] sm:$0xff]
    %v3505 = vld [vmem:[%s1004 + $0x20] sm:$0xff]
    %v3506 = vld [vmem:[%s1004 + $0x28] sm:$0xff]
    %v3507 = vld [vmem:[%s1004 + $0x30] sm:$0xff]
    %v3508 = vld [vmem:[%s1004 + $0x38] sm:$0xff]
    %v3509 = vld [vmem:[%s1004 + $0x40] sm:$0xff]
    %v3510 = vld [vmem:[%s1004 + $0x48] sm:$0xff]
    %v3511 = vld [vmem:[%s1004 + $0x50] sm:$0xff]
    %v3512 = vld [vmem:[%s1004 + $0x58] sm:$0xff]
    %v3513 = vld [vmem:[%s1004 + $0x60] sm:$0xff]
    %v3514 = vld [vmem:[%s1004 + $0x68] sm:$0xff]
    %v3515 = vld [vmem:[%s1004 + $0x70] sm:$0xff]
    %v3516 = vld [vmem:[%s1004 + $0x78] sm:$0xff]
    %v3517 = vld [vmem:[%s1004 + $0x80] sm:$0xff]
    %v3518 = vld [vmem:[%s1004 + $0x88] sm:$0xff]
    %v3519 = vld [vmem:[%s1004 + $0x90] sm:$0xff]
    %v3520 = vld [vmem:[%s1004 + $0x98] sm:$0xff]
    %v3521 = vld [vmem:[%s1004 + $0xa0] sm:$0xff]
    %v3522 = vld [vmem:[%s1004 + $0xa8] sm:$0xff]
    %v3523 = vld [vmem:[%s1004 + $0xb0] sm:$0x3]
    %v3524 = vld [vmem:[%s1004 + $0xb8] sm:$0x3]
    %v3527 = vrot.slane %v3475, 1
    %v3528 = vrot.slane %v3476, 1
    %v3529 = vsel %vm76, %v3527, %v3528
    %v3530 = vsel %vm1034, %v3529, 0
    %v3532 = vsel %vm1034, %v3528, 0
    %v3535 = vsel %vm1039, %v3523, 0
    %v3538 = vsel %vm1039, %v3524, 0
    %3540 = vmatprep.subr.mxu0 %v3502
    %3541 = vmatpush1.msra.mxu0 %v3501
    %3542 = vmatprep.subr.mxu0 %v3504
    %3543 = vmatpush1.msra.mxu0 %v3503
    %3544 = vmatprep.subr.mxu0 %v3506
    %3545 = vmatpush1.msra.mxu0 %v3505
    %3546 = vmatprep.subr.mxu0 %v3508
    %3547 = vmatpush1.msra.mxu0 %v3507
    %3548 = vmatprep.subr.mxu0 %v3510
    %3549 = vmatpush1.msra.mxu0 %v3509
    %3550 = vmatprep.subr.mxu0 %v3512
    %3551 = vmatpush1.msra.mxu0 %v3511
    %3552 = vmatprep.subr.mxu0 %v3514
    %3553 = vmatpush1.msra.mxu0 %v3513
    %3554 = vmatprep.subr.mxu0 %v3516
    %3555 = vmatpush1.msra.mxu0 %v3515
    %3556 = vmatprep.subr.mxu0 %v3518
    %3557 = vmatpush1.msra.mxu0 %v3517
    %3558 = vmatprep.subr.mxu0 %v3520
    %3559 = vmatpush1.msra.mxu0 %v3519
    %3560 = vmatprep.subr.mxu0 %v3522
    %3561 = vmatpush1.msra.mxu0 %v3521
    %3562 = vmatprep.subr.mxu0 %v3538
    %3563 = vmatpush1.msra.mxu0 %v3535
    %3564 = vmatprep.subr.mxu0 0.0
    %3565 = vmatpush1.msra.mxu0 0.0
    %3566 = vmatprep.subr.mxu0 0.0
    %3567 = vmatpush1.msra.mxu0 0.0
    %3568 = vmatprep.subr.mxu0 0.0
    %3569 = vmatpush1.msra.mxu0 0.0
    %3570 = vmatprep.subr.mxu0 0.0
    %3571 = vmatpush1.msra.mxu0 0.0
    %3572 = vmatprep.subr.mxu0 0.0
    %3573 = vmatpush1.msra.mxu0 0.0
    %3574 = vmatprep.subr.mxu0 0.0
    %3575 = vmatpush1.msra.mxu0 0.0
    %3576 = vmatprep.subr.mxu0 0.0
    %3577 = vmatpush1.msra.mxu0 0.0
    %3578 = vmatprep.subr.mxu0 0.0
    %3579 = vmatpush1.msra.mxu0 0.0
    %3580 = vmatprep.subr.mxu0 0.0
    %3581 = vmatpush1.msra.mxu0 0.0
    %3582 = vmatprep.subr.mxu0 0.0
    %3583 = vmatpush1.msra.mxu0 0.0
    %3584 = vmatprep.subr.mxu0 0.0
    %3585 = vmatpush1.msra.mxu0 0.0
    %3586 = vmatprep.subr.mxu0 0.0
    %3587 = vmatpush1.msra.mxu0 0.0
    %3588 = vmatprep.subr.mxu0 0.0
    %3589 = vmatpush1.msra.mxu0 0.0
    %3590 = vmatprep.subr.mxu0 0.0
    %3591 = vmatpush1.msra.mxu0 0.0
    %3592 = vmatprep.subr.mxu0 0.0
    %3593 = vmatpush1.msra.mxu0 0.0
    %3594 = vmatprep.subr.mxu0 0.0
    %3595 = vmatpush1.msra.mxu0 0.0
    %3596 = vmatprep.subr.mxu0 0.0
    %3597 = vmatpush1.msra.mxu0 0.0
    %3598 = vmatprep.subr.mxu0 0.0
    %3599 = vmatpush1.msra.mxu0 0.0
    %3600 = vmatprep.subr.mxu0 0.0
    %3601 = vmatpush1.msra.mxu0 0.0
    %3602 = vmatprep.subr.mxu0 0.0
    %3603 = vmatpush1.msra.mxu0 0.0
    %3604 = vmatprep.mubr.f32.mxu0 0.0
    %3605 = vmatmul.mubr.f32.gmra.mrb[0].mxu0 %v3530
    %v3606 = vpop.f32.mrb[0].mxu0
    %v3607 = vadd.f32 0.0, %v3606
    %v3608 = vpop.f32.mrb[0].mxu0
    %v3609 = vadd.f32 0.0, %v3608
    %3610 = vmatprep.mubr.f32.mxu0 0.0
    %3611 = vmatmul.mubr.f32.gmra.mrb[0].mxu0 %v3532
    %v3612 = vpop.f32.mrb[0].mxu0
    %v3613 = vadd.f32 0.0, %v3612
    %v3614 = vpop.f32.mrb[0].mxu0
    %v3615 = vadd.f32 0.0, %v3614
    %3616 = vdwg.mxu0
    %v3617 = vsel %vm1034, %v3475, 0
    %v3619 = vsel %vm1034, %v3476, 0
    %v3622 = vsel %vm1039, %v3499, 0
    %v3625 = vsel %vm1039, %v3500, 0
    %3627 = vmatprep.subr.mxu0 %v3478
    %3628 = vmatpush1.msra.mxu0 %v3477
    %3629 = vmatprep.subr.mxu0 %v3480
    %3630 = vmatpush1.msra.mxu0 %v3479
    %3631 = vmatprep.subr.mxu0 %v3482
    %3632 = vmatpush1.msra.mxu0 %v3481
    %3633 = vmatprep.subr.mxu0 %v3484
    %3634 = vmatpush1.msra.mxu0 %v3483
    %3635 = vmatprep.subr.mxu0 %v3486
    %3636 = vmatpush1.msra.mxu0 %v3485
    %3637 = vmatprep.subr.mxu0 %v3488
    %3638 = vmatpush1.msra.mxu0 %v3487
    %3639 = vmatprep.subr.mxu0 %v3490
    %3640 = vmatpush1.msra.mxu0 %v3489
    %3641 = vmatprep.subr.mxu0 %v3492
    %3642 = vmatpush1.msra.mxu0 %v3491
    %3643 = vmatprep.subr.mxu0 %v3494
    %3644 = vmatpush1.msra.mxu0 %v3493
    %3645 = vmatprep.subr.mxu0 %v3496
    %3646 = vmatpush1.msra.mxu0 %v3495
    %3647 = vmatprep.subr.mxu0 %v3498
    %3648 = vmatpush1.msra.mxu0 %v3497
    %3649 = vmatprep.subr.mxu0 %v3625
    %3650 = vmatpush1.msra.mxu0 %v3622
    %3651 = vmatprep.subr.mxu0 0.0
    %3652 = vmatpush1.msra.mxu0 0.0
    %3653 = vmatprep.subr.mxu0 0.0
    %3654 = vmatpush1.msra.mxu0 0.0
    %3655 = vmatprep.subr.mxu0 0.0
    %3656 = vmatpush1.msra.mxu0 0.0
    %3657 = vmatprep.subr.mxu0 0.0
    %3658 = vmatpush1.msra.mxu0 0.0
    %3659 = vmatprep.subr.mxu0 0.0
    %3660 = vmatpush1.msra.mxu0 0.0
    %3661 = vmatprep.subr.mxu0 0.0
    %3662 = vmatpush1.msra.mxu0 0.0
    %3663 = vmatprep.subr.mxu0 0.0
    %3664 = vmatpush1.msra.mxu0 0.0
    %3665 = vmatprep.subr.mxu0 0.0
    %3666 = vmatpush1.msra.mxu0 0.0
    %3667 = vmatprep.subr.mxu0 0.0
    %3668 = vmatpush1.msra.mxu0 0.0
    %3669 = vmatprep.subr.mxu0 0.0
    %3670 = vmatpush1.msra.mxu0 0.0
    %3671 = vmatprep.subr.mxu0 0.0
    %3672 = vmatpush1.msra.mxu0 0.0
    %3673 = vmatprep.subr.mxu0 0.0
    %3674 = vmatpush1.msra.mxu0 0.0
    %3675 = vmatprep.subr.mxu0 0.0
    %3676 = vmatpush1.msra.mxu0 0.0
    %3677 = vmatprep.subr.mxu0 0.0
    %3678 = vmatpush1.msra.mxu0 0.0
    %3679 = vmatprep.subr.mxu0 0.0
    %3680 = vmatpush1.msra.mxu0 0.0
    %3681 = vmatprep.subr.mxu0 0.0
    %3682 = vmatpush1.msra.mxu0 0.0
    %3683 = vmatprep.subr.mxu0 0.0
    %3684 = vmatpush1.msra.mxu0 0.0
    %3685 = vmatprep.subr.mxu0 0.0
    %3686 = vmatpush1.msra.mxu0 0.0
    %3687 = vmatprep.subr.mxu0 0.0
    %3688 = vmatpush1.msra.mxu0 0.0
    %3689 = vmatprep.subr.mxu0 0.0
    %3690 = vmatpush1.msra.mxu0 0.0
    %3691 = vmatprep.mubr.f32.mxu0 0.0
    %3692 = vmatmul.mubr.f32.gmra.mrb[0].mxu0 %v3617
    %v3693 = vpop.f32.mrb[0].mxu0
    %v3694 = vadd.f32 %v3607, %v3693
    %v3695 = vpop.f32.mrb[0].mxu0
    %v3696 = vadd.f32 %v3609, %v3695
    %3697 = vmatprep.mubr.f32.mxu0 0.0
    %3698 = vmatmul.mubr.f32.gmra.mrb[0].mxu0 %v3619
    %v3699 = vpop.f32.mrb[0].mxu0
    %v3700 = vadd.f32 %v3613, %v3699
    %v3701 = vpop.f32.mrb[0].mxu0
    %v3702 = vadd.f32 %v3615, %v3701
    %3703 = vdwg.mxu0
    %v3704 = vld [vmem:[%s1210] sm:$0xff]
    %v3705 = vld [vmem:[%s1210 + $0x8] sm:$0xff]
    %v3706 = vld [vmem:[%s1210 + $0x10] sm:$0xff]
    %v3707 = vld [vmem:[%s1210 + $0x18] sm:$0xff]
    %v3708 = vld [vmem:[%s1210 + $0x20] sm:$0xff]
    %v3709 = vld [vmem:[%s1210 + $0x28] sm:$0xff]
    %v3710 = vld [vmem:[%s1210 + $0x30] sm:$0xff]
    %v3711 = vld [vmem:[%s1210 + $0x38] sm:$0xff]
    %v3712 = vld [vmem:[%s1210 + $0x40] sm:$0xff]
    %v3713 = vld [vmem:[%s1210 + $0x48] sm:$0xff]
    %v3714 = vld [vmem:[%s1210 + $0x50] sm:$0xff]
    %v3715 = vld [vmem:[%s1210 + $0x58] sm:$0xff]
    %v3716 = vld [vmem:[%s1210 + $0x60] sm:$0xff]
    %v3717 = vld [vmem:[%s1210 + $0x68] sm:$0xff]
    %v3718 = vld [vmem:[%s1210 + $0x70] sm:$0xff]
    %v3719 = vld [vmem:[%s1210 + $0x78] sm:$0xff]
    %v3720 = vld [vmem:[%s1210 + $0x80] sm:$0xff]
    %v3721 = vld [vmem:[%s1210 + $0x88] sm:$0xff]
    %v3722 = vld [vmem:[%s1210 + $0x90] sm:$0xff]
    %v3723 = vld [vmem:[%s1210 + $0x98] sm:$0xff]
    %v3724 = vld [vmem:[%s1210 + $0xa0] sm:$0xff]
    %v3725 = vld [vmem:[%s1210 + $0xa8] sm:$0xff]
    %v3726 = vld [vmem:[%s1210 + $0xb0] sm:$0x3]
    %v3727 = vld [vmem:[%s1210 + $0xb8] sm:$0x3]
    %v3728 = vrot.slane %v3475, 2
    %v3729 = vrot.slane %v3476, 2
    %v3730 = vsel %vm288, %v3728, %v3729
    %v3731 = vsel %vm1034, %v3730, 0
    %v3733 = vsel %vm1034, %v3729, 0
    %v3736 = vsel %vm1039, %v3726, 0
    %v3739 = vsel %vm1039, %v3727, 0
    %3741 = vmatprep.subr.mxu0 %v3705
    %3742 = vmatpush1.msra.mxu0 %v3704
    %3743 = vmatprep.subr.mxu0 %v3707
    %3744 = vmatpush1.msra.mxu0 %v3706
    %3745 = vmatprep.subr.mxu0 %v3709
    %3746 = vmatpush1.msra.mxu0 %v3708
    %3747 = vmatprep.subr.mxu0 %v3711
    %3748 = vmatpush1.msra.mxu0 %v3710
    %3749 = vmatprep.subr.mxu0 %v3713
    %3750 = vmatpush1.msra.mxu0 %v3712
    %3751 = vmatprep.subr.mxu0 %v3715
    %3752 = vmatpush1.msra.mxu0 %v3714
    %3753 = vmatprep.subr.mxu0 %v3717
    %3754 = vmatpush1.msra.mxu0 %v3716
    %3755 = vmatprep.subr.mxu0 %v3719
    %3756 = vmatpush1.msra.mxu0 %v3718
    %3757 = vmatprep.subr.mxu0 %v3721
    %3758 = vmatpush1.msra.mxu0 %v3720
    %3759 = vmatprep.subr.mxu0 %v3723
    %3760 = vmatpush1.msra.mxu0 %v3722
    %3761 = vmatprep.subr.mxu0 %v3725
    %3762 = vmatpush1.msra.mxu0 %v3724
    %3763 = vmatprep.subr.mxu0 %v3739
    %3764 = vmatpush1.msra.mxu0 %v3736
    %3765 = vmatprep.subr.mxu0 0.0
    %3766 = vmatpush1.msra.mxu0 0.0
    %3767 = vmatprep.subr.mxu0 0.0
    %3768 = vmatpush1.msra.mxu0 0.0
    %3769 = vmatprep.subr.mxu0 0.0
    %3770 = vmatpush1.msra.mxu0 0.0
    %3771 = vmatprep.subr.mxu0 0.0
    %3772 = vmatpush1.msra.mxu0 0.0
    %3773 = vmatprep.subr.mxu0 0.0
    %3774 = vmatpush1.msra.mxu0 0.0
    %3775 = vmatprep.subr.mxu0 0.0
    %3776 = vmatpush1.msra.mxu0 0.0
    %3777 = vmatprep.subr.mxu0 0.0
    %3778 = vmatpush1.msra.mxu0 0.0
    %3779 = vmatprep.subr.mxu0 0.0
    %3780 = vmatpush1.msra.mxu0 0.0
    %3781 = vmatprep.subr.mxu0 0.0
    %3782 = vmatpush1.msra.mxu0 0.0
    %3783 = vmatprep.subr.mxu0 0.0
    %3784 = vmatpush1.msra.mxu0 0.0
    %3785 = vmatprep.subr.mxu0 0.0
    %3786 = vmatpush1.msra.mxu0 0.0
    %3787 = vmatprep.subr.mxu0 0.0
    %3788 = vmatpush1.msra.mxu0 0.0
    %3789 = vmatprep.subr.mxu0 0.0
    %3790 = vmatpush1.msra.mxu0 0.0
    %3791 = vmatprep.subr.mxu0 0.0
    %3792 = vmatpush1.msra.mxu0 0.0
    %3793 = vmatprep.subr.mxu0 0.0
    %3794 = vmatpush1.msra.mxu0 0.0
    %3795 = vmatprep.subr.mxu0 0.0
    %3796 = vmatpush1.msra.mxu0 0.0
    %3797 = vmatprep.subr.mxu0 0.0
    %3798 = vmatpush1.msra.mxu0 0.0
    %3799 = vmatprep.subr.mxu0 0.0
    %3800 = vmatpush1.msra.mxu0 0.0
    %3801 = vmatprep.subr.mxu0 0.0
    %3802 = vmatpush1.msra.mxu0 0.0
    %3803 = vmatprep.subr.mxu0 0.0
    %3804 = vmatpush1.msra.mxu0 0.0
    %3805 = vmatprep.mubr.f32.mxu0 0.0
    %3806 = vmatmul.mubr.f32.gmra.mrb[0].mxu0 %v3731
    %v3807 = vpop.f32.mrb[0].mxu0
    %v3808 = vadd.f32 0.0, %v3807
    %v3809 = vpop.f32.mrb[0].mxu0
    %v3810 = vadd.f32 0.0, %v3809
    %3811 = vmatprep.mubr.f32.mxu0 0.0
    %3812 = vmatmul.mubr.f32.gmra.mrb[0].mxu0 %v3733
    %v3813 = vpop.f32.mrb[0].mxu0
    %v3814 = vadd.f32 0.0, %v3813
    %v3815 = vpop.f32.mrb[0].mxu0
    %v3816 = vadd.f32 0.0, %v3815
    %3817 = vdwg.mxu0
    %v3818 = vadd.f32 %v3694, %v3808
    %v3819 = vadd.f32 %v3696, %v3810
    %v3820 = vadd.f32 %v3700, %v3814
    %v3821 = vadd.f32 %v3702, %v3816
    %v3822 = vld [vmem:[%s4] sm:$0x3]
    %v3824 = vlaneseq
    %v3825 = vshrl.u32 %v3824, 7
    %v3826 = vsub.s32 0, %v3825
    %v3827 = vrot.slane %v3822, %v3826
    %v3828 = vlaneseq
    %v3829 = vshrl.u32 %v3828, 7
    %v3830 = vsub.s32 1, %v3829
    %v3831 = vrot.slane %v3822, %v3830
    %v3834 = vadd.f32 %v3818, %v3827
    %v3835 = vadd.f32 %v3819, %v3831
    %v3836 = vadd.f32 %v3820, %v3827
    %v3837 = vadd.f32 %v3821, %v3831
    %v3838 = vmax.f32 %v3834, 0.0
    %v3839 = vmax.f32 %v3835, 0.0
    %v3840 = vmax.f32 %v3836, 0.0
    %v3841 = vmax.f32 %v3837, 0.0
    %v3842 = vld [vmem:[%s7] sm:$0x3f]
    %v3844 = vsel %vm1350, %v3842, 0
    %v3847 = vsel %vm1354, %v3840, 0
    %v3850 = vsel %vm1354, %v3841, 0
    %3852 = vmatprep.subr.mxu0 %v3839
    %3853 = vmatpush1.msra.mxu0 %v3838
    %3854 = vmatprep.subr.mxu0 %v3850
    %3855 = vmatpush1.msra.mxu0 %v3847
    %3856 = vmatprep.subr.mxu0 0.0
    %3857 = vmatpush1.msra.mxu0 0.0
    %3858 = vmatprep.subr.mxu0 0.0
    %3859 = vmatpush1.msra.mxu0 0.0
    %3860 = vmatprep.subr.mxu0 0.0
    %3861 = vmatpush1.msra.mxu0 0.0
    %3862 = vmatprep.subr.mxu0 0.0
    %3863 = vmatpush1.msra.mxu0 0.0
    %3864 = vmatprep.subr.mxu0 0.0
    %3865 = vmatpush1.msra.mxu0 0.0
    %3866 = vmatprep.subr.mxu0 0.0
    %3867 = vmatpush1.msra.mxu0 0.0
    %3868 = vmatprep.subr.mxu0 0.0
    %3869 = vmatpush1.msra.mxu0 0.0
    %3870 = vmatprep.subr.mxu0 0.0
    %3871 = vmatpush1.msra.mxu0 0.0
    %3872 = vmatprep.subr.mxu0 0.0
    %3873 = vmatpush1.msra.mxu0 0.0
    %3874 = vmatprep.subr.mxu0 0.0
    %3875 = vmatpush1.msra.mxu0 0.0
    %3876 = vmatprep.subr.mxu0 0.0
    %3877 = vmatpush1.msra.mxu0 0.0
    %3878 = vmatprep.subr.mxu0 0.0
    %3879 = vmatpush1.msra.mxu0 0.0
    %3880 = vmatprep.subr.mxu0 0.0
    %3881 = vmatpush1.msra.mxu0 0.0
    %3882 = vmatprep.subr.mxu0 0.0
    %3883 = vmatpush1.msra.mxu0 0.0
    %3884 = vmatprep.subr.mxu0 0.0
    %3885 = vmatpush1.msra.mxu0 0.0
    %3886 = vmatprep.subr.mxu0 0.0
    %3887 = vmatpush1.msra.mxu0 0.0
    %3888 = vmatprep.subr.mxu0 0.0
    %3889 = vmatpush1.msra.mxu0 0.0
    %3890 = vmatprep.subr.mxu0 0.0
    %3891 = vmatpush1.msra.mxu0 0.0
    %3892 = vmatprep.subr.mxu0 0.0
    %3893 = vmatpush1.msra.mxu0 0.0
    %3894 = vmatprep.subr.mxu0 0.0
    %3895 = vmatpush1.msra.mxu0 0.0
    %3896 = vmatprep.subr.mxu0 0.0
    %3897 = vmatpush1.msra.mxu0 0.0
    %3898 = vmatprep.subr.mxu0 0.0
    %3899 = vmatpush1.msra.mxu0 0.0
    %3900 = vmatprep.subr.mxu0 0.0
    %3901 = vmatpush1.msra.mxu0 0.0
    %3902 = vmatprep.subr.mxu0 0.0
    %3903 = vmatpush1.msra.mxu0 0.0
    %3904 = vmatprep.subr.mxu0 0.0
    %3905 = vmatpush1.msra.mxu0 0.0
    %3906 = vmatprep.subr.mxu0 0.0
    %3907 = vmatpush1.msra.mxu0 0.0
    %3908 = vmatprep.subr.mxu0 0.0
    %3909 = vmatpush1.msra.mxu0 0.0
    %3910 = vmatprep.subr.mxu0 0.0
    %3911 = vmatpush1.msra.mxu0 0.0
    %3912 = vmatprep.subr.mxu0 0.0
    %3913 = vmatpush1.msra.mxu0 0.0
    %3914 = vmatprep.subr.mxu0 0.0
    %3915 = vmatpush1.msra.mxu0 0.0
    %3916 = vmatprep.mubr.f32.mxu0 0.0
    %3917 = vmatmul.mubr.f32.gmra.mrb[0].mxu0 %v3844
    %v3918 = vpop.f32.mrb[0].mxu0
    %v3919 = vadd.f32 0.0, %v3918
    %v3920 = vpop.f32.mrb[0].mxu0
    %v3921 = vadd.f32 0.0, %v3920
    %3922 = vdwg.mxu0
    %v3923 = vld [vmem:[%s1432] sm:$0x3f]
    %v3925 = vsel %vm1350, %v3923, 0
    %3927 = vmatprep.subr.mxu0 %v3839
    %3928 = vmatpush1.msra.mxu0 %v3838
    %3929 = vmatprep.subr.mxu0 %v3850
    %3930 = vmatpush1.msra.mxu0 %v3847
    %3931 = vmatprep.subr.mxu0 0.0
    %3932 = vmatpush1.msra.mxu0 0.0
    %3933 = vmatprep.subr.mxu0 0.0
    %3934 = vmatpush1.msra.mxu0 0.0
    %3935 = vmatprep.subr.mxu0 0.0
    %3936 = vmatpush1.msra.mxu0 0.0
    %3937 = vmatprep.subr.mxu0 0.0
    %3938 = vmatpush1.msra.mxu0 0.0
    %3939 = vmatprep.subr.mxu0 0.0
    %3940 = vmatpush1.msra.mxu0 0.0
    %3941 = vmatprep.subr.mxu0 0.0
    %3942 = vmatpush1.msra.mxu0 0.0
    %3943 = vmatprep.subr.mxu0 0.0
    %3944 = vmatpush1.msra.mxu0 0.0
    %3945 = vmatprep.subr.mxu0 0.0
    %3946 = vmatpush1.msra.mxu0 0.0
    %3947 = vmatprep.subr.mxu0 0.0
    %3948 = vmatpush1.msra.mxu0 0.0
    %3949 = vmatprep.subr.mxu0 0.0
    %3950 = vmatpush1.msra.mxu0 0.0
    %3951 = vmatprep.subr.mxu0 0.0
    %3952 = vmatpush1.msra.mxu0 0.0
    %3953 = vmatprep.subr.mxu0 0.0
    %3954 = vmatpush1.msra.mxu0 0.0
    %3955 = vmatprep.subr.mxu0 0.0
    %3956 = vmatpush1.msra.mxu0 0.0
    %3957 = vmatprep.subr.mxu0 0.0
    %3958 = vmatpush1.msra.mxu0 0.0
    %3959 = vmatprep.subr.mxu0 0.0
    %3960 = vmatpush1.msra.mxu0 0.0
    %3961 = vmatprep.subr.mxu0 0.0
    %3962 = vmatpush1.msra.mxu0 0.0
    %3963 = vmatprep.subr.mxu0 0.0
    %3964 = vmatpush1.msra.mxu0 0.0
    %3965 = vmatprep.subr.mxu0 0.0
    %3966 = vmatpush1.msra.mxu0 0.0
    %3967 = vmatprep.subr.mxu0 0.0
    %3968 = vmatpush1.msra.mxu0 0.0
    %3969 = vmatprep.subr.mxu0 0.0
    %3970 = vmatpush1.msra.mxu0 0.0
    %3971 = vmatprep.subr.mxu0 0.0
    %3972 = vmatpush1.msra.mxu0 0.0
    %3973 = vmatprep.subr.mxu0 0.0
    %3974 = vmatpush1.msra.mxu0 0.0
    %3975 = vmatprep.subr.mxu0 0.0
    %3976 = vmatpush1.msra.mxu0 0.0
    %3977 = vmatprep.subr.mxu0 0.0
    %3978 = vmatpush1.msra.mxu0 0.0
    %3979 = vmatprep.subr.mxu0 0.0
    %3980 = vmatpush1.msra.mxu0 0.0
    %3981 = vmatprep.subr.mxu0 0.0
    %3982 = vmatpush1.msra.mxu0 0.0
    %3983 = vmatprep.subr.mxu0 0.0
    %3984 = vmatpush1.msra.mxu0 0.0
    %3985 = vmatprep.subr.mxu0 0.0
    %3986 = vmatpush1.msra.mxu0 0.0
    %3987 = vmatprep.subr.mxu0 0.0
    %3988 = vmatpush1.msra.mxu0 0.0
    %3989 = vmatprep.subr.mxu0 0.0
    %3990 = vmatpush1.msra.mxu0 0.0
    %3991 = vmatprep.mubr.f32.mxu0 0.0
    %3992 = vmatmul.mubr.f32.gmra.mrb[0].mxu0 %v3925
    %v3993 = vpop.f32.mrb[0].mxu0
    %v3994 = vadd.f32 0.0, %v3993
    %v3995 = vpop.f32.mrb[0].mxu0
    %v3996 = vadd.f32 0.0, %v3995
    %3997 = vdwg.mxu0
    %v3998 = vld [vmem:[%s8] sm:$0xff]
    %v3999 = vld [vmem:[%s8 + $0x8] sm:$0xff]
    %v4000 = vld [vmem:[%s8 + $0x10] sm:$0xff]
    %v4001 = vld [vmem:[%s8 + $0x18] sm:$0xff]
    %v4002 = vld [vmem:[%s8 + $0x20] sm:$0xff]
    %v4003 = vld [vmem:[%s8 + $0x28] sm:$0xff]
    %v4004 = vld [vmem:[%s8 + $0x30] sm:$0xff]
    %v4005 = vld [vmem:[%s8 + $0x38] sm:$0xff]
    %v4006 = vld [vmem:[%s8 + $0x40] sm:$0xff]
    %v4007 = vld [vmem:[%s8 + $0x48] sm:$0xff]
    %v4008 = vld [vmem:[%s8 + $0x50] sm:$0xff]
    %v4009 = vld [vmem:[%s8 + $0x58] sm:$0xff]
    %v4010 = vld [vmem:[%s8 + $0x60] sm:$0xff]
    %v4011 = vld [vmem:[%s8 + $0x68] sm:$0xff]
    %v4012 = vld [vmem:[%s8 + $0x70] sm:$0xff]
    %v4013 = vld [vmem:[%s8 + $0x78] sm:$0xff]
    %v4014 = vld [vmem:[%s8 + $0x80] sm:$0xff]
    %v4015 = vld [vmem:[%s8 + $0x88] sm:$0xff]
    %v4016 = vld [vmem:[%s8 + $0x90] sm:$0xff]
    %v4017 = vld [vmem:[%s8 + $0x98] sm:$0xff]
    %v4018 = vld [vmem:[%s8 + $0xa0] sm:$0xff]
    %v4019 = vld [vmem:[%s8 + $0xa8] sm:$0xff]
    %v4020 = vld [vmem:[%s8 + $0xb0] sm:$0xff]
    %v4021 = vld [vmem:[%s8 + $0xb8] sm:$0xff]
    %v4022 = vld [vmem:[%s8 + $0xc0] sm:$0xff]
    %v4023 = vld [vmem:[%s8 + $0xc8] sm:$0xff]
    %v4025 = vsel %vm1534, %v3921, 0
    %4027 = vmatprep.subr.mxu0 0.0
    %4028 = vmatpush1.msra.mxu0 %v3998
    %4029 = vmatprep.subr.mxu0 0.0
    %4030 = vmatpush1.msra.mxu0 %v3999
    %4031 = vmatprep.subr.mxu0 0.0
    %4032 = vmatpush1.msra.mxu0 %v4000
    %4033 = vmatprep.subr.mxu0 0.0
    %4034 = vmatpush1.msra.mxu0 %v4001
    %4035 = vmatprep.subr.mxu0 0.0
    %4036 = vmatpush1.msra.mxu0 %v4002
    %4037 = vmatprep.subr.mxu0 0.0
    %4038 = vmatpush1.msra.mxu0 %v4003
    %4039 = vmatprep.subr.mxu0 0.0
    %4040 = vmatpush1.msra.mxu0 %v4004
    %4041 = vmatprep.subr.mxu0 0.0
    %4042 = vmatpush1.msra.mxu0 %v4005
    %4043 = vmatprep.subr.mxu0 0.0
    %4044 = vmatpush1.msra.mxu0 %v4006
    %4045 = vmatprep.subr.mxu0 0.0
    %4046 = vmatpush1.msra.mxu0 %v4007
    %4047 = vmatprep.subr.mxu0 0.0
    %4048 = vmatpush1.msra.mxu0 %v4008
    %4049 = vmatprep.subr.mxu0 0.0
    %4050 = vmatpush1.msra.mxu0 %v4009
    %4051 = vmatprep.subr.mxu0 0.0
    %4052 = vmatpush1.msra.mxu0 %v4010
    %4053 = vmatprep.subr.mxu0 0.0
    %4054 = vmatpush1.msra.mxu0 %v4011
    %4055 = vmatprep.subr.mxu0 0.0
    %4056 = vmatpush1.msra.mxu0 %v4012
    %4057 = vmatprep.subr.mxu0 0.0
    %4058 = vmatpush1.msra.mxu0 %v4013
    %4059 = vmatprep.subr.mxu0 0.0
    %4060 = vmatpush1.msra.mxu0 %v4014
    %4061 = vmatprep.subr.mxu0 0.0
    %4062 = vmatpush1.msra.mxu0 %v4015
    %4063 = vmatprep.subr.mxu0 0.0
    %4064 = vmatpush1.msra.mxu0 %v4016
    %4065 = vmatprep.subr.mxu0 0.0
    %4066 = vmatpush1.msra.mxu0 %v4017
    %4067 = vmatprep.subr.mxu0 0.0
    %4068 = vmatpush1.msra.mxu0 %v4018
    %4069 = vmatprep.subr.mxu0 0.0
    %4070 = vmatpush1.msra.mxu0 %v4019
    %4071 = vmatprep.subr.mxu0 0.0
    %4072 = vmatpush1.msra.mxu0 %v4020
    %4073 = vmatprep.subr.mxu0 0.0
    %4074 = vmatpush1.msra.mxu0 %v4021
    %4075 = vmatprep.subr.mxu0 0.0
    %4076 = vmatpush1.msra.mxu0 %v4022
    %4077 = vmatprep.subr.mxu0 0.0
    %4078 = vmatpush1.msra.mxu0 %v4023
    %4079 = vmatprep.subr.mxu0 0.0
    %4080 = vmatpush1.msra.mxu0 0.0
    %4081 = vmatprep.subr.mxu0 0.0
    %4082 = vmatpush1.msra.mxu0 0.0
    %4083 = vmatprep.subr.mxu0 0.0
    %4084 = vmatpush1.msra.mxu0 0.0
    %4085 = vmatprep.subr.mxu0 0.0
    %4086 = vmatpush1.msra.mxu0 0.0
    %4087 = vmatprep.subr.mxu0 0.0
    %4088 = vmatpush1.msra.mxu0 0.0
    %4089 = vmatprep.subr.mxu0 0.0
    %4090 = vmatpush1.msra.mxu0 0.0
    %4091 = vmatprep.mubr.f32.mxu0 %v4025
    %4092 = vmatmul.mubr.f32.gmra.mrb[0].mxu0 %v3919
    %v4093 = vpop.f32.mrb[0].mxu0
    %v4094 = vadd.f32 0.0, %v4093
    %v4095 = vpop.f32.mrb[0].mxu0
    %4096 = vdwg.mxu0
    %v4097 = vld [vmem:[%s1608] sm:$0xff]
    %v4098 = vld [vmem:[%s1608 + $0x8] sm:$0xff]
    %v4099 = vld [vmem:[%s1608 + $0x10] sm:$0xff]
    %v4100 = vld [vmem:[%s1608 + $0x18] sm:$0xff]
    %v4101 = vld [vmem:[%s1608 + $0x20] sm:$0xff]
    %v4102 = vld [vmem:[%s1608 + $0x28] sm:$0xff]
    %v4103 = vld [vmem:[%s1608 + $0x30] sm:$0xff]
    %v4104 = vld [vmem:[%s1608 + $0x38] sm:$0xff]
    %v4105 = vld [vmem:[%s1608 + $0x40] sm:$0xff]
    %v4106 = vld [vmem:[%s1608 + $0x48] sm:$0xff]
    %v4107 = vld [vmem:[%s1608 + $0x50] sm:$0xff]
    %v4108 = vld [vmem:[%s1608 + $0x58] sm:$0xff]
    %v4109 = vld [vmem:[%s1608 + $0x60] sm:$0xff]
    %v4110 = vld [vmem:[%s1608 + $0x68] sm:$0xff]
    %v4111 = vld [vmem:[%s1608 + $0x70] sm:$0xff]
    %v4112 = vld [vmem:[%s1608 + $0x78] sm:$0xff]
    %v4113 = vld [vmem:[%s1608 + $0x80] sm:$0xff]
    %v4114 = vld [vmem:[%s1608 + $0x88] sm:$0xff]
    %v4115 = vld [vmem:[%s1608 + $0x90] sm:$0xff]
    %v4116 = vld [vmem:[%s1608 + $0x98] sm:$0xff]
    %v4117 = vld [vmem:[%s1608 + $0xa0] sm:$0xff]
    %v4118 = vld [vmem:[%s1608 + $0xa8] sm:$0xff]
    %v4119 = vld [vmem:[%s1608 + $0xb0] sm:$0xff]
    %v4120 = vld [vmem:[%s1608 + $0xb8] sm:$0xff]
    %v4121 = vld [vmem:[%s1608 + $0xc0] sm:$0xff]
    %v4122 = vld [vmem:[%s1608 + $0xc8] sm:$0xff]
    %4123 = vmatprep.subr.mxu0 0.0
    %4124 = vmatpush1.msra.mxu0 %v4097
    %4125 = vmatprep.subr.mxu0 0.0
    %4126 = vmatpush1.msra.mxu0 %v4098
    %4127 = vmatprep.subr.mxu0 0.0
    %4128 = vmatpush1.msra.mxu0 %v4099
    %4129 = vmatprep.subr.mxu0 0.0
    %4130 = vmatpush1.msra.mxu0 %v4100
    %4131 = vmatprep.subr.mxu0 0.0
    %4132 = vmatpush1.msra.mxu0 %v4101
    %4133 = vmatprep.subr.mxu0 0.0
    %4134 = vmatpush1.msra.mxu0 %v4102
    %4135 = vmatprep.subr.mxu0 0.0
    %4136 = vmatpush1.msra.mxu0 %v4103
    %4137 = vmatprep.subr.mxu0 0.0
    %4138 = vmatpush1.msra.mxu0 %v4104
    %4139 = vmatprep.subr.mxu0 0.0
    %4140 = vmatpush1.msra.mxu0 %v4105
    %4141 = vmatprep.subr.mxu0 0.0
    %4142 = vmatpush1.msra.mxu0 %v4106
    %4143 = vmatprep.subr.mxu0 0.0
    %4144 = vmatpush1.msra.mxu0 %v4107
    %4145 = vmatprep.subr.mxu0 0.0
    %4146 = vmatpush1.msra.mxu0 %v4108
    %4147 = vmatprep.subr.mxu0 0.0
    %4148 = vmatpush1.msra.mxu0 %v4109
    %4149 = vmatprep.subr.mxu0 0.0
    %4150 = vmatpush1.msra.mxu0 %v4110
    %4151 = vmatprep.subr.mxu0 0.0
    %4152 = vmatpush1.msra.mxu0 %v4111
    %4153 = vmatprep.subr.mxu0 0.0
    %4154 = vmatpush1.msra.mxu0 %v4112
    %4155 = vmatprep.subr.mxu0 0.0
    %4156 = vmatpush1.msra.mxu0 %v4113
    %4157 = vmatprep.subr.mxu0 0.0
    %4158 = vmatpush1.msra.mxu0 %v4114
    %4159 = vmatprep.subr.mxu0 0.0
    %4160 = vmatpush1.msra.mxu0 %v4115
    %4161 = vmatprep.subr.mxu0 0.0
    %4162 = vmatpush1.msra.mxu0 %v4116
    %4163 = vmatprep.subr.mxu0 0.0
    %4164 = vmatpush1.msra.mxu0 %v4117
    %4165 = vmatprep.subr.mxu0 0.0
    %4166 = vmatpush1.msra.mxu0 %v4118
    %4167 = vmatprep.subr.mxu0 0.0
    %4168 = vmatpush1.msra.mxu0 %v4119
    %4169 = vmatprep.subr.mxu0 0.0
    %4170 = vmatpush1.msra.mxu0 %v4120
    %4171 = vmatprep.subr.mxu0 0.0
    %4172 = vmatpush1.msra.mxu0 %v4121
    %4173 = vmatprep.subr.mxu0 0.0
    %4174 = vmatpush1.msra.mxu0 %v4122
    %4175 = vmatprep.subr.mxu0 0.0
    %4176 = vmatpush1.msra.mxu0 0.0
    %4177 = vmatprep.subr.mxu0 0.0
    %4178 = vmatpush1.msra.mxu0 0.0
    %4179 = vmatprep.subr.mxu0 0.0
    %4180 = vmatpush1.msra.mxu0 0.0
    %4181 = vmatprep.subr.mxu0 0.0
    %4182 = vmatpush1.msra.mxu0 0.0
    %4183 = vmatprep.subr.mxu0 0.0
    %4184 = vmatpush1.msra.mxu0 0.0
    %4185 = vmatprep.subr.mxu0 0.0
    %4186 = vmatpush1.msra.mxu0 0.0
    %4187 = vmatprep.mubr.f32.mxu0 %v4025
    %4188 = vmatmul.mubr.f32.gmra.mrb[0].mxu0 %v3919
    %v4189 = vpop.f32.mrb[0].mxu0
    %v4190 = vadd.f32 0.0, %v4189
    %v4191 = vpop.f32.mrb[0].mxu0
    %4192 = vdwg.mxu0
    %v4193 = vmax.f32 %v4094, %v4190
    %v4195 = vsel %vm1534, %v3996, 0
    %4197 = vmatprep.subr.mxu0 0.0
    %4198 = vmatpush1.msra.mxu0 %v3998
    %4199 = vmatprep.subr.mxu0 0.0
    %4200 = vmatpush1.msra.mxu0 %v3999
    %4201 = vmatprep.subr.mxu0 0.0
    %4202 = vmatpush1.msra.mxu0 %v4000
    %4203 = vmatprep.subr.mxu0 0.0
    %4204 = vmatpush1.msra.mxu0 %v4001
    %4205 = vmatprep.subr.mxu0 0.0
    %4206 = vmatpush1.msra.mxu0 %v4002
    %4207 = vmatprep.subr.mxu0 0.0
    %4208 = vmatpush1.msra.mxu0 %v4003
    %4209 = vmatprep.subr.mxu0 0.0
    %4210 = vmatpush1.msra.mxu0 %v4004
    %4211 = vmatprep.subr.mxu0 0.0
    %4212 = vmatpush1.msra.mxu0 %v4005
    %4213 = vmatprep.subr.mxu0 0.0
    %4214 = vmatpush1.msra.mxu0 %v4006
    %4215 = vmatprep.subr.mxu0 0.0
    %4216 = vmatpush1.msra.mxu0 %v4007
    %4217 = vmatprep.subr.mxu0 0.0
    %4218 = vmatpush1.msra.mxu0 %v4008
    %4219 = vmatprep.subr.mxu0 0.0
    %4220 = vmatpush1.msra.mxu0 %v4009
    %4221 = vmatprep.subr.mxu0 0.0
    %4222 = vmatpush1.msra.mxu0 %v4010
    %4223 = vmatprep.subr.mxu0 0.0
    %4224 = vmatpush1.msra.mxu0 %v4011
    %4225 = vmatprep.subr.mxu0 0.0
    %4226 = vmatpush1.msra.mxu0 %v4012
    %4227 = vmatprep.subr.mxu0 0.0
    %4228 = vmatpush1.msra.mxu0 %v4013
    %4229 = vmatprep.subr.mxu0 0.0
    %4230 = vmatpush1.msra.mxu0 %v4014
    %4231 = vmatprep.subr.mxu0 0.0
    %4232 = vmatpush1.msra.mxu0 %v4015
    %4233 = vmatprep.subr.mxu0 0.0
    %4234 = vmatpush1.msra.mxu0 %v4016
    %4235 = vmatprep.subr.mxu0 0.0
    %4236 = vmatpush1.msra.mxu0 %v4017
    %4237 = vmatprep.subr.mxu0 0.0
    %4238 = vmatpush1.msra.mxu0 %v4018
    %4239 = vmatprep.subr.mxu0 0.0
    %4240 = vmatpush1.msra.mxu0 %v4019
    %4241 = vmatprep.subr.mxu0 0.0
    %4242 = vmatpush1.msra.mxu0 %v4020
    %4243 = vmatprep.subr.mxu0 0.0
    %4244 = vmatpush1.msra.mxu0 %v4021
    %4245 = vmatprep.subr.mxu0 0.0
    %4246 = vmatpush1.msra.mxu0 %v4022
    %4247 = vmatprep.subr.mxu0 0.0
    %4248 = vmatpush1.msra.mxu0 %v4023
    %4249 = vmatprep.subr.mxu0 0.0
    %4250 = vmatpush1.msra.mxu0 0.0
    %4251 = vmatprep.subr.mxu0 0.0
    %4252 = vmatpush1.msra.mxu0 0.0
    %4253 = vmatprep.subr.mxu0 0.0
    %4254 = vmatpush1.msra.mxu0 0.0
    %4255 = vmatprep.subr.mxu0 0.0
    %4256 = vmatpush1.msra.mxu0 0.0
    %4257 = vmatprep.subr.mxu0 0.0
    %4258 = vmatpush1.msra.mxu0 0.0
    %4259 = vmatprep.subr.mxu0 0.0
    %4260 = vmatpush1.msra.mxu0 0.0
    %4261 = vmatprep.mubr.f32.mxu0 %v4195
    %4262 = vmatmul.mubr.f32.gmra.mrb[0].mxu0 %v3994
    %v4263 = vpop.f32.mrb[0].mxu0
    %v4264 = vadd.f32 0.0, %v4263
    %v4265 = vpop.f32.mrb[0].mxu0
    %4266 = vdwg.mxu0
    %v4267 = vmax.f32 %v4193, %v4264
    %4268 = vmatprep.subr.mxu0 0.0
    %4269 = vmatpush1.msra.mxu0 %v4097
    %4270 = vmatprep.subr.mxu0 0.0
    %4271 = vmatpush1.msra.mxu0 %v4098
    %4272 = vmatprep.subr.mxu0 0.0
    %4273 = vmatpush1.msra.mxu0 %v4099
    %4274 = vmatprep.subr.mxu0 0.0
    %4275 = vmatpush1.msra.mxu0 %v4100
    %4276 = vmatprep.subr.mxu0 0.0
    %4277 = vmatpush1.msra.mxu0 %v4101
    %4278 = vmatprep.subr.mxu0 0.0
    %4279 = vmatpush1.msra.mxu0 %v4102
    %4280 = vmatprep.subr.mxu0 0.0
    %4281 = vmatpush1.msra.mxu0 %v4103
    %4282 = vmatprep.subr.mxu0 0.0
    %4283 = vmatpush1.msra.mxu0 %v4104
    %4284 = vmatprep.subr.mxu0 0.0
    %4285 = vmatpush1.msra.mxu0 %v4105
    %4286 = vmatprep.subr.mxu0 0.0
    %4287 = vmatpush1.msra.mxu0 %v4106
    %4288 = vmatprep.subr.mxu0 0.0
    %4289 = vmatpush1.msra.mxu0 %v4107
    %4290 = vmatprep.subr.mxu0 0.0
    %4291 = vmatpush1.msra.mxu0 %v4108
    %4292 = vmatprep.subr.mxu0 0.0
    %4293 = vmatpush1.msra.mxu0 %v4109
    %4294 = vmatprep.subr.mxu0 0.0
    %4295 = vmatpush1.msra.mxu0 %v4110
    %4296 = vmatprep.subr.mxu0 0.0
    %4297 = vmatpush1.msra.mxu0 %v4111
    %4298 = vmatprep.subr.mxu0 0.0
    %4299 = vmatpush1.msra.mxu0 %v4112
    %4300 = vmatprep.subr.mxu0 0.0
    %4301 = vmatpush1.msra.mxu0 %v4113
    %4302 = vmatprep.subr.mxu0 0.0
    %4303 = vmatpush1.msra.mxu0 %v4114
    %4304 = vmatprep.subr.mxu0 0.0
    %4305 = vmatpush1.msra.mxu0 %v4115
    %4306 = vmatprep.subr.mxu0 0.0
    %4307 = vmatpush1.msra.mxu0 %v4116
    %4308 = vmatprep.subr.mxu0 0.0
    %4309 = vmatpush1.msra.mxu0 %v4117
    %4310 = vmatprep.subr.mxu0 0.0
    %4311 = vmatpush1.msra.mxu0 %v4118
    %4312 = vmatprep.subr.mxu0 0.0
    %4313 = vmatpush1.msra.mxu0 %v4119
    %4314 = vmatprep.subr.mxu0 0.0
    %4315 = vmatpush1.msra.mxu0 %v4120
    %4316 = vmatprep.subr.mxu0 0.0
    %4317 = vmatpush1.msra.mxu0 %v4121
    %4318 = vmatprep.subr.mxu0 0.0
    %4319 = vmatpush1.msra.mxu0 %v4122
    %4320 = vmatprep.subr.mxu0 0.0
    %4321 = vmatpush1.msra.mxu0 0.0
    %4322 = vmatprep.subr.mxu0 0.0
    %4323 = vmatpush1.msra.mxu0 0.0
    %4324 = vmatprep.subr.mxu0 0.0
    %4325 = vmatpush1.msra.mxu0 0.0
    %4326 = vmatprep.subr.mxu0 0.0
    %4327 = vmatpush1.msra.mxu0 0.0
    %4328 = vmatprep.subr.mxu0 0.0
    %4329 = vmatpush1.msra.mxu0 0.0
    %4330 = vmatprep.subr.mxu0 0.0
    %4331 = vmatpush1.msra.mxu0 0.0
    %4332 = vmatprep.mubr.f32.mxu0 %v4195
    %4333 = vmatmul.mubr.f32.gmra.mrb[0].mxu0 %v3994
    %v4334 = vpop.f32.mrb[0].mxu0
    %v4335 = vadd.f32 0.0, %v4334
    %v4336 = vpop.f32.mrb[0].mxu0
    %4337 = vdwg.mxu0
    %v4338 = vmax.f32 %v4267, %v4335
    %v4339 = vld [vmem:[%s10] sm:$0x1]
    %v4340 = vld [vmem:[%s9] sm:$0xff]
    %v4341 = vld [vmem:[%s9 + $0x8] sm:$0xff]
    %v4342 = vld [vmem:[%s9 + $0x10] sm:$0xff]
    %v4343 = vld [vmem:[%s9 + $0x18] sm:$0xff]
    %v4344 = vld [vmem:[%s9 + $0x20] sm:$0xff]
    %v4345 = vld [vmem:[%s9 + $0x28] sm:$0xff]
    %v4346 = vld [vmem:[%s9 + $0x30] sm:$0xff]
    %v4347 = vld [vmem:[%s9 + $0x38] sm:$0xff]
    %v4348 = vld [vmem:[%s9 + $0x40] sm:$0xff]
    %v4349 = vld [vmem:[%s9 + $0x48] sm:$0xff]
    %v4350 = vld [vmem:[%s9 + $0x50] sm:$0xff]
    %v4351 = vld [vmem:[%s9 + $0x58] sm:$0xff]
    %v4353 = vsel %vm1864, %v4338, 0
    %4355 = vmatprep.subr.mxu0 0.0
    %4356 = vmatpush1.msra.mxu0 %v4340
    %4357 = vmatprep.subr.mxu0 0.0
    %4358 = vmatpush1.msra.mxu0 %v4341
    %4359 = vmatprep.subr.mxu0 0.0
    %4360 = vmatpush1.msra.mxu0 %v4342
    %4361 = vmatprep.subr.mxu0 0.0
    %4362 = vmatpush1.msra.mxu0 %v4343
    %4363 = vmatprep.subr.mxu0 0.0
    %4364 = vmatpush1.msra.mxu0 %v4344
    %4365 = vmatprep.subr.mxu0 0.0
    %4366 = vmatpush1.msra.mxu0 %v4345
    %4367 = vmatprep.subr.mxu0 0.0
    %4368 = vmatpush1.msra.mxu0 %v4346
    %4369 = vmatprep.subr.mxu0 0.0
    %4370 = vmatpush1.msra.mxu0 %v4347
    %4371 = vmatprep.subr.mxu0 0.0
    %4372 = vmatpush1.msra.mxu0 %v4348
    %4373 = vmatprep.subr.mxu0 0.0
    %4374 = vmatpush1.msra.mxu0 %v4349
    %4375 = vmatprep.subr.mxu0 0.0
    %4376 = vmatpush1.msra.mxu0 %v4350
    %4377 = vmatprep.subr.mxu0 0.0
    %4378 = vmatpush1.msra.mxu0 %v4351
    %4379 = vmatprep.subr.mxu0 0.0
    %4380 = vmatpush1.msra.mxu0 0.0
    %4381 = vmatprep.subr.mxu0 0.0
    %4382 = vmatpush1.msra.mxu0 0.0
    %4383 = vmatprep.subr.mxu0 0.0
    %4384 = vmatpush1.msra.mxu0 0.0
    %4385 = vmatprep.subr.mxu0 0.0
    %4386 = vmatpush1.msra.mxu0 0.0
    %4387 = vmatprep.subr.mxu0 0.0
    %4388 = vmatpush1.msra.mxu0 0.0
    %4389 = vmatprep.subr.mxu0 0.0
    %4390 = vmatpush1.msra.mxu0 0.0
    %4391 = vmatprep.subr.mxu0 0.0
    %4392 = vmatpush1.msra.mxu0 0.0
    %4393 = vmatprep.subr.mxu0 0.0
    %4394 = vmatpush1.msra.mxu0 0.0
    %4395 = vmatprep.subr.mxu0 0.0
    %4396 = vmatpush1.msra.mxu0 0.0
    %4397 = vmatprep.subr.mxu0 0.0
    %4398 = vmatpush1.msra.mxu0 0.0
    %4399 = vmatprep.subr.mxu0 0.0
    %4400 = vmatpush1.msra.mxu0 0.0
    %4401 = vmatprep.subr.mxu0 0.0
    %4402 = vmatpush1.msra.mxu0 0.0
    %4403 = vmatprep.subr.mxu0 0.0
    %4404 = vmatpush1.msra.mxu0 0.0
    %4405 = vmatprep.subr.mxu0 0.0
    %4406 = vmatpush1.msra.mxu0 0.0
    %4407 = vmatprep.subr.mxu0 0.0
    %4408 = vmatpush1.msra.mxu0 0.0
    %4409 = vmatprep.subr.mxu0 0.0
    %4410 = vmatpush1.msra.mxu0 0.0
    %4411 = vmatprep.subr.mxu0 0.0
    %4412 = vmatpush1.msra.mxu0 0.0
    %4413 = vmatprep.subr.mxu0 0.0
    %4414 = vmatpush1.msra.mxu0 0.0
    %4415 = vmatprep.subr.mxu0 0.0
    %4416 = vmatpush1.msra.mxu0 0.0
    %4417 = vmatprep.subr.mxu0 0.0
    %4418 = vmatpush1.msra.mxu0 0.0
    %4419 = vmatprep.mubr.f32.mxu0 0.0
    %4420 = vmatmul.mubr.f32.gmra.mrb[0].mxu0 %v4353
    %v4421 = vpop.f32.mrb[0].mxu0
    %v4422 = vadd.f32 0.0, %v4421
    %v4423 = vpop.f32.mrb[0].mxu0
    %4424 = vdwg.mxu0
    %v4425 = vadd.f32 %v4339, %v4422
    %v4426 = vld [vmem:[%s1939] sm:$0xff]
    %v4427 = vld [vmem:[%s1939 + $0x8] sm:$0xff]
    %v4428 = vld [vmem:[%s1939 + $0x10] sm:$0xff]
    %v4429 = vld [vmem:[%s1939 + $0x18] sm:$0xff]
    %v4430 = vld [vmem:[%s1939 + $0x20] sm:$0xff]
    %v4431 = vld [vmem:[%s1939 + $0x28] sm:$0xff]
    %v4432 = vld [vmem:[%s1939 + $0x30] sm:$0xff]
    %v4433 = vld [vmem:[%s1939 + $0x38] sm:$0xff]
    %v4434 = vld [vmem:[%s1939 + $0x40] sm:$0xff]
    %v4435 = vld [vmem:[%s1939 + $0x48] sm:$0xff]
    %v4436 = vld [vmem:[%s1939 + $0x50] sm:$0xff]
    %v4437 = vld [vmem:[%s1939 + $0x58] sm:$0xff]
    %v4438 = vrot.slane %v4338, 1
    %v4439 = vsel %vm1864, %v4438, 0
    %4441 = vmatprep.subr.mxu0 0.0
    %4442 = vmatpush1.msra.mxu0 %v4426
    %4443 = vmatprep.subr.mxu0 0.0
    %4444 = vmatpush1.msra.mxu0 %v4427
    %4445 = vmatprep.subr.mxu0 0.0
    %4446 = vmatpush1.msra.mxu0 %v4428
    %4447 = vmatprep.subr.mxu0 0.0
    %4448 = vmatpush1.msra.mxu0 %v4429
    %4449 = vmatprep.subr.mxu0 0.0
    %4450 = vmatpush1.msra.mxu0 %v4430
    %4451 = vmatprep.subr.mxu0 0.0
    %4452 = vmatpush1.msra.mxu0 %v4431
    %4453 = vmatprep.subr.mxu0 0.0
    %4454 = vmatpush1.msra.mxu0 %v4432
    %4455 = vmatprep.subr.mxu0 0.0
    %4456 = vmatpush1.msra.mxu0 %v4433
    %4457 = vmatprep.subr.mxu0 0.0
    %4458 = vmatpush1.msra.mxu0 %v4434
    %4459 = vmatprep.subr.mxu0 0.0
    %4460 = vmatpush1.msra.mxu0 %v4435
    %4461 = vmatprep.subr.mxu0 0.0
    %4462 = vmatpush1.msra.mxu0 %v4436
    %4463 = vmatprep.subr.mxu0 0.0
    %4464 = vmatpush1.msra.mxu0 %v4437
    %4465 = vmatprep.subr.mxu0 0.0
    %4466 = vmatpush1.msra.mxu0 0.0
    %4467 = vmatprep.subr.mxu0 0.0
    %4468 = vmatpush1.msra.mxu0 0.0
    %4469 = vmatprep.subr.mxu0 0.0
    %4470 = vmatpush1.msra.mxu0 0.0
    %4471 = vmatprep.subr.mxu0 0.0
    %4472 = vmatpush1.msra.mxu0 0.0
    %4473 = vmatprep.subr.mxu0 0.0
    %4474 = vmatpush1.msra.mxu0 0.0
    %4475 = vmatprep.subr.mxu0 0.0
    %4476 = vmatpush1.msra.mxu0 0.0
    %4477 = vmatprep.subr.mxu0 0.0
    %4478 = vmatpush1.msra.mxu0 0.0
    %4479 = vmatprep.subr.mxu0 0.0
    %4480 = vmatpush1.msra.mxu0 0.0
    %4481 = vmatprep.subr.mxu0 0.0
    %4482 = vmatpush1.msra.mxu0 0.0
    %4483 = vmatprep.subr.mxu0 0.0
    %4484 = vmatpush1.msra.mxu0 0.0
    %4485 = vmatprep.subr.mxu0 0.0
    %4486 = vmatpush1.msra.mxu0 0.0
    %4487 = vmatprep.subr.mxu0 0.0
    %4488 = vmatpush1.msra.mxu0 0.0
    %4489 = vmatprep.subr.mxu0 0.0
    %4490 = vmatpush1.msra.mxu0 0.0
    %4491 = vmatprep.subr.mxu0 0.0
    %4492 = vmatpush1.msra.mxu0 0.0
    %4493 = vmatprep.subr.mxu0 0.0
    %4494 = vmatpush1.msra.mxu0 0.0
    %4495 = vmatprep.subr.mxu0 0.0
    %4496 = vmatpush1.msra.mxu0 0.0
    %4497 = vmatprep.subr.mxu0 0.0
    %4498 = vmatpush1.msra.mxu0 0.0
    %4499 = vmatprep.subr.mxu0 0.0
    %4500 = vmatpush1.msra.mxu0 0.0
    %4501 = vmatprep.subr.mxu0 0.0
    %4502 = vmatpush1.msra.mxu0 0.0
    %4503 = vmatprep.subr.mxu0 0.0
    %4504 = vmatpush1.msra.mxu0 0.0
    %4505 = vmatprep.mubr.f32.mxu0 0.0
    %4506 = vmatmul.mubr.f32.gmra.mrb[0].mxu0 %v4439
    %v4507 = vpop.f32.mrb[0].mxu0
    %v4508 = vadd.f32 0.0, %v4507
    %v4509 = vpop.f32.mrb[0].mxu0
    %4510 = vdwg.mxu0
    %v4511 = vadd.f32 %v4425, %v4508
    %v4512 = vld [vmem:[%s2026] sm:$0xff]
    %v4513 = vld [vmem:[%s2026 + $0x8] sm:$0xff]
    %v4514 = vld [vmem:[%s2026 + $0x10] sm:$0xff]
    %v4515 = vld [vmem:[%s2026 + $0x18] sm:$0xff]
    %v4516 = vld [vmem:[%s2026 + $0x20] sm:$0xff]
    %v4517 = vld [vmem:[%s2026 + $0x28] sm:$0xff]
    %v4518 = vld [vmem:[%s2026 + $0x30] sm:$0xff]
    %v4519 = vld [vmem:[%s2026 + $0x38] sm:$0xff]
    %v4520 = vld [vmem:[%s2026 + $0x40] sm:$0xff]
    %v4521 = vld [vmem:[%s2026 + $0x48] sm:$0xff]
    %v4522 = vld [vmem:[%s2026 + $0x50] sm:$0xff]
    %v4523 = vld [vmem:[%s2026 + $0x58] sm:$0xff]
    %v4524 = vrot.slane %v4338, 2
    %v4525 = vsel %vm1864, %v4524, 0
    %4527 = vmatprep.subr.mxu0 0.0
    %4528 = vmatpush1.msra.mxu0 %v4512
    %4529 = vmatprep.subr.mxu0 0.0
    %4530 = vmatpush1.msra.mxu0 %v4513
    %4531 = vmatprep.subr.mxu0 0.0
    %4532 = vmatpush1.msra.mxu0 %v4514
    %4533 = vmatprep.subr.mxu0 0.0
    %4534 = vmatpush1.msra.mxu0 %v4515
    %4535 = vmatprep.subr.mxu0 0.0
    %4536 = vmatpush1.msra.mxu0 %v4516
    %4537 = vmatprep.subr.mxu0 0.0
    %4538 = vmatpush1.msra.mxu0 %v4517
    %4539 = vmatprep.subr.mxu0 0.0
    %4540 = vmatpush1.msra.mxu0 %v4518
    %4541 = vmatprep.subr.mxu0 0.0
    %4542 = vmatpush1.msra.mxu0 %v4519
    %4543 = vmatprep.subr.mxu0 0.0
    %4544 = vmatpush1.msra.mxu0 %v4520
    %4545 = vmatprep.subr.mxu0 0.0
    %4546 = vmatpush1.msra.mxu0 %v4521
    %4547 = vmatprep.subr.mxu0 0.0
    %4548 = vmatpush1.msra.mxu0 %v4522
    %4549 = vmatprep.subr.mxu0 0.0
    %4550 = vmatpush1.msra.mxu0 %v4523
    %4551 = vmatprep.subr.mxu0 0.0
    %4552 = vmatpush1.msra.mxu0 0.0
    %4553 = vmatprep.subr.mxu0 0.0
    %4554 = vmatpush1.msra.mxu0 0.0
    %4555 = vmatprep.subr.mxu0 0.0
    %4556 = vmatpush1.msra.mxu0 0.0
    %4557 = vmatprep.subr.mxu0 0.0
    %4558 = vmatpush1.msra.mxu0 0.0
    %4559 = vmatprep.subr.mxu0 0.0
    %4560 = vmatpush1.msra.mxu0 0.0
    %4561 = vmatprep.subr.mxu0 0.0
    %4562 = vmatpush1.msra.mxu0 0.0
    %4563 = vmatprep.subr.mxu0 0.0
    %4564 = vmatpush1.msra.mxu0 0.0
    %4565 = vmatprep.subr.mxu0 0.0
    %4566 = vmatpush1.msra.mxu0 0.0
    %4567 = vmatprep.subr.mxu0 0.0
    %4568 = vmatpush1.msra.mxu0 0.0
    %4569 = vmatprep.subr.mxu0 0.0
    %4570 = vmatpush1.msra.mxu0 0.0
    %4571 = vmatprep.subr.mxu0 0.0
    %4572 = vmatpush1.msra.mxu0 0.0
    %4573 = vmatprep.subr.mxu0 0.0
    %4574 = vmatpush1.msra.mxu0 0.0
    %4575 = vmatprep.subr.mxu0 0.0
    %4576 = vmatpush1.msra.mxu0 0.0
    %4577 = vmatprep.subr.mxu0 0.0
    %4578 = vmatpush1.msra.mxu0 0.0
    %4579 = vmatprep.subr.mxu0 0.0
    %4580 = vmatpush1.msra.mxu0 0.0
    %4581 = vmatprep.subr.mxu0 0.0
    %4582 = vmatpush1.msra.mxu0 0.0
    %4583 = vmatprep.subr.mxu0 0.0
    %4584 = vmatpush1.msra.mxu0 0.0
    %4585 = vmatprep.subr.mxu0 0.0
    %4586 = vmatpush1.msra.mxu0 0.0
    %4587 = vmatprep.subr.mxu0 0.0
    %4588 = vmatpush1.msra.mxu0 0.0
    %4589 = vmatprep.subr.mxu0 0.0
    %4590 = vmatpush1.msra.mxu0 0.0
    %4591 = vmatprep.mubr.f32.mxu0 0.0
    %4592 = vmatmul.mubr.f32.gmra.mrb[0].mxu0 %v4525
    %v4593 = vpop.f32.mrb[0].mxu0
    %v4594 = vadd.f32 0.0, %v4593
    %v4595 = vpop.f32.mrb[0].mxu0
    %4596 = vdwg.mxu0
    %v4597 = vadd.f32 %v4511, %v4594
    %v4598 = vld [vmem:[%s2113] sm:$0xff]
    %v4599 = vld [vmem:[%s2113 + $0x8] sm:$0xff]
    %v4600 = vld [vmem:[%s2113 + $0x10] sm:$0xff]
    %v4601 = vld [vmem:[%s2113 + $0x18] sm:$0xff]
    %v4602 = vld [vmem:[%s2113 + $0x20] sm:$0xff]
    %v4603 = vld [vmem:[%s2113 + $0x28] sm:$0xff]
    %v4604 = vld [vmem:[%s2113 + $0x30] sm:$0xff]
    %v4605 = vld [vmem:[%s2113 + $0x38] sm:$0xff]
    %v4606 = vld [vmem:[%s2113 + $0x40] sm:$0xff]
    %v4607 = vld [vmem:[%s2113 + $0x48] sm:$0xff]
    %v4608 = vld [vmem:[%s2113 + $0x50] sm:$0xff]
    %v4609 = vld [vmem:[%s2113 + $0x58] sm:$0xff]
    %v4610 = vrot.slane %v4338, 3
    %v4611 = vsel %vm1864, %v4610, 0
    %4613 = vmatprep.subr.mxu0 0.0
    %4614 = vmatpush1.msra.mxu0 %v4598
    %4615 = vmatprep.subr.mxu0 0.0
    %4616 = vmatpush1.msra.mxu0 %v4599
    %4617 = vmatprep.subr.mxu0 0.0
    %4618 = vmatpush1.msra.mxu0 %v4600
    %4619 = vmatprep.subr.mxu0 0.0
    %4620 = vmatpush1.msra.mxu0 %v4601
    %4621 = vmatprep.subr.mxu0 0.0
    %4622 = vmatpush1.msra.mxu0 %v4602
    %4623 = vmatprep.subr.mxu0 0.0
    %4624 = vmatpush1.msra.mxu0 %v4603
    %4625 = vmatprep.subr.mxu0 0.0
    %4626 = vmatpush1.msra.mxu0 %v4604
    %4627 = vmatprep.subr.mxu0 0.0
    %4628 = vmatpush1.msra.mxu0 %v4605
    %4629 = vmatprep.subr.mxu0 0.0
    %4630 = vmatpush1.msra.mxu0 %v4606
    %4631 = vmatprep.subr.mxu0 0.0
    %4632 = vmatpush1.msra.mxu0 %v4607
    %4633 = vmatprep.subr.mxu0 0.0
    %4634 = vmatpush1.msra.mxu0 %v4608
    %4635 = vmatprep.subr.mxu0 0.0
    %4636 = vmatpush1.msra.mxu0 %v4609
    %4637 = vmatprep.subr.mxu0 0.0
    %4638 = vmatpush1.msra.mxu0 0.0
    %4639 = vmatprep.subr.mxu0 0.0
    %4640 = vmatpush1.msra.mxu0 0.0
    %4641 = vmatprep.subr.mxu0 0.0
    %4642 = vmatpush1.msra.mxu0 0.0
    %4643 = vmatprep.subr.mxu0 0.0
    %4644 = vmatpush1.msra.mxu0 0.0
    %4645 = vmatprep.subr.mxu0 0.0
    %4646 = vmatpush1.msra.mxu0 0.0
    %4647 = vmatprep.subr.mxu0 0.0
    %4648 = vmatpush1.msra.mxu0 0.0
    %4649 = vmatprep.subr.mxu0 0.0
    %4650 = vmatpush1.msra.mxu0 0.0
    %4651 = vmatprep.subr.mxu0 0.0
    %4652 = vmatpush1.msra.mxu0 0.0
    %4653 = vmatprep.subr.mxu0 0.0
    %4654 = vmatpush1.msra.mxu0 0.0
    %4655 = vmatprep.subr.mxu0 0.0
    %4656 = vmatpush1.msra.mxu0 0.0
    %4657 = vmatprep.subr.mxu0 0.0
    %4658 = vmatpush1.msra.mxu0 0.0
    %4659 = vmatprep.subr.mxu0 0.0
    %4660 = vmatpush1.msra.mxu0 0.0
    %4661 = vmatprep.subr.mxu0 0.0
    %4662 = vmatpush1.msra.mxu0 0.0
    %4663 = vmatprep.subr.mxu0 0.0
    %4664 = vmatpush1.msra.mxu0 0.0
    %4665 = vmatprep.subr.mxu0 0.0
    %4666 = vmatpush1.msra.mxu0 0.0
    %4667 = vmatprep.subr.mxu0 0.0
    %4668 = vmatpush1.msra.mxu0 0.0
    %4669 = vmatprep.subr.mxu0 0.0
    %4670 = vmatpush1.msra.mxu0 0.0
    %4671 = vmatprep.subr.mxu0 0.0
    %4672 = vmatpush1.msra.mxu0 0.0
    %4673 = vmatprep.subr.mxu0 0.0
    %4674 = vmatpush1.msra.mxu0 0.0
    %4675 = vmatprep.subr.mxu0 0.0
    %4676 = vmatpush1.msra.mxu0 0.0
    %4677 = vmatprep.mubr.f32.mxu0 0.0
    %4678 = vmatmul.mubr.f32.gmra.mrb[0].mxu0 %v4611
    %v4679 = vpop.f32.mrb[0].mxu0
    %v4680 = vadd.f32 0.0, %v4679
    %v4681 = vpop.f32.mrb[0].mxu0
    %4682 = vdwg.mxu0
    %v4683 = vadd.f32 %v4597, %v4680
    %v4684 = vld [vmem:[%s2200] sm:$0xff]
    %v4685 = vld [vmem:[%s2200 + $0x8] sm:$0xff]
    %v4686 = vld [vmem:[%s2200 + $0x10] sm:$0xff]
    %v4687 = vld [vmem:[%s2200 + $0x18] sm:$0xff]
    %v4688 = vld [vmem:[%s2200 + $0x20] sm:$0xff]
    %v4689 = vld [vmem:[%s2200 + $0x28] sm:$0xff]
    %v4690 = vld [vmem:[%s2200 + $0x30] sm:$0xff]
    %v4691 = vld [vmem:[%s2200 + $0x38] sm:$0xff]
    %v4692 = vld [vmem:[%s2200 + $0x40] sm:$0xff]
    %v4693 = vld [vmem:[%s2200 + $0x48] sm:$0xff]
    %v4694 = vld [vmem:[%s2200 + $0x50] sm:$0xff]
    %v4695 = vld [vmem:[%s2200 + $0x58] sm:$0xff]
    %v4696 = vrot.slane %v4338, 4
    %v4697 = vsel %vm1864, %v4696, 0
    %4699 = vmatprep.subr.mxu0 0.0
    %4700 = vmatpush1.msra.mxu0 %v4684
    %4701 = vmatprep.subr.mxu0 0.0
    %4702 = vmatpush1.msra.mxu0 %v4685
    %4703 = vmatprep.subr.mxu0 0.0
    %4704 = vmatpush1.msra.mxu0 %v4686
    %4705 = vmatprep.subr.mxu0 0.0
    %4706 = vmatpush1.msra.mxu0 %v4687
    %4707 = vmatprep.subr.mxu0 0.0
    %4708 = vmatpush1.msra.mxu0 %v4688
    %4709 = vmatprep.subr.mxu0 0.0
    %4710 = vmatpush1.msra.mxu0 %v4689
    %4711 = vmatprep.subr.mxu0 0.0
    %4712 = vmatpush1.msra.mxu0 %v4690
    %4713 = vmatprep.subr.mxu0 0.0
    %4714 = vmatpush1.msra.mxu0 %v4691
    %4715 = vmatprep.subr.mxu0 0.0
    %4716 = vmatpush1.msra.mxu0 %v4692
    %4717 = vmatprep.subr.mxu0 0.0
    %4718 = vmatpush1.msra.mxu0 %v4693
    %4719 = vmatprep.subr.mxu0 0.0
    %4720 = vmatpush1.msra.mxu0 %v4694
    %4721 = vmatprep.subr.mxu0 0.0
    %4722 = vmatpush1.msra.mxu0 %v4695
    %4723 = vmatprep.subr.mxu0 0.0
    %4724 = vmatpush1.msra.mxu0 0.0
    %4725 = vmatprep.subr.mxu0 0.0
    %4726 = vmatpush1.msra.mxu0 0.0
    %4727 = vmatprep.subr.mxu0 0.0
    %4728 = vmatpush1.msra.mxu0 0.0
    %4729 = vmatprep.subr.mxu0 0.0
    %4730 = vmatpush1.msra.mxu0 0.0
    %4731 = vmatprep.subr.mxu0 0.0
    %4732 = vmatpush1.msra.mxu0 0.0
    %4733 = vmatprep.subr.mxu0 0.0
    %4734 = vmatpush1.msra.mxu0 0.0
    %4735 = vmatprep.subr.mxu0 0.0
    %4736 = vmatpush1.msra.mxu0 0.0
    %4737 = vmatprep.subr.mxu0 0.0
    %4738 = vmatpush1.msra.mxu0 0.0
    %4739 = vmatprep.subr.mxu0 0.0
    %4740 = vmatpush1.msra.mxu0 0.0
    %4741 = vmatprep.subr.mxu0 0.0
    %4742 = vmatpush1.msra.mxu0 0.0
    %4743 = vmatprep.subr.mxu0 0.0
    %4744 = vmatpush1.msra.mxu0 0.0
    %4745 = vmatprep.subr.mxu0 0.0
    %4746 = vmatpush1.msra.mxu0 0.0
    %4747 = vmatprep.subr.mxu0 0.0
    %4748 = vmatpush1.msra.mxu0 0.0
    %4749 = vmatprep.subr.mxu0 0.0
    %4750 = vmatpush1.msra.mxu0 0.0
    %4751 = vmatprep.subr.mxu0 0.0
    %4752 = vmatpush1.msra.mxu0 0.0
    %4753 = vmatprep.subr.mxu0 0.0
    %4754 = vmatpush1.msra.mxu0 0.0
    %4755 = vmatprep.subr.mxu0 0.0
    %4756 = vmatpush1.msra.mxu0 0.0
    %4757 = vmatprep.subr.mxu0 0.0
    %4758 = vmatpush1.msra.mxu0 0.0
    %4759 = vmatprep.subr.mxu0 0.0
    %4760 = vmatpush1.msra.mxu0 0.0
    %4761 = vmatprep.subr.mxu0 0.0
    %4762 = vmatpush1.msra.mxu0 0.0
    %4763 = vmatprep.mubr.f32.mxu0 0.0
    %4764 = vmatmul.mubr.f32.gmra.mrb[0].mxu0 %v4697
    %v4765 = vpop.f32.mrb[0].mxu0
    %v4766 = vadd.f32 0.0, %v4765
    %v4767 = vpop.f32.mrb[0].mxu0
    %4768 = vdwg.mxu0
    %v4769 = vadd.f32 %v4683, %v4766
    %v4770 = vld [vmem:[%s2287] sm:$0xff]
    %v4771 = vld [vmem:[%s2287 + $0x8] sm:$0xff]
    %v4772 = vld [vmem:[%s2287 + $0x10] sm:$0xff]
    %v4773 = vld [vmem:[%s2287 + $0x18] sm:$0xff]
    %v4774 = vld [vmem:[%s2287 + $0x20] sm:$0xff]
    %v4775 = vld [vmem:[%s2287 + $0x28] sm:$0xff]
    %v4776 = vld [vmem:[%s2287 + $0x30] sm:$0xff]
    %v4777 = vld [vmem:[%s2287 + $0x38] sm:$0xff]
    %v4778 = vld [vmem:[%s2287 + $0x40] sm:$0xff]
    %v4779 = vld [vmem:[%s2287 + $0x48] sm:$0xff]
    %v4780 = vld [vmem:[%s2287 + $0x50] sm:$0xff]
    %v4781 = vld [vmem:[%s2287 + $0x58] sm:$0xff]
    %v4782 = vrot.slane %v4338, 5
    %v4783 = vsel %vm1864, %v4782, 0
    %4785 = vmatprep.subr.mxu0 0.0
    %4786 = vmatpush1.msra.mxu0 %v4770
    %4787 = vmatprep.subr.mxu0 0.0
    %4788 = vmatpush1.msra.mxu0 %v4771
    %4789 = vmatprep.subr.mxu0 0.0
    %4790 = vmatpush1.msra.mxu0 %v4772
    %4791 = vmatprep.subr.mxu0 0.0
    %4792 = vmatpush1.msra.mxu0 %v4773
    %4793 = vmatprep.subr.mxu0 0.0
    %4794 = vmatpush1.msra.mxu0 %v4774
    %4795 = vmatprep.subr.mxu0 0.0
    %4796 = vmatpush1.msra.mxu0 %v4775
    %4797 = vmatprep.subr.mxu0 0.0
    %4798 = vmatpush1.msra.mxu0 %v4776
    %4799 = vmatprep.subr.mxu0 0.0
    %4800 = vmatpush1.msra.mxu0 %v4777
    %4801 = vmatprep.subr.mxu0 0.0
    %4802 = vmatpush1.msra.mxu0 %v4778
    %4803 = vmatprep.subr.mxu0 0.0
    %4804 = vmatpush1.msra.mxu0 %v4779
    %4805 = vmatprep.subr.mxu0 0.0
    %4806 = vmatpush1.msra.mxu0 %v4780
    %4807 = vmatprep.subr.mxu0 0.0
    %4808 = vmatpush1.msra.mxu0 %v4781
    %4809 = vmatprep.subr.mxu0 0.0
    %4810 = vmatpush1.msra.mxu0 0.0
    %4811 = vmatprep.subr.mxu0 0.0
    %4812 = vmatpush1.msra.mxu0 0.0
    %4813 = vmatprep.subr.mxu0 0.0
    %4814 = vmatpush1.msra.mxu0 0.0
    %4815 = vmatprep.subr.mxu0 0.0
    %4816 = vmatpush1.msra.mxu0 0.0
    %4817 = vmatprep.subr.mxu0 0.0
    %4818 = vmatpush1.msra.mxu0 0.0
    %4819 = vmatprep.subr.mxu0 0.0
    %4820 = vmatpush1.msra.mxu0 0.0
    %4821 = vmatprep.subr.mxu0 0.0
    %4822 = vmatpush1.msra.mxu0 0.0
    %4823 = vmatprep.subr.mxu0 0.0
    %4824 = vmatpush1.msra.mxu0 0.0
    %4825 = vmatprep.subr.mxu0 0.0
    %4826 = vmatpush1.msra.mxu0 0.0
    %4827 = vmatprep.subr.mxu0 0.0
    %4828 = vmatpush1.msra.mxu0 0.0
    %4829 = vmatprep.subr.mxu0 0.0
    %4830 = vmatpush1.msra.mxu0 0.0
    %4831 = vmatprep.subr.mxu0 0.0
    %4832 = vmatpush1.msra.mxu0 0.0
    %4833 = vmatprep.subr.mxu0 0.0
    %4834 = vmatpush1.msra.mxu0 0.0
    %4835 = vmatprep.subr.mxu0 0.0
    %4836 = vmatpush1.msra.mxu0 0.0
    %4837 = vmatprep.subr.mxu0 0.0
    %4838 = vmatpush1.msra.mxu0 0.0
    %4839 = vmatprep.subr.mxu0 0.0
    %4840 = vmatpush1.msra.mxu0 0.0
    %4841 = vmatprep.subr.mxu0 0.0
    %4842 = vmatpush1.msra.mxu0 0.0
    %4843 = vmatprep.subr.mxu0 0.0
    %4844 = vmatpush1.msra.mxu0 0.0
    %4845 = vmatprep.subr.mxu0 0.0
    %4846 = vmatpush1.msra.mxu0 0.0
    %4847 = vmatprep.subr.mxu0 0.0
    %4848 = vmatpush1.msra.mxu0 0.0
    %4849 = vmatprep.mubr.f32.mxu0 0.0
    %4850 = vmatmul.mubr.f32.gmra.mrb[0].mxu0 %v4783
    %v4851 = vpop.f32.mrb[0].mxu0
    %v4852 = vadd.f32 0.0, %v4851
    %v4853 = vpop.f32.mrb[0].mxu0
    %4854 = vdwg.mxu0
    %v4855 = vadd.f32 %v4769, %v4852
    %v4856 = vmax.f32 %v4855, 0.0
    %v4857 = vld [vmem:[%s11] sm:$0xff]
    %v4858 = vld [vmem:[%s11 + $0x8] sm:$0xff]
    %v4859 = vld [vmem:[%s11 + $0x10] sm:$0xff]
    %v4860 = vld [vmem:[%s11 + $0x18] sm:$0xff]
    %v4861 = vld [vmem:[%s11 + $0x20] sm:$0xff]
    %v4862 = vld [vmem:[%s11 + $0x28] sm:$0xff]
    %v4863 = vld [vmem:[%s11 + $0x30] sm:$0xff]
    %v4864 = vld [vmem:[%s11 + $0x38] sm:$0xff]
    %v4865 = vld [vmem:[%s11 + $0x40] sm:$0xff]
    %v4866 = vld [vmem:[%s11 + $0x48] sm:$0xff]
    %v4867 = vld [vmem:[%s11 + $0x50] sm:$0xff]
    %v4868 = vld [vmem:[%s11 + $0x58] sm:$0xff]
    %v4869 = vld [vmem:[%s11 + $0x60] sm:$0xff]
    %v4870 = vld [vmem:[%s11 + $0x68] sm:$0xff]
    %v4871 = vld [vmem:[%s11 + $0x70] sm:$0xff]
    %v4872 = vld [vmem:[%s12] sm:$0x1]
    %v4874 = vsel %vm2391, %v4856, 0
    %4876 = vmatprep.subr.mxu0 0.0
    %4877 = vmatpush1.msra.mxu0 %v4857
    %4878 = vmatprep.subr.mxu0 0.0
    %4879 = vmatpush1.msra.mxu0 %v4858
    %4880 = vmatprep.subr.mxu0 0.0
    %4881 = vmatpush1.msra.mxu0 %v4859
    %4882 = vmatprep.subr.mxu0 0.0
    %4883 = vmatpush1.msra.mxu0 %v4860
    %4884 = vmatprep.subr.mxu0 0.0
    %4885 = vmatpush1.msra.mxu0 %v4861
    %4886 = vmatprep.subr.mxu0 0.0
    %4887 = vmatpush1.msra.mxu0 %v4862
    %4888 = vmatprep.subr.mxu0 0.0
    %4889 = vmatpush1.msra.mxu0 %v4863
    %4890 = vmatprep.subr.mxu0 0.0
    %4891 = vmatpush1.msra.mxu0 %v4864
    %4892 = vmatprep.subr.mxu0 0.0
    %4893 = vmatpush1.msra.mxu0 %v4865
    %4894 = vmatprep.subr.mxu0 0.0
    %4895 = vmatpush1.msra.mxu0 %v4866
    %4896 = vmatprep.subr.mxu0 0.0
    %4897 = vmatpush1.msra.mxu0 %v4867
    %4898 = vmatprep.subr.mxu0 0.0
    %4899 = vmatpush1.msra.mxu0 %v4868
    %4900 = vmatprep.subr.mxu0 0.0
    %4901 = vmatpush1.msra.mxu0 %v4869
    %4902 = vmatprep.subr.mxu0 0.0
    %4903 = vmatpush1.msra.mxu0 %v4870
    %4904 = vmatprep.subr.mxu0 0.0
    %4905 = vmatpush1.msra.mxu0 %v4871
    %4906 = vmatprep.subr.mxu0 0.0
    %4907 = vmatpush1.msra.mxu0 0.0
    %4908 = vmatprep.subr.mxu0 0.0
    %4909 = vmatpush1.msra.mxu0 0.0
    %4910 = vmatprep.subr.mxu0 0.0
    %4911 = vmatpush1.msra.mxu0 0.0
    %4912 = vmatprep.subr.mxu0 0.0
    %4913 = vmatpush1.msra.mxu0 0.0
    %4914 = vmatprep.subr.mxu0 0.0
    %4915 = vmatpush1.msra.mxu0 0.0
    %4916 = vmatprep.subr.mxu0 0.0
    %4917 = vmatpush1.msra.mxu0 0.0
    %4918 = vmatprep.subr.mxu0 0.0
    %4919 = vmatpush1.msra.mxu0 0.0
    %4920 = vmatprep.subr.mxu0 0.0
    %4921 = vmatpush1.msra.mxu0 0.0
    %4922 = vmatprep.subr.mxu0 0.0
    %4923 = vmatpush1.msra.mxu0 0.0
    %4924 = vmatprep.subr.mxu0 0.0
    %4925 = vmatpush1.msra.mxu0 0.0
    %4926 = vmatprep.subr.mxu0 0.0
    %4927 = vmatpush1.msra.mxu0 0.0
    %4928 = vmatprep.subr.mxu0 0.0
    %4929 = vmatpush1.msra.mxu0 0.0
    %4930 = vmatprep.subr.mxu0 0.0
    %4931 = vmatpush1.msra.mxu0 0.0
    %4932 = vmatprep.subr.mxu0 0.0
    %4933 = vmatpush1.msra.mxu0 0.0
    %4934 = vmatprep.subr.mxu0 0.0
    %4935 = vmatpush1.msra.mxu0 0.0
    %4936 = vmatprep.subr.mxu0 0.0
    %4937 = vmatpush1.msra.mxu0 0.0
    %4938 = vmatprep.subr.mxu0 0.0
    %4939 = vmatpush1.msra.mxu0 0.0
    %4940 = vmatprep.mubr.f32.mxu0 0.0
    %4941 = vmatmul.mubr.f32.gmra.mrb[0].mxu0 %v4874
    %v4942 = vpop.f32.mrb[0].mxu0
    %v4943 = vadd.f32 %v4872, %v4942
    %v4944 = vpop.f32.mrb[0].mxu0
    %4945 = vdwg.mxu0
    %v4946 = vmax.f32 %v4943, 0.0
    %v4947 = vld [vmem:[%s13] sm:$0xff]
    %v4948 = vld [vmem:[%s13 + $0x8] sm:$0xff]
    %v4949 = vld [vmem:[%s13 + $0x10] sm:$0xff]
    %v4950 = vld [vmem:[%s13 + $0x18] sm:$0xff]
    %v4951 = vld [vmem:[%s13 + $0x20] sm:$0xff]
    %v4952 = vld [vmem:[%s13 + $0x28] sm:$0xff]
    %v4953 = vld [vmem:[%s13 + $0x30] sm:$0xff]
    %v4954 = vld [vmem:[%s13 + $0x38] sm:$0xff]
    %v4955 = vld [vmem:[%s13 + $0x40] sm:$0xff]
    %v4956 = vld [vmem:[%s13 + $0x48] sm:$0xff]
    %v4957 = vld [vmem:[%s13 + $0x50] sm:$0xf]
    %v4958 = vld [vmem:[%s14] sm:$0x1]
    %v4960 = vsel %vm2478, %v4946, 0
    %v4963 = vsel %vm637, %v4957, 0
    %4965 = vmatprep.subr.mxu0 0.0
    %4966 = vmatpush1.msra.mxu0 %v4947
    %4967 = vmatprep.subr.mxu0 0.0
    %4968 = vmatpush1.msra.mxu0 %v4948
    %4969 = vmatprep.subr.mxu0 0.0
    %4970 = vmatpush1.msra.mxu0 %v4949
    %4971 = vmatprep.subr.mxu0 0.0
    %4972 = vmatpush1.msra.mxu0 %v4950
    %4973 = vmatprep.subr.mxu0 0.0
    %4974 = vmatpush1.msra.mxu0 %v4951
    %4975 = vmatprep.subr.mxu0 0.0
    %4976 = vmatpush1.msra.mxu0 %v4952
    %4977 = vmatprep.subr.mxu0 0.0
    %4978 = vmatpush1.msra.mxu0 %v4953
    %4979 = vmatprep.subr.mxu0 0.0
    %4980 = vmatpush1.msra.mxu0 %v4954
    %4981 = vmatprep.subr.mxu0 0.0
    %4982 = vmatpush1.msra.mxu0 %v4955
    %4983 = vmatprep.subr.mxu0 0.0
    %4984 = vmatpush1.msra.mxu0 %v4956
    %4985 = vmatprep.subr.mxu0 0.0
    %4986 = vmatpush1.msra.mxu0 %v4963
    %4987 = vmatprep.subr.mxu0 0.0
    %4988 = vmatpush1.msra.mxu0 0.0
    %4989 = vmatprep.subr.mxu0 0.0
    %4990 = vmatpush1.msra.mxu0 0.0
    %4991 = vmatprep.subr.mxu0 0.0
    %4992 = vmatpush1.msra.mxu0 0.0
    %4993 = vmatprep.subr.mxu0 0.0
    %4994 = vmatpush1.msra.mxu0 0.0
    %4995 = vmatprep.subr.mxu0 0.0
    %4996 = vmatpush1.msra.mxu0 0.0
    %4997 = vmatprep.subr.mxu0 0.0
    %4998 = vmatpush1.msra.mxu0 0.0
    %4999 = vmatprep.subr.mxu0 0.0
    %5000 = vmatpush1.msra.mxu0 0.0
    %5001 = vmatprep.subr.mxu0 0.0
    %5002 = vmatpush1.msra.mxu0 0.0
    %5003 = vmatprep.subr.mxu0 0.0
    %5004 = vmatpush1.msra.mxu0 0.0
    %5005 = vmatprep.subr.mxu0 0.0
    %5006 = vmatpush1.msra.mxu0 0.0
    %5007 = vmatprep.subr.mxu0 0.0
    %5008 = vmatpush1.msra.mxu0 0.0
    %5009 = vmatprep.subr.mxu0 0.0
    %5010 = vmatpush1.msra.mxu0 0.0
    %5011 = vmatprep.subr.mxu0 0.0
    %5012 = vmatpush1.msra.mxu0 0.0
    %5013 = vmatprep.subr.mxu0 0.0
    %5014 = vmatpush1.msra.mxu0 0.0
    %5015 = vmatprep.subr.mxu0 0.0
    %5016 = vmatpush1.msra.mxu0 0.0
    %5017 = vmatprep.subr.mxu0 0.0
    %5018 = vmatpush1.msra.mxu0 0.0
    %5019 = vmatprep.subr.mxu0 0.0
    %5020 = vmatpush1.msra.mxu0 0.0
    %5021 = vmatprep.subr.mxu0 0.0
    %5022 = vmatpush1.msra.mxu0 0.0
    %5023 = vmatprep.subr.mxu0 0.0
    %5024 = vmatpush1.msra.mxu0 0.0
    %5025 = vmatprep.subr.mxu0 0.0
    %5026 = vmatpush1.msra.mxu0 0.0
    %5027 = vmatprep.subr.mxu0 0.0
    %5028 = vmatpush1.msra.mxu0 0.0
    %5029 = vmatprep.mubr.f32.mxu0 0.0
    %5030 = vmatmul.mubr.f32.gmra.mrb[0].mxu0 %v4960
    %v5031 = vpop.f32.mrb[0].mxu0
    %v5032 = vadd.f32 %v4958, %v5031
    %v5033 = vpop.f32.mrb[0].mxu0
    %5034 = vdwg.mxu0
    %5035 = vst.msk [vmem:[#allocation2 + $0x1] sm:$0x1] %vm2555, %v5032
    // Predicated region
    $region62: #{net_forward.1} parent=1 // pred_check
      _
    $region63: #{net_forward.1} parent=1 // pred_check_branch
      %5037 = sbr.rel (0) target = $region65
    $region64: #{net_forward.1} parent=1 // pred_region
      %s5039 = ssub.s32 32, 32
      %5040 = vsyncadd [#allocation3], %s5039
      %s5042 = sshll.u32 [#allocation2], 4
      %s5043 = int_to_ptr.vmem [resolvable:$true] %s5042
      %5045 = dma.vmem_to_hbm [thread:$0]  %s5043, 32, %s15, [#allocation3]
    $region65: #{net_forward.1} parent=1 // pred_fallthru
      _
    // Predicated region
    $region66: #{net_forward.1} parent=1 // pred_check
      _
    $region67: #{net_forward.1} parent=1 // pred_check_branch
      %5047 = sbr.rel (0) target = $region69
    $region68: #{net_forward.1} parent=1 // pred_region
      %5048 = dma.done [#allocation3], 32
    $region69: #{net_forward.1} parent=1 // pred_fallthru
      _
    %5049 = vsyncpa [#allocation3], 1

</llo_original>
